<compile_context>
chip_gen: v7x
topology: tpu7x:2x2x1
jax: 0.10.0
libtpu: 0.0.40
codegen_flags: <defaults>
</compile_context>

<pallas_src>
import functools

import jax
import jax.numpy as jnp
from jax.experimental import pallas as pl
from jax.experimental.pallas import tpu as pltpu


# ------------------------------ fused encoder kernel ------------------------------ #
def _encoder_kernel(xw_ref, whh_ref, awe_ref, ab_ref,
                    enc_bt_ref, encp_bt_ref, h_fin_ref, c_fin_ref):
    S, B, H4 = xw_ref.shape
    H = H4 // 4
    Hd = awe_ref.shape[-1]

    # Loop-invariant loads / broadcasts hoisted above the recurrence.
    whh = whh_ref[...]                                       # (H, 4H): ONE fused gate matmul / step
    awe = awe_ref[...]                                       # (H, Hd)
    ab = jnp.broadcast_to(ab_ref[...], (B, Hd))              # (B, Hd)
    lane = jax.lax.broadcasted_iota(jnp.int32, (B, H4), 1)
    is_g = jnp.logical_and(lane >= 2 * H, lane < 3 * H)      # torch gate order i,f,g,o; g -> tanh

    h = jnp.zeros((B, H), jnp.float32)
    c = jnp.zeros((B, H), jnp.float32)

    # Whole S-step recurrence in ONE kernel invocation, fully unrolled (static t): this is
    # the unrolled form of lax.fori_loop(..., unroll=True) and lets us write the encoder
    # outputs + attention projection batch-major directly (no XLA transpose between kernels).
    for t in range(S):
        # x_t @ W_ih + b was hoisted off the serial chain (precomputed into xw).
        z = xw_ref[t] + jnp.dot(h, whh, preferred_element_type=jnp.float32)   # (B, 4H)
        act = jnp.where(is_g, jnp.tanh(z), jax.nn.sigmoid(z))                 # whole-vreg select
        i_g = act[:, :H]
        f_g = act[:, H:2 * H]
        g_g = act[:, 2 * H:3 * H]
        o_g = act[:, 3 * H:]
        c = f_g * c + i_g * g_g
        h = o_g * jnp.tanh(c)
        enc_bt_ref[:, t, :] = h                                               # batch-major store
        # encoder-side attention projection fused here (off the h/c critical path)
        encp_bt_ref[:, t, :] = jnp.dot(h, awe, preferred_element_type=jnp.float32) + ab

    h_fin_ref[...] = h                                                        # written once
    c_fin_ref[...] = c


def run_encoder(xw, whh, attn_we, attn_b):
    S, B, H4 = xw.shape
    H = H4 // 4
    Hd = attn_we.shape[-1]
    vmem = pl.BlockSpec(memory_space=pltpu.MemorySpace.VMEM)   # whole array, VMEM-resident
    return pl.pallas_call(
        _encoder_kernel,
        out_shape=(jax.ShapeDtypeStruct((B, S, H), jnp.float32),    # encoder_outputs (batch-major)
                   jax.ShapeDtypeStruct((B, S, Hd), jnp.float32),   # enc @ attn_we + attn_b
                   jax.ShapeDtypeStruct((B, H), jnp.float32),       # final hidden
                   jax.ShapeDtypeStruct((B, H), jnp.float32)),      # final cell
        in_specs=[vmem, vmem, vmem, vmem],
        out_specs=(vmem, vmem, vmem, vmem),
    )(xw, whh, attn_we, attn_b)


# ------------------------------ fused decoder kernel ------------------------------ #
def _decoder_kernel(emb0_ref, h0_ref, cell_ref, enc_ref, encp_ref, mask_ref,
                    awh_ref, av_ref, w_rnn_ref, b_rnn_ref,
                    w_out_ref, b_out_ref, embtab_ref,
                    logits_ref, attn_ref):
    B, S, He = enc_ref.shape
    H = h0_ref.shape[-1]
    Hd = awh_ref.shape[-1]
    Vp = b_out_ref.shape[-1]
    n_steps = logits_ref.shape[0]

    # ---- loop-invariant loads & constant broadcasts hoisted above the recurrence ----
    enc = enc_ref[...]                                             # (B, S, He)
    encp = encp_ref[...]                                           # (B, S, Hd)
    maskb = mask_ref[...] > 0.0                                    # (B, S, 1)
    awh = awh_ref[...]                                             # (H, Hd)
    v_b = jnp.broadcast_to(av_ref[...], (B, S, Hd))                # attention v, pre-broadcast
    b_rnn = jnp.broadcast_to(b_rnn_ref[...], (B, 4 * H))           # (B, 4H)
    b_out = jnp.broadcast_to(b_out_ref[...], (B, Vp))              # (B, Vp); pad lanes = -1e30
    c = cell_ref[...]                                              # (B, H): PyTorch decoder never
                                                                   # returns its updated cell ->
                                                                   # frozen at the encoder's final.
    lane = jax.lax.broadcasted_iota(jnp.int32, (B, 4 * H), 1)
    is_g = jnp.logical_and(lane >= 2 * H, lane < 3 * H)
    vocab_ids = jax.lax.broadcasted_iota(jnp.int32, (B, Vp), 1).astype(jnp.float32)

    def step(t, carry):
        hidden, emb = carry                                        # (B, H), (B, E)

        # ----------------- attention: masked softmax + context ----------------- #
        hid_proj = jnp.dot(hidden, awh, preferred_element_type=jnp.float32)       # (B, Hd)
        energy = jnp.tanh(hid_proj[:, None, :] + encp)                            # (B, S, Hd)
        # scores: VPU multiply + lane (XLU) reduce; keepdims keeps S on sublanes so the
        # softmax and the context reduction need no relayout (no M=1 MXU einsum).
        scores = jnp.sum(v_b * energy, axis=-1, keepdims=True)                    # (B, S, 1)
        scores = jnp.where(maskb, scores, -1.0e10)                                # masked_fill
        m = jnp.max(scores, axis=1, keepdims=True)
        e = jnp.exp(scores - m)
        a = e / jnp.sum(e, axis=1, keepdims=True)                                 # softmax over S
        # context: VPU multiply + sublane (XLU) reduce over S
        weighted = jnp.sum(a * enc, axis=1)                                       # (B, He)

        # -------- LSTM cell: ONE lane-dense (B,80)@(80,4H=128) matmul per step -------- #
        x_cat = jnp.concatenate([emb, weighted, hidden], axis=-1)                 # (B, E+He+H)
        z = jnp.dot(x_cat, w_rnn_ref[...], preferred_element_type=jnp.float32) + b_rnn
        act = jnp.where(is_g, jnp.tanh(z), jax.nn.sigmoid(z))
        i_g = act[:, :H]
        f_g = act[:, H:2 * H]
        g_g = act[:, 2 * H:3 * H]
        o_g = act[:, 3 * H:]
        c_new = f_g * c + i_g * g_g
        h_new = o_g * jnp.tanh(c_new)

        # -------- output head: ONE (B,80)@(80,Vp) matmul, vocab padded to 128 lanes -------- #
        y_cat = jnp.concatenate([h_new, weighted, emb], axis=-1)                  # (B, H+He+E)
        logits = jnp.dot(y_cat, w_out_ref[...],
                         preferred_element_type=jnp.float32) + b_out              # (B, Vp)

        logits_ref[t] = logits                                                    # VMEM-resident
        attn_ref[t] = a

        # -------- greedy next token (argmax, first-index) -> embedding via one-hot @ table --
        mx = jnp.max(logits, axis=-1, keepdims=True)
        idx = jnp.min(jnp.where(logits == mx, vocab_ids, float(Vp)),
                      axis=-1, keepdims=True)                                     # (B, 1)
        onehot = (vocab_ids == idx).astype(jnp.float32)                           # (B, Vp)
        emb_next = jnp.dot(onehot, embtab_ref[...],
                           preferred_element_type=jnp.float32)                    # (B, E)
        return h_new, emb_next

    # Whole greedy decode in one invocation; per review: fori_loop fully unrolled.
    jax.lax.fori_loop(0, n_steps, step, (h0_ref[...], emb0_ref[...]), unroll=True)


def run_decoder(n_steps, emb0, hid0, cell, enc_bt, encp_bt, mask3,
                attn_wh, attn_v, w_rnn, b_rnn, w_out, b_out, emb_tab):
    B, S, _ = enc_bt.shape
    Vp = b_out.shape[-1]
    vmem = pl.BlockSpec(memory_space=pltpu.MemorySpace.VMEM)
    return pl.pallas_call(
        _decoder_kernel,
        out_shape=(jax.ShapeDtypeStruct((n_steps, B, Vp), jnp.float32),
                   jax.ShapeDtypeStruct((n_steps, B, S, 1), jnp.float32)),
        in_specs=[vmem] * 13,
        out_specs=(vmem, vmem),
    )(emb0, hid0, cell, enc_bt, encp_bt, mask3, attn_wh, attn_v,
      w_rnn, b_rnn, w_out, b_out, emb_tab)


# --------------------------------- seq2seq forward --------------------------------- #
def seq2seq_forward(params, src, src_len, trg, *, pad_idx, teacher_forcing_ratio=0.0):
    # teacher_forcing_ratio fixed at 0.0 -> next decoder input is always argmax(logits).
    # TODO(synk): stochastic teacher forcing (random.random() per step) and variable-length
    # pack_padded_sequence are not modeled; full-length sequences + eval-mode dropout assumed.
    del src_len, teacher_forcing_ratio
    S, B = src.shape
    T = trg.shape[0]
    V = params["out_b"].shape[-1]
    Vp = ((V + 127) // 128) * 128

    # Encoder input-hidden term hoisted off the serial chain: one (S*B,E)@(E,4H) matmul in
    # XLA (fuses with the embedding gather) instead of S tiny matmuls inside the recurrence.
    embedded = jnp.take(params["emb_enc"], src, axis=0)                           # (S, B, E)
    xw = (jnp.einsum('sbe,eh->sbh', embedded, params["wih_enc"])
          + params["b_enc"][None, :, :])                                          # (S, B, 4H)

    # Fused encoder: recurrence + batch-major outputs + attention projection, one call.
    enc_bt, encp_bt, hidden, cell = run_encoder(
        xw, params["whh_enc"], params["attn_we"], params["attn_b"])

    mask3 = (src != pad_idx).astype(jnp.float32).T[:, :, None]                    # (B, S, 1)

    # Lane-concatenated decoder weights: one matmul for the 4 LSTM gates, one for the output
    # head. Row order matches torch's concats: [embedded|weighted] for W_ih + hidden for W_hh;
    # [output|weighted|embedded] for the out linear. Vocab padded to 128 lanes (pad bias -1e30).
    w_rnn = jnp.concatenate([params["wih_dec"], params["whh_dec"]], axis=0)       # (E+He+H, 4H)
    w_out = jnp.concatenate([params["out_wh"], params["out_ww"], params["out_we"]],
                            axis=0)                                               # (H+He+E, V)
    w_out_p = jnp.pad(w_out, ((0, 0), (0, Vp - V)))
    b_out_p = jnp.pad(params["out_b"], ((0, 0), (0, Vp - V)), constant_values=-1e30)
    emb_dec_p = jnp.pad(params["emb_dec"], ((0, Vp - V), (0, 0)))                 # (Vp, E)

    emb0 = jnp.take(params["emb_dec"], trg[0], axis=0)                            # (B, E)

    # Fused decoder: attention + LSTM + output head + greedy argmax for t = 1..T-1.
    logits_p, attn4 = run_decoder(
        T - 1, emb0, hidden, cell, enc_bt, encp_bt, mask3,
        params["attn_wh"], params["attn_v"], w_rnn, params["b_dec"],
        w_out_p, b_out_p, emb_dec_p)

    outputs = jnp.concatenate(
        [jnp.zeros((1, B, V), jnp.float32), logits_p[:, :, :V]], axis=0)          # outputs[0] = 0
    attentions = jnp.concatenate(
        [jnp.zeros((1, B, S), jnp.float32), attn4.reshape(T - 1, B, S)], axis=0)  # attentions[0] = 0
    return outputs, attentions


# ----------------------- pure-JAX reference (same semantics) ----------------------- #
def seq2seq_reference(params, src, trg, *, pad_idx):
    S, B = src.shape
    T = trg.shape[0]
    V = params["out_b"].shape[-1]
    H = params["whh_enc"].shape[0]

    def lstm(x, h, c, wih, whh, b):
        z = x @ wih + h @ whh + b
        i, f, g, o = jnp.split(z, 4, axis=-1)
        c = jax.nn.sigmoid(f) * c + jax.nn.sigmoid(i) * jnp.tanh(g)
        h = jax.nn.sigmoid(o) * jnp.tanh(c)
        return h, c

    emb = params["emb_enc"][src]                                      # (S, B, E)
    h = jnp.zeros((B, H), jnp.float32)
    c = jnp.zeros((B, H), jnp.float32)
    enc = []
    for t in range(S):
        h, c = lstm(emb[t], h, c, params["wih_enc"], params["whh_enc"], params["b_enc"])
        enc.append(h)
    enc_bt = jnp.stack(enc, axis=1)                                   # (B, S, H)
    mask = (src != pad_idx).astype(jnp.float32).T                     # (B, S)
    encp = enc_bt @ params["attn_we"] + params["attn_b"][None, :, :]  # (B, S, Hd)
    w_out = jnp.concatenate(
        [params["out_wh"], params["out_ww"], params["out_we"]], axis=0)

    hidden, cell = h, c
    inp = trg[0]
    outs = [jnp.zeros((B, V), jnp.float32)]
    atts = [jnp.zeros((B, S), jnp.float32)]
    for _ in range(1, T):
        e_t = params["emb_dec"][inp]                                  # (B, E)
        energy = jnp.tanh((hidden @ params["attn_wh"])[:, None, :] + encp)
        sc = jnp.sum(params["attn_v"][0][None, None, :] * energy, axis=-1)   # (B, S)
        sc = jnp.where(mask > 0, sc, -1.0e10)
        a = jax.nn.softmax(sc, axis=1)
        weighted = jnp.einsum('bs,bsh->bh', a, enc_bt)
        z = (jnp.concatenate([e_t, weighted], axis=-1) @ params["wih_dec"]
             + hidden @ params["whh_dec"] + params["b_dec"])
        i, f, g, o = jnp.split(z, 4, axis=-1)
        c_new = jax.nn.sigmoid(f) * cell + jax.nn.sigmoid(i) * jnp.tanh(g)
        h_new = jax.nn.sigmoid(o) * jnp.tanh(c_new)
        logits = (jnp.concatenate([h_new, weighted, e_t], axis=-1) @ w_out
                  + params["out_b"])
        outs.append(logits)
        atts.append(a)
        hidden = h_new                                                # cell stays frozen
        inp = jnp.argmax(logits, axis=-1)
    return jnp.stack(outs, axis=0), jnp.stack(atts, axis=0)


# --------------------------------------- main --------------------------------------- #
if __name__ == "__main__":
    INPUT_DIM = 20      # src vocab
    OUTPUT_DIM = 24     # trg vocab
    EMB_DIM = 16
    ENC_HID = 32        # must equal DEC_HID for the original module to run
    DEC_HID = 32
    S, T, B = 8, 6, 2
    PAD_IDX, SOS_IDX, EOS_IDX = 0, 1, 2

    key = jax.random.PRNGKey(0)
    keys = jax.random.split(key, 20)

    def u(k, shape, fan_in):
        bound = 1.0 / float(jnp.sqrt(jnp.float32(fan_in)))
        return jax.random.uniform(k, shape, jnp.float32, -bound, bound)

    params = dict(
        # encoder
        emb_enc=u(keys[0], (INPUT_DIM, EMB_DIM), EMB_DIM),
        wih_enc=u(keys[1], (EMB_DIM, 4 * ENC_HID), ENC_HID),
        whh_enc=u(keys[2], (ENC_HID, 4 * ENC_HID), ENC_HID),
        b_enc=u(keys[3], (1, 4 * ENC_HID), ENC_HID),                # b_ih + b_hh folded
        # encoder.fc is never used in this forward pass -> omitted
        # decoder
        emb_dec=u(keys[4], (OUTPUT_DIM, EMB_DIM), EMB_DIM),
        wih_dec=u(keys[5], (EMB_DIM + ENC_HID, 4 * DEC_HID), DEC_HID),
        whh_dec=u(keys[6], (DEC_HID, 4 * DEC_HID), DEC_HID),
        b_dec=u(keys[7], (1, 4 * DEC_HID), DEC_HID),
        # attention (attn weight split into hidden / encoder parts)
        attn_wh=u(keys[8], (DEC_HID, DEC_HID), ENC_HID + DEC_HID),
        attn_we=u(keys[9], (ENC_HID, DEC_HID), ENC_HID + DEC_HID),
        attn_b=u(keys[10], (1, DEC_HID), ENC_HID + DEC_HID),
        attn_v=jax.random.uniform(keys[11], (1, DEC_HID), jnp.float32, 0.0, 1.0),  # torch.rand
        # output linear (split over [output, weighted, embedded] concat)
        out_wh=u(keys[12], (DEC_HID, OUTPUT_DIM), ENC_HID + DEC_HID + EMB_DIM),
        out_ww=u(keys[13], (ENC_HID, OUTPUT_DIM), ENC_HID + DEC_HID + EMB_DIM),
        out_we=u(keys[14], (EMB_DIM, OUTPUT_DIM), ENC_HID + DEC_HID + EMB_DIM),
        out_b=u(keys[15], (1, OUTPUT_DIM), ENC_HID + DEC_HID + EMB_DIM),
    )

    src = jax.random.randint(keys[16], (S, B), 3, INPUT_DIM, dtype=jnp.int32)   # no PAD tokens
    src_len = jnp.full((B,), S, dtype=jnp.int32)
    trg = jnp.concatenate(
        [jnp.full((1, B), SOS_IDX, jnp.int32),
         jax.random.randint(keys[17], (T - 1, B), 3, OUTPUT_DIM, dtype=jnp.int32)], axis=0)

    fwd = jax.jit(functools.partial(seq2seq_forward, pad_idx=PAD_IDX,
                                    teacher_forcing_ratio=0.0))
    outputs, attentions = fwd(params, src, src_len, trg)
    jax.block_until_ready((outputs, attentions))
    assert outputs.shape == (T, B, OUTPUT_DIM) and attentions.shape == (T, B, S)

    # Pure-JAX reference check (same semantics): guards the fused-gate / concat / layout rework.
    ref_out, ref_att = jax.jit(functools.partial(seq2seq_reference, pad_idx=PAD_IDX))(
        params, src, trg)
    jax.block_until_ready((ref_out, ref_att))
    err_o = float(jnp.max(jnp.abs(outputs - ref_out)))
    err_a = float(jnp.max(jnp.abs(attentions - ref_att)))
    assert err_o < 1e-3 and err_a < 1e-3, (err_o, err_a)
    print("KERNEL_OK")
</pallas_src>

<mosaic_0001>
module attributes {stable_mosaic.version = 11 : i64} {
  func.func @_encoder_kernel(%arg0: memref<8x2x128xf32, #tpu.memory_space<vmem>>, %arg1: memref<32x128xf32, #tpu.memory_space<vmem>>, %arg2: memref<32x32xf32, #tpu.memory_space<vmem>>, %arg3: memref<1x32xf32, #tpu.memory_space<vmem>>, %arg4: memref<2x8x32xf32, #tpu.memory_space<vmem>>, %arg5: memref<2x8x32xf32, #tpu.memory_space<vmem>>, %arg6: memref<2x32xf32, #tpu.memory_space<vmem>>, %arg7: memref<2x32xf32, #tpu.memory_space<vmem>>) attributes {dimension_semantics = [], scalar_prefetch = 0 : i64, scratch_operands = 0 : i64, tpu.core_type = #tpu.core_type<tc>} {
    %c0 = arith.constant 0 : index
    %c0_0 = arith.constant 0 : index
    %0 = vector.load %arg1[%c0, %c0_0] : memref<32x128xf32, #tpu.memory_space<vmem>>, vector<32x128xf32>
    %c0_1 = arith.constant 0 : index
    %c0_2 = arith.constant 0 : index
    %1 = vector.load %arg2[%c0_1, %c0_2] : memref<32x32xf32, #tpu.memory_space<vmem>>, vector<32x32xf32>
    %c0_3 = arith.constant 0 : index
    %c0_4 = arith.constant 0 : index
    %2 = vector.load %arg3[%c0_3, %c0_4] : memref<1x32xf32, #tpu.memory_space<vmem>>, vector<1x32xf32>
    %3 = vector.shape_cast %2 : vector<1x32xf32> to vector<1x32xf32>
    %4 = vector.broadcast %3 : vector<1x32xf32> to vector<2x32xf32>
    %5 = tpu.iota {dimensions = array<i32: 1>} : vector<2x128xi32>
    %c64_i32 = arith.constant 64 : i32
    %6 = vector.broadcast %c64_i32 : i32 to vector<2x128xi32>
    %7 = arith.cmpi sge, %5, %6 : vector<2x128xi32>
    %c96_i32 = arith.constant 96 : i32
    %8 = vector.broadcast %c96_i32 : i32 to vector<2x128xi32>
    %9 = arith.cmpi slt, %5, %8 : vector<2x128xi32>
    %10 = arith.andi %7, %9 : vector<2x128xi1>
    %cst = arith.constant 0.000000e+00 : f32
    %11 = vector.broadcast %cst : f32 to vector<2x32xf32>
    %cst_5 = arith.constant 0.000000e+00 : f32
    %12 = vector.broadcast %cst_5 : f32 to vector<2x32xf32>
    %c0_6 = arith.constant 0 : index
    %c0_7 = arith.constant 0 : index
    %c0_8 = arith.constant 0 : index
    %13 = vector.load %arg0[%c0_6, %c0_7, %c0_8] : memref<8x2x128xf32, #tpu.memory_space<vmem>>, vector<1x2x128xf32>
    %14 = vector.shape_cast %13 : vector<1x2x128xf32> to vector<2x128xf32>
    %cst_9 = arith.constant dense<0.000000e+00> : vector<2x128xf32>
    %15 = tpu.matmul %11, %0, %cst_9 {dimension_numbers = #tpu.dot_dimension_numbers<[1], [0], [0], [1], [0, 0, 1, 1], [], []>} : vector<2x32xf32>, vector<32x128xf32>, vector<2x128xf32> -> vector<2x128xf32>
    %16 = arith.addf %14, %15 : vector<2x128xf32>
    %17 = math.tanh %16 : vector<2x128xf32>
    %18 = arith.negf %16 : vector<2x128xf32>
    %19 = math.exp %18 : vector<2x128xf32>
    %cst_10 = arith.constant 1.000000e+00 : f32
    %20 = vector.broadcast %cst_10 : f32 to vector<2x128xf32>
    %21 = arith.addf %20, %19 : vector<2x128xf32>
    %22 = arith.divf %20, %21 : vector<2x128xf32>
    %23 = arith.select %10, %17, %22 : vector<2x128xi1>, vector<2x128xf32>
    %24 = vector.extract_strided_slice %23 {offsets = [0, 0], sizes = [2, 32], strides = [1, 1]} : vector<2x128xf32> to vector<2x32xf32>
    %25 = vector.extract_strided_slice %23 {offsets = [0, 32], sizes = [2, 32], strides = [1, 1]} : vector<2x128xf32> to vector<2x32xf32>
    %26 = vector.extract_strided_slice %23 {offsets = [0, 64], sizes = [2, 32], strides = [1, 1]} : vector<2x128xf32> to vector<2x32xf32>
    %27 = vector.extract_strided_slice %23 {offsets = [0, 96], sizes = [2, 32], strides = [1, 1]} : vector<2x128xf32> to vector<2x32xf32>
    %28 = arith.mulf %25, %12 : vector<2x32xf32>
    %29 = arith.mulf %24, %26 : vector<2x32xf32>
    %30 = arith.addf %28, %29 : vector<2x32xf32>
    %31 = math.tanh %30 : vector<2x32xf32>
    %32 = arith.mulf %27, %31 : vector<2x32xf32>
    %c0_11 = arith.constant 0 : index
    %c0_12 = arith.constant 0 : index
    %c0_13 = arith.constant 0 : index
    %33 = vector.load %arg4[%c0_11, %c0_12, %c0_13] : memref<2x8x32xf32, #tpu.memory_space<vmem>>, vector<2x1x32xf32>
    %34 = vector.shape_cast %33 : vector<2x1x32xf32> to vector<2x32xf32>
    %35 = vector.shape_cast %32 : vector<2x32xf32> to vector<2x1x32xf32>
    tpu.vector_store %arg4[%c0_11, %c0_12, %c0_13], %35 {strides = array<i32>} : memref<2x8x32xf32, #tpu.memory_space<vmem>>, vector<2x1x32xf32>,
    %cst_14 = arith.constant dense<0.000000e+00> : vector<2x32xf32>
    %36 = tpu.matmul %32, %1, %cst_14 {dimension_numbers = #tpu.dot_dimension_numbers<[1], [0], [0], [1], [0, 0, 1, 1], [], []>} : vector<2x32xf32>, vector<32x32xf32>, vector<2x32xf32> -> vector<2x32xf32>
    %37 = arith.addf %36, %4 : vector<2x32xf32>
    %c0_15 = arith.constant 0 : index
    %c0_16 = arith.constant 0 : index
    %c0_17 = arith.constant 0 : index
    %38 = vector.load %arg5[%c0_15, %c0_16, %c0_17] : memref<2x8x32xf32, #tpu.memory_space<vmem>>, vector<2x1x32xf32>
    %39 = vector.shape_cast %38 : vector<2x1x32xf32> to vector<2x32xf32>
    %40 = vector.shape_cast %37 : vector<2x32xf32> to vector<2x1x32xf32>
    tpu.vector_store %arg5[%c0_15, %c0_16, %c0_17], %40 {strides = array<i32>} : memref<2x8x32xf32, #tpu.memory_space<vmem>>, vector<2x1x32xf32>,
    %c1 = arith.constant 1 : index
    %c0_18 = arith.constant 0 : index
    %c0_19 = arith.constant 0 : index
    %41 = vector.load %arg0[%c1, %c0_18, %c0_19] : memref<8x2x128xf32, #tpu.memory_space<vmem>>, vector<1x2x128xf32>
    %42 = vector.shape_cast %41 : vector<1x2x128xf32> to vector<2x128xf32>
    %cst_20 = arith.constant dense<0.000000e+00> : vector<2x128xf32>
    %43 = tpu.matmul %32, %0, %cst_20 {dimension_numbers = #tpu.dot_dimension_numbers<[1], [0], [0], [1], [0, 0, 1, 1], [], []>} : vector<2x32xf32>, vector<32x128xf32>, vector<2x128xf32> -> vector<2x128xf32>
    %44 = arith.addf %42, %43 : vector<2x128xf32>
    %45 = math.tanh %44 : vector<2x128xf32>
    %46 = arith.negf %44 : vector<2x128xf32>
    %47 = math.exp %46 : vector<2x128xf32>
    %cst_21 = arith.constant 1.000000e+00 : f32
    %48 = vector.broadcast %cst_21 : f32 to vector<2x128xf32>
    %49 = arith.addf %48, %47 : vector<2x128xf32>
    %50 = arith.divf %48, %49 : vector<2x128xf32>
    %51 = arith.select %10, %45, %50 : vector<2x128xi1>, vector<2x128xf32>
    %52 = vector.extract_strided_slice %51 {offsets = [0, 0], sizes = [2, 32], strides = [1, 1]} : vector<2x128xf32> to vector<2x32xf32>
    %53 = vector.extract_strided_slice %51 {offsets = [0, 32], sizes = [2, 32], strides = [1, 1]} : vector<2x128xf32> to vector<2x32xf32>
    %54 = vector.extract_strided_slice %51 {offsets = [0, 64], sizes = [2, 32], strides = [1, 1]} : vector<2x128xf32> to vector<2x32xf32>
    %55 = vector.extract_strided_slice %51 {offsets = [0, 96], sizes = [2, 32], strides = [1, 1]} : vector<2x128xf32> to vector<2x32xf32>
    %56 = arith.mulf %53, %30 : vector<2x32xf32>
    %57 = arith.mulf %52, %54 : vector<2x32xf32>
    %58 = arith.addf %56, %57 : vector<2x32xf32>
    %59 = math.tanh %58 : vector<2x32xf32>
    %60 = arith.mulf %55, %59 : vector<2x32xf32>
    %c0_22 = arith.constant 0 : index
    %c1_23 = arith.constant 1 : index
    %c0_24 = arith.constant 0 : index
    %61 = vector.load %arg4[%c0_22, %c1_23, %c0_24] : memref<2x8x32xf32, #tpu.memory_space<vmem>>, vector<2x1x32xf32>
    %62 = vector.shape_cast %61 : vector<2x1x32xf32> to vector<2x32xf32>
    %63 = vector.shape_cast %60 : vector<2x32xf32> to vector<2x1x32xf32>
    tpu.vector_store %arg4[%c0_22, %c1_23, %c0_24], %63 {strides = array<i32>} : memref<2x8x32xf32, #tpu.memory_space<vmem>>, vector<2x1x32xf32>,
    %cst_25 = arith.constant dense<0.000000e+00> : vector<2x32xf32>
    %64 = tpu.matmul %60, %1, %cst_25 {dimension_numbers = #tpu.dot_dimension_numbers<[1], [0], [0], [1], [0, 0, 1, 1], [], []>} : vector<2x32xf32>, vector<32x32xf32>, vector<2x32xf32> -> vector<2x32xf32>
    %65 = arith.addf %64, %4 : vector<2x32xf32>
    %c0_26 = arith.constant 0 : index
    %c1_27 = arith.constant 1 : index
    %c0_28 = arith.constant 0 : index
    %66 = vector.load %arg5[%c0_26, %c1_27, %c0_28] : memref<2x8x32xf32, #tpu.memory_space<vmem>>, vector<2x1x32xf32>
    %67 = vector.shape_cast %66 : vector<2x1x32xf32> to vector<2x32xf32>
    %68 = vector.shape_cast %65 : vector<2x32xf32> to vector<2x1x32xf32>
    tpu.vector_store %arg5[%c0_26, %c1_27, %c0_28], %68 {strides = array<i32>} : memref<2x8x32xf32, #tpu.memory_space<vmem>>, vector<2x1x32xf32>,
    %c2 = arith.constant 2 : index
    %c0_29 = arith.constant 0 : index
    %c0_30 = arith.constant 0 : index
    %69 = vector.load %arg0[%c2, %c0_29, %c0_30] : memref<8x2x128xf32, #tpu.memory_space<vmem>>, vector<1x2x128xf32>
    %70 = vector.shape_cast %69 : vector<1x2x128xf32> to vector<2x128xf32>
    %cst_31 = arith.constant dense<0.000000e+00> : vector<2x128xf32>
    %71 = tpu.matmul %60, %0, %cst_31 {dimension_numbers = #tpu.dot_dimension_numbers<[1], [0], [0], [1], [0, 0, 1, 1], [], []>} : vector<2x32xf32>, vector<32x128xf32>, vector<2x128xf32> -> vector<2x128xf32>
    %72 = arith.addf %70, %71 : vector<2x128xf32>
    %73 = math.tanh %72 : vector<2x128xf32>
    %74 = arith.negf %72 : vector<2x128xf32>
    %75 = math.exp %74 : vector<2x128xf32>
    %cst_32 = arith.constant 1.000000e+00 : f32
    %76 = vector.broadcast %cst_32 : f32 to vector<2x128xf32>
    %77 = arith.addf %76, %75 : vector<2x128xf32>
    %78 = arith.divf %76, %77 : vector<2x128xf32>
    %79 = arith.select %10, %73, %78 : vector<2x128xi1>, vector<2x128xf32>
    %80 = vector.extract_strided_slice %79 {offsets = [0, 0], sizes = [2, 32], strides = [1, 1]} : vector<2x128xf32> to vector<2x32xf32>
    %81 = vector.extract_strided_slice %79 {offsets = [0, 32], sizes = [2, 32], strides = [1, 1]} : vector<2x128xf32> to vector<2x32xf32>
    %82 = vector.extract_strided_slice %79 {offsets = [0, 64], sizes = [2, 32], strides = [1, 1]} : vector<2x128xf32> to vector<2x32xf32>
    %83 = vector.extract_strided_slice %79 {offsets = [0, 96], sizes = [2, 32], strides = [1, 1]} : vector<2x128xf32> to vector<2x32xf32>
    %84 = arith.mulf %81, %58 : vector<2x32xf32>
    %85 = arith.mulf %80, %82 : vector<2x32xf32>
    %86 = arith.addf %84, %85 : vector<2x32xf32>
    %87 = math.tanh %86 : vector<2x32xf32>
    %88 = arith.mulf %83, %87 : vector<2x32xf32>
    %c0_33 = arith.constant 0 : index
    %c2_34 = arith.constant 2 : index
    %c0_35 = arith.constant 0 : index
    %89 = vector.load %arg4[%c0_33, %c2_34, %c0_35] : memref<2x8x32xf32, #tpu.memory_space<vmem>>, vector<2x1x32xf32>
    %90 = vector.shape_cast %89 : vector<2x1x32xf32> to vector<2x32xf32>
    %91 = vector.shape_cast %88 : vector<2x32xf32> to vector<2x1x32xf32>
    tpu.vector_store %arg4[%c0_33, %c2_34, %c0_35], %91 {strides = array<i32>} : memref<2x8x32xf32, #tpu.memory_space<vmem>>, vector<2x1x32xf32>,
    %cst_36 = arith.constant dense<0.000000e+00> : vector<2x32xf32>
    %92 = tpu.matmul %88, %1, %cst_36 {dimension_numbers = #tpu.dot_dimension_numbers<[1], [0], [0], [1], [0, 0, 1, 1], [], []>} : vector<2x32xf32>, vector<32x32xf32>, vector<2x32xf32> -> vector<2x32xf32>
    %93 = arith.addf %92, %4 : vector<2x32xf32>
    %c0_37 = arith.constant 0 : index
    %c2_38 = arith.constant 2 : index
    %c0_39 = arith.constant 0 : index
    %94 = vector.load %arg5[%c0_37, %c2_38, %c0_39] : memref<2x8x32xf32, #tpu.memory_space<vmem>>, vector<2x1x32xf32>
    %95 = vector.shape_cast %94 : vector<2x1x32xf32> to vector<2x32xf32>
    %96 = vector.shape_cast %93 : vector<2x32xf32> to vector<2x1x32xf32>
    tpu.vector_store %arg5[%c0_37, %c2_38, %c0_39], %96 {strides = array<i32>} : memref<2x8x32xf32, #tpu.memory_space<vmem>>, vector<2x1x32xf32>,
    %c3 = arith.constant 3 : index
    %c0_40 = arith.constant 0 : index
    %c0_41 = arith.constant 0 : index
    %97 = vector.load %arg0[%c3, %c0_40, %c0_41] : memref<8x2x128xf32, #tpu.memory_space<vmem>>, vector<1x2x128xf32>
    %98 = vector.shape_cast %97 : vector<1x2x128xf32> to vector<2x128xf32>
    %cst_42 = arith.constant dense<0.000000e+00> : vector<2x128xf32>
    %99 = tpu.matmul %88, %0, %cst_42 {dimension_numbers = #tpu.dot_dimension_numbers<[1], [0], [0], [1], [0, 0, 1, 1], [], []>} : vector<2x32xf32>, vector<32x128xf32>, vector<2x128xf32> -> vector<2x128xf32>
    %100 = arith.addf %98, %99 : vector<2x128xf32>
    %101 = math.tanh %100 : vector<2x128xf32>
    %102 = arith.negf %100 : vector<2x128xf32>
    %103 = math.exp %102 : vector<2x128xf32>
    %cst_43 = arith.constant 1.000000e+00 : f32
    %104 = vector.broadcast %cst_43 : f32 to vector<2x128xf32>
    %105 = arith.addf %104, %103 : vector<2x128xf32>
    %106 = arith.divf %104, %105 : vector<2x128xf32>
    %107 = arith.select %10, %101, %106 : vector<2x128xi1>, vector<2x128xf32>
    %108 = vector.extract_strided_slice %107 {offsets = [0, 0], sizes = [2, 32], strides = [1, 1]} : vector<2x128xf32> to vector<2x32xf32>
    %109 = vector.extract_strided_slice %107 {offsets = [0, 32], sizes = [2, 32], strides = [1, 1]} : vector<2x128xf32> to vector<2x32xf32>
    %110 = vector.extract_strided_slice %107 {offsets = [0, 64], sizes = [2, 32], strides = [1, 1]} : vector<2x128xf32> to vector<2x32xf32>
    %111 = vector.extract_strided_slice %107 {offsets = [0, 96], sizes = [2, 32], strides = [1, 1]} : vector<2x128xf32> to vector<2x32xf32>
    %112 = arith.mulf %109, %86 : vector<2x32xf32>
    %113 = arith.mulf %108, %110 : vector<2x32xf32>
    %114 = arith.addf %112, %113 : vector<2x32xf32>
    %115 = math.tanh %114 : vector<2x32xf32>
    %116 = arith.mulf %111, %115 : vector<2x32xf32>
    %c0_44 = arith.constant 0 : index
    %c3_45 = arith.constant 3 : index
    %c0_46 = arith.constant 0 : index
    %117 = vector.load %arg4[%c0_44, %c3_45, %c0_46] : memref<2x8x32xf32, #tpu.memory_space<vmem>>, vector<2x1x32xf32>
    %118 = vector.shape_cast %117 : vector<2x1x32xf32> to vector<2x32xf32>
    %119 = vector.shape_cast %116 : vector<2x32xf32> to vector<2x1x32xf32>
    tpu.vector_store %arg4[%c0_44, %c3_45, %c0_46], %119 {strides = array<i32>} : memref<2x8x32xf32, #tpu.memory_space<vmem>>, vector<2x1x32xf32>,
    %cst_47 = arith.constant dense<0.000000e+00> : vector<2x32xf32>
    %120 = tpu.matmul %116, %1, %cst_47 {dimension_numbers = #tpu.dot_dimension_numbers<[1], [0], [0], [1], [0, 0, 1, 1], [], []>} : vector<2x32xf32>, vector<32x32xf32>, vector<2x32xf32> -> vector<2x32xf32>
    %121 = arith.addf %120, %4 : vector<2x32xf32>
    %c0_48 = arith.constant 0 : index
    %c3_49 = arith.constant 3 : index
    %c0_50 = arith.constant 0 : index
    %122 = vector.load %arg5[%c0_48, %c3_49, %c0_50] : memref<2x8x32xf32, #tpu.memory_space<vmem>>, vector<2x1x32xf32>
    %123 = vector.shape_cast %122 : vector<2x1x32xf32> to vector<2x32xf32>
    %124 = vector.shape_cast %121 : vector<2x32xf32> to vector<2x1x32xf32>
    tpu.vector_store %arg5[%c0_48, %c3_49, %c0_50], %124 {strides = array<i32>} : memref<2x8x32xf32, #tpu.memory_space<vmem>>, vector<2x1x32xf32>,
    %c4 = arith.constant 4 : index
    %c0_51 = arith.constant 0 : index
    %c0_52 = arith.constant 0 : index
    %125 = vector.load %arg0[%c4, %c0_51, %c0_52] : memref<8x2x128xf32, #tpu.memory_space<vmem>>, vector<1x2x128xf32>
    %126 = vector.shape_cast %125 : vector<1x2x128xf32> to vector<2x128xf32>
    %cst_53 = arith.constant dense<0.000000e+00> : vector<2x128xf32>
    %127 = tpu.matmul %116, %0, %cst_53 {dimension_numbers = #tpu.dot_dimension_numbers<[1], [0], [0], [1], [0, 0, 1, 1], [], []>} : vector<2x32xf32>, vector<32x128xf32>, vector<2x128xf32> -> vector<2x128xf32>
    %128 = arith.addf %126, %127 : vector<2x128xf32>
    %129 = math.tanh %128 : vector<2x128xf32>
    %130 = arith.negf %128 : vector<2x128xf32>
    %131 = math.exp %130 : vector<2x128xf32>
    %cst_54 = arith.constant 1.000000e+00 : f32
    %132 = vector.broadcast %cst_54 : f32 to vector<2x128xf32>
    %133 = arith.addf %132, %131 : vector<2x128xf32>
    %134 = arith.divf %132, %133 : vector<2x128xf32>
    %135 = arith.select %10, %129, %134 : vector<2x128xi1>, vector<2x128xf32>
    %136 = vector.extract_strided_slice %135 {offsets = [0, 0], sizes = [2, 32], strides = [1, 1]} : vector<2x128xf32> to vector<2x32xf32>
    %137 = vector.extract_strided_slice %135 {offsets = [0, 32], sizes = [2, 32], strides = [1, 1]} : vector<2x128xf32> to vector<2x32xf32>
    %138 = vector.extract_strided_slice %135 {offsets = [0, 64], sizes = [2, 32], strides = [1, 1]} : vector<2x128xf32> to vector<2x32xf32>
    %139 = vector.extract_strided_slice %135 {offsets = [0, 96], sizes = [2, 32], strides = [1, 1]} : vector<2x128xf32> to vector<2x32xf32>
    %140 = arith.mulf %137, %114 : vector<2x32xf32>
    %141 = arith.mulf %136, %138 : vector<2x32xf32>
    %142 = arith.addf %140, %141 : vector<2x32xf32>
    %143 = math.tanh %142 : vector<2x32xf32>
    %144 = arith.mulf %139, %143 : vector<2x32xf32>
    %c0_55 = arith.constant 0 : index
    %c4_56 = arith.constant 4 : index
    %c0_57 = arith.constant 0 : index
    %145 = vector.load %arg4[%c0_55, %c4_56, %c0_57] : memref<2x8x32xf32, #tpu.memory_space<vmem>>, vector<2x1x32xf32>
    %146 = vector.shape_cast %145 : vector<2x1x32xf32> to vector<2x32xf32>
    %147 = vector.shape_cast %144 : vector<2x32xf32> to vector<2x1x32xf32>
    tpu.vector_store %arg4[%c0_55, %c4_56, %c0_57], %147 {strides = array<i32>} : memref<2x8x32xf32, #tpu.memory_space<vmem>>, vector<2x1x32xf32>,
    %cst_58 = arith.constant dense<0.000000e+00> : vector<2x32xf32>
    %148 = tpu.matmul %144, %1, %cst_58 {dimension_numbers = #tpu.dot_dimension_numbers<[1], [0], [0], [1], [0, 0, 1, 1], [], []>} : vector<2x32xf32>, vector<32x32xf32>, vector<2x32xf32> -> vector<2x32xf32>
    %149 = arith.addf %148, %4 : vector<2x32xf32>
    %c0_59 = arith.constant 0 : index
    %c4_60 = arith.constant 4 : index
    %c0_61 = arith.constant 0 : index
    %150 = vector.load %arg5[%c0_59, %c4_60, %c0_61] : memref<2x8x32xf32, #tpu.memory_space<vmem>>, vector<2x1x32xf32>
    %151 = vector.shape_cast %150 : vector<2x1x32xf32> to vector<2x32xf32>
    %152 = vector.shape_cast %149 : vector<2x32xf32> to vector<2x1x32xf32>
    tpu.vector_store %arg5[%c0_59, %c4_60, %c0_61], %152 {strides = array<i32>} : memref<2x8x32xf32, #tpu.memory_space<vmem>>, vector<2x1x32xf32>,
    %c5 = arith.constant 5 : index
    %c0_62 = arith.constant 0 : index
    %c0_63 = arith.constant 0 : index
    %153 = vector.load %arg0[%c5, %c0_62, %c0_63] : memref<8x2x128xf32, #tpu.memory_space<vmem>>, vector<1x2x128xf32>
    %154 = vector.shape_cast %153 : vector<1x2x128xf32> to vector<2x128xf32>
    %cst_64 = arith.constant dense<0.000000e+00> : vector<2x128xf32>
    %155 = tpu.matmul %144, %0, %cst_64 {dimension_numbers = #tpu.dot_dimension_numbers<[1], [0], [0], [1], [0, 0, 1, 1], [], []>} : vector<2x32xf32>, vector<32x128xf32>, vector<2x128xf32> -> vector<2x128xf32>
    %156 = arith.addf %154, %155 : vector<2x128xf32>
    %157 = math.tanh %156 : vector<2x128xf32>
    %158 = arith.negf %156 : vector<2x128xf32>
    %159 = math.exp %158 : vector<2x128xf32>
    %cst_65 = arith.constant 1.000000e+00 : f32
    %160 = vector.broadcast %cst_65 : f32 to vector<2x128xf32>
    %161 = arith.addf %160, %159 : vector<2x128xf32>
    %162 = arith.divf %160, %161 : vector<2x128xf32>
    %163 = arith.select %10, %157, %162 : vector<2x128xi1>, vector<2x128xf32>
    %164 = vector.extract_strided_slice %163 {offsets = [0, 0], sizes = [2, 32], strides = [1, 1]} : vector<2x128xf32> to vector<2x32xf32>
    %165 = vector.extract_strided_slice %163 {offsets = [0, 32], sizes = [2, 32], strides = [1, 1]} : vector<2x128xf32> to vector<2x32xf32>
    %166 = vector.extract_strided_slice %163 {offsets = [0, 64], sizes = [2, 32], strides = [1, 1]} : vector<2x128xf32> to vector<2x32xf32>
    %167 = vector.extract_strided_slice %163 {offsets = [0, 96], sizes = [2, 32], strides = [1, 1]} : vector<2x128xf32> to vector<2x32xf32>
    %168 = arith.mulf %165, %142 : vector<2x32xf32>
    %169 = arith.mulf %164, %166 : vector<2x32xf32>
    %170 = arith.addf %168, %169 : vector<2x32xf32>
    %171 = math.tanh %170 : vector<2x32xf32>
    %172 = arith.mulf %167, %171 : vector<2x32xf32>
    %c0_66 = arith.constant 0 : index
    %c5_67 = arith.constant 5 : index
    %c0_68 = arith.constant 0 : index
    %173 = vector.load %arg4[%c0_66, %c5_67, %c0_68] : memref<2x8x32xf32, #tpu.memory_space<vmem>>, vector<2x1x32xf32>
    %174 = vector.shape_cast %173 : vector<2x1x32xf32> to vector<2x32xf32>
    %175 = vector.shape_cast %172 : vector<2x32xf32> to vector<2x1x32xf32>
    tpu.vector_store %arg4[%c0_66, %c5_67, %c0_68], %175 {strides = array<i32>} : memref<2x8x32xf32, #tpu.memory_space<vmem>>, vector<2x1x32xf32>,
    %cst_69 = arith.constant dense<0.000000e+00> : vector<2x32xf32>
    %176 = tpu.matmul %172, %1, %cst_69 {dimension_numbers = #tpu.dot_dimension_numbers<[1], [0], [0], [1], [0, 0, 1, 1], [], []>} : vector<2x32xf32>, vector<32x32xf32>, vector<2x32xf32> -> vector<2x32xf32>
    %177 = arith.addf %176, %4 : vector<2x32xf32>
    %c0_70 = arith.constant 0 : index
    %c5_71 = arith.constant 5 : index
    %c0_72 = arith.constant 0 : index
    %178 = vector.load %arg5[%c0_70, %c5_71, %c0_72] : memref<2x8x32xf32, #tpu.memory_space<vmem>>, vector<2x1x32xf32>
    %179 = vector.shape_cast %178 : vector<2x1x32xf32> to vector<2x32xf32>
    %180 = vector.shape_cast %177 : vector<2x32xf32> to vector<2x1x32xf32>
    tpu.vector_store %arg5[%c0_70, %c5_71, %c0_72], %180 {strides = array<i32>} : memref<2x8x32xf32, #tpu.memory_space<vmem>>, vector<2x1x32xf32>,
    %c6 = arith.constant 6 : index
    %c0_73 = arith.constant 0 : index
    %c0_74 = arith.constant 0 : index
    %181 = vector.load %arg0[%c6, %c0_73, %c0_74] : memref<8x2x128xf32, #tpu.memory_space<vmem>>, vector<1x2x128xf32>
    %182 = vector.shape_cast %181 : vector<1x2x128xf32> to vector<2x128xf32>
    %cst_75 = arith.constant dense<0.000000e+00> : vector<2x128xf32>
    %183 = tpu.matmul %172, %0, %cst_75 {dimension_numbers = #tpu.dot_dimension_numbers<[1], [0], [0], [1], [0, 0, 1, 1], [], []>} : vector<2x32xf32>, vector<32x128xf32>, vector<2x128xf32> -> vector<2x128xf32>
    %184 = arith.addf %182, %183 : vector<2x128xf32>
    %185 = math.tanh %184 : vector<2x128xf32>
    %186 = arith.negf %184 : vector<2x128xf32>
    %187 = math.exp %186 : vector<2x128xf32>
    %cst_76 = arith.constant 1.000000e+00 : f32
    %188 = vector.broadcast %cst_76 : f32 to vector<2x128xf32>
    %189 = arith.addf %188, %187 : vector<2x128xf32>
    %190 = arith.divf %188, %189 : vector<2x128xf32>
    %191 = arith.select %10, %185, %190 : vector<2x128xi1>, vector<2x128xf32>
    %192 = vector.extract_strided_slice %191 {offsets = [0, 0], sizes = [2, 32], strides = [1, 1]} : vector<2x128xf32> to vector<2x32xf32>
    %193 = vector.extract_strided_slice %191 {offsets = [0, 32], sizes = [2, 32], strides = [1, 1]} : vector<2x128xf32> to vector<2x32xf32>
    %194 = vector.extract_strided_slice %191 {offsets = [0, 64], sizes = [2, 32], strides = [1, 1]} : vector<2x128xf32> to vector<2x32xf32>
    %195 = vector.extract_strided_slice %191 {offsets = [0, 96], sizes = [2, 32], strides = [1, 1]} : vector<2x128xf32> to vector<2x32xf32>
    %196 = arith.mulf %193, %170 : vector<2x32xf32>
    %197 = arith.mulf %192, %194 : vector<2x32xf32>
    %198 = arith.addf %196, %197 : vector<2x32xf32>
    %199 = math.tanh %198 : vector<2x32xf32>
    %200 = arith.mulf %195, %199 : vector<2x32xf32>
    %c0_77 = arith.constant 0 : index
    %c6_78 = arith.constant 6 : index
    %c0_79 = arith.constant 0 : index
    %201 = vector.load %arg4[%c0_77, %c6_78, %c0_79] : memref<2x8x32xf32, #tpu.memory_space<vmem>>, vector<2x1x32xf32>
    %202 = vector.shape_cast %201 : vector<2x1x32xf32> to vector<2x32xf32>
    %203 = vector.shape_cast %200 : vector<2x32xf32> to vector<2x1x32xf32>
    tpu.vector_store %arg4[%c0_77, %c6_78, %c0_79], %203 {strides = array<i32>} : memref<2x8x32xf32, #tpu.memory_space<vmem>>, vector<2x1x32xf32>,
    %cst_80 = arith.constant dense<0.000000e+00> : vector<2x32xf32>
    %204 = tpu.matmul %200, %1, %cst_80 {dimension_numbers = #tpu.dot_dimension_numbers<[1], [0], [0], [1], [0, 0, 1, 1], [], []>} : vector<2x32xf32>, vector<32x32xf32>, vector<2x32xf32> -> vector<2x32xf32>
    %205 = arith.addf %204, %4 : vector<2x32xf32>
    %c0_81 = arith.constant 0 : index
    %c6_82 = arith.constant 6 : index
    %c0_83 = arith.constant 0 : index
    %206 = vector.load %arg5[%c0_81, %c6_82, %c0_83] : memref<2x8x32xf32, #tpu.memory_space<vmem>>, vector<2x1x32xf32>
    %207 = vector.shape_cast %206 : vector<2x1x32xf32> to vector<2x32xf32>
    %208 = vector.shape_cast %205 : vector<2x32xf32> to vector<2x1x32xf32>
    tpu.vector_store %arg5[%c0_81, %c6_82, %c0_83], %208 {strides = array<i32>} : memref<2x8x32xf32, #tpu.memory_space<vmem>>, vector<2x1x32xf32>,
    %c7 = arith.constant 7 : index
    %c0_84 = arith.constant 0 : index
    %c0_85 = arith.constant 0 : index
    %209 = vector.load %arg0[%c7, %c0_84, %c0_85] : memref<8x2x128xf32, #tpu.memory_space<vmem>>, vector<1x2x128xf32>
    %210 = vector.shape_cast %209 : vector<1x2x128xf32> to vector<2x128xf32>
    %cst_86 = arith.constant dense<0.000000e+00> : vector<2x128xf32>
    %211 = tpu.matmul %200, %0, %cst_86 {dimension_numbers = #tpu.dot_dimension_numbers<[1], [0], [0], [1], [0, 0, 1, 1], [], []>} : vector<2x32xf32>, vector<32x128xf32>, vector<2x128xf32> -> vector<2x128xf32>
    %212 = arith.addf %210, %211 : vector<2x128xf32>
    %213 = math.tanh %212 : vector<2x128xf32>
    %214 = arith.negf %212 : vector<2x128xf32>
    %215 = math.exp %214 : vector<2x128xf32>
    %cst_87 = arith.constant 1.000000e+00 : f32
    %216 = vector.broadcast %cst_87 : f32 to vector<2x128xf32>
    %217 = arith.addf %216, %215 : vector<2x128xf32>
    %218 = arith.divf %216, %217 : vector<2x128xf32>
    %219 = arith.select %10, %213, %218 : vector<2x128xi1>, vector<2x128xf32>
    %220 = vector.extract_strided_slice %219 {offsets = [0, 0], sizes = [2, 32], strides = [1, 1]} : vector<2x128xf32> to vector<2x32xf32>
    %221 = vector.extract_strided_slice %219 {offsets = [0, 32], sizes = [2, 32], strides = [1, 1]} : vector<2x128xf32> to vector<2x32xf32>
    %222 = vector.extract_strided_slice %219 {offsets = [0, 64], sizes = [2, 32], strides = [1, 1]} : vector<2x128xf32> to vector<2x32xf32>
    %223 = vector.extract_strided_slice %219 {offsets = [0, 96], sizes = [2, 32], strides = [1, 1]} : vector<2x128xf32> to vector<2x32xf32>
    %224 = arith.mulf %221, %198 : vector<2x32xf32>
    %225 = arith.mulf %220, %222 : vector<2x32xf32>
    %226 = arith.addf %224, %225 : vector<2x32xf32>
    %227 = math.tanh %226 : vector<2x32xf32>
    %228 = arith.mulf %223, %227 : vector<2x32xf32>
    %c0_88 = arith.constant 0 : index
    %c7_89 = arith.constant 7 : index
    %c0_90 = arith.constant 0 : index
    %229 = vector.load %arg4[%c0_88, %c7_89, %c0_90] : memref<2x8x32xf32, #tpu.memory_space<vmem>>, vector<2x1x32xf32>
    %230 = vector.shape_cast %229 : vector<2x1x32xf32> to vector<2x32xf32>
    %231 = vector.shape_cast %228 : vector<2x32xf32> to vector<2x1x32xf32>
    tpu.vector_store %arg4[%c0_88, %c7_89, %c0_90], %231 {strides = array<i32>} : memref<2x8x32xf32, #tpu.memory_space<vmem>>, vector<2x1x32xf32>,
    %cst_91 = arith.constant dense<0.000000e+00> : vector<2x32xf32>
    %232 = tpu.matmul %228, %1, %cst_91 {dimension_numbers = #tpu.dot_dimension_numbers<[1], [0], [0], [1], [0, 0, 1, 1], [], []>} : vector<2x32xf32>, vector<32x32xf32>, vector<2x32xf32> -> vector<2x32xf32>
    %233 = arith.addf %232, %4 : vector<2x32xf32>
    %c0_92 = arith.constant 0 : index
    %c7_93 = arith.constant 7 : index
    %c0_94 = arith.constant 0 : index
    %234 = vector.load %arg5[%c0_92, %c7_93, %c0_94] : memref<2x8x32xf32, #tpu.memory_space<vmem>>, vector<2x1x32xf32>
    %235 = vector.shape_cast %234 : vector<2x1x32xf32> to vector<2x32xf32>
    %236 = vector.shape_cast %233 : vector<2x32xf32> to vector<2x1x32xf32>
    tpu.vector_store %arg5[%c0_92, %c7_93, %c0_94], %236 {strides = array<i32>} : memref<2x8x32xf32, #tpu.memory_space<vmem>>, vector<2x1x32xf32>,
    %c0_95 = arith.constant 0 : index
    %c0_96 = arith.constant 0 : index
    %237 = vector.load %arg6[%c0_95, %c0_96] : memref<2x32xf32, #tpu.memory_space<vmem>>, vector<2x32xf32>
    tpu.vector_store %arg6[%c0_95, %c0_96], %228 {strides = array<i32>} : memref<2x32xf32, #tpu.memory_space<vmem>>, vector<2x32xf32>,
    %c0_97 = arith.constant 0 : index
    %c0_98 = arith.constant 0 : index
    %238 = vector.load %arg7[%c0_97, %c0_98] : memref<2x32xf32, #tpu.memory_space<vmem>>, vector<2x32xf32>
    tpu.vector_store %arg7[%c0_97, %c0_98], %226 {strides = array<i32>} : memref<2x32xf32, #tpu.memory_space<vmem>>, vector<2x32xf32>,
    return
  }
}

module attributes {stable_mosaic.version = 11 : i64} {
  func.func @_decoder_kernel(%arg0: memref<2x16xf32, #tpu.memory_space<vmem>>, %arg1: memref<2x32xf32, #tpu.memory_space<vmem>>, %arg2: memref<2x32xf32, #tpu.memory_space<vmem>>, %arg3: memref<2x8x32xf32, #tpu.memory_space<vmem>>, %arg4: memref<2x8x32xf32, #tpu.memory_space<vmem>>, %arg5: memref<2x8x1xf32, #tpu.memory_space<vmem>>, %arg6: memref<32x32xf32, #tpu.memory_space<vmem>>, %arg7: memref<1x32xf32, #tpu.memory_space<vmem>>, %arg8: memref<80x128xf32, #tpu.memory_space<vmem>>, %arg9: memref<1x128xf32, #tpu.memory_space<vmem>>, %arg10: memref<80x128xf32, #tpu.memory_space<vmem>>, %arg11: memref<1x128xf32, #tpu.memory_space<vmem>>, %arg12: memref<128x16xf32, #tpu.memory_space<vmem>>, %arg13: memref<5x2x128xf32, #tpu.memory_space<vmem>>, %arg14: memref<5x2x8x1xf32, #tpu.memory_space<vmem>>) attributes {dimension_semantics = [], scalar_prefetch = 0 : i64, scratch_operands = 0 : i64, tpu.core_type = #tpu.core_type<tc>} {
    %c0 = arith.constant 0 : index
    %c0_0 = arith.constant 0 : index
    %c0_1 = arith.constant 0 : index
    %0 = vector.load %arg3[%c0, %c0_0, %c0_1] : memref<2x8x32xf32, #tpu.memory_space<vmem>>, vector<2x8x32xf32>
    %c0_2 = arith.constant 0 : index
    %c0_3 = arith.constant 0 : index
    %c0_4 = arith.constant 0 : index
    %1 = vector.load %arg4[%c0_2, %c0_3, %c0_4] : memref<2x8x32xf32, #tpu.memory_space<vmem>>, vector<2x8x32xf32>
    %c0_5 = arith.constant 0 : index
    %c0_6 = arith.constant 0 : index
    %c0_7 = arith.constant 0 : index
    %2 = vector.load %arg5[%c0_5, %c0_6, %c0_7] : memref<2x8x1xf32, #tpu.memory_space<vmem>>, vector<2x8x1xf32>
    %cst = arith.constant 0.000000e+00 : f32
    %3 = vector.broadcast %cst : f32 to vector<2x8x1xf32>
    %4 = arith.cmpf ogt, %2, %3 : vector<2x8x1xf32>
    %c0_8 = arith.constant 0 : index
    %c0_9 = arith.constant 0 : index
    %5 = vector.load %arg6[%c0_8, %c0_9] : memref<32x32xf32, #tpu.memory_space<vmem>>, vector<32x32xf32>
    %c0_10 = arith.constant 0 : index
    %c0_11 = arith.constant 0 : index
    %6 = vector.load %arg7[%c0_10, %c0_11] : memref<1x32xf32, #tpu.memory_space<vmem>>, vector<1x32xf32>
    %7 = vector.shape_cast %6 : vector<1x32xf32> to vector<1x1x32xf32>
    %8 = vector.broadcast %7 : vector<1x1x32xf32> to vector<2x8x32xf32>
    %c0_12 = arith.constant 0 : index
    %c0_13 = arith.constant 0 : index
    %9 = vector.load %arg9[%c0_12, %c0_13] : memref<1x128xf32, #tpu.memory_space<vmem>>, vector<1x128xf32>
    %10 = vector.shape_cast %9 : vector<1x128xf32> to vector<1x128xf32>
    %11 = vector.broadcast %10 : vector<1x128xf32> to vector<2x128xf32>
    %c0_14 = arith.constant 0 : index
    %c0_15 = arith.constant 0 : index
    %12 = vector.load %arg11[%c0_14, %c0_15] : memref<1x128xf32, #tpu.memory_space<vmem>>, vector<1x128xf32>
    %13 = vector.shape_cast %12 : vector<1x128xf32> to vector<1x128xf32>
    %14 = vector.broadcast %13 : vector<1x128xf32> to vector<2x128xf32>
    %c0_16 = arith.constant 0 : index
    %c0_17 = arith.constant 0 : index
    %15 = vector.load %arg2[%c0_16, %c0_17] : memref<2x32xf32, #tpu.memory_space<vmem>>, vector<2x32xf32>
    %16 = tpu.iota {dimensions = array<i32: 1>} : vector<2x128xi32>
    %c64_i32 = arith.constant 64 : i32
    %17 = vector.broadcast %c64_i32 : i32 to vector<2x128xi32>
    %18 = arith.cmpi sge, %16, %17 : vector<2x128xi32>
    %c96_i32 = arith.constant 96 : i32
    %19 = vector.broadcast %c96_i32 : i32 to vector<2x128xi32>
    %20 = arith.cmpi slt, %16, %19 : vector<2x128xi32>
    %21 = arith.andi %18, %20 : vector<2x128xi1>
    %22 = tpu.iota {dimensions = array<i32: 1>} : vector<2x128xi32>
    %23 = arith.sitofp %22 : vector<2x128xi32> to vector<2x128xf32>
    %c0_18 = arith.constant 0 : index
    %c0_19 = arith.constant 0 : index
    %24 = vector.load %arg1[%c0_18, %c0_19] : memref<2x32xf32, #tpu.memory_space<vmem>>, vector<2x32xf32>
    %c0_20 = arith.constant 0 : index
    %c0_21 = arith.constant 0 : index
    %25 = vector.load %arg0[%c0_20, %c0_21] : memref<2x16xf32, #tpu.memory_space<vmem>>, vector<2x16xf32>
    %c0_i32 = arith.constant 0 : i32
    %cst_22 = arith.constant dense<0.000000e+00> : vector<2x32xf32>
    %26 = tpu.matmul %24, %5, %cst_22 {dimension_numbers = #tpu.dot_dimension_numbers<[1], [0], [0], [1], [0, 0, 1, 1], [], []>} : vector<2x32xf32>, vector<32x32xf32>, vector<2x32xf32> -> vector<2x32xf32>
    %27 = vector.shape_cast %26 : vector<2x32xf32> to vector<2x1x32xf32>
    %28 = vector.broadcast %27 : vector<2x1x32xf32> to vector<2x8x32xf32>
    %29 = arith.addf %28, %1 : vector<2x8x32xf32>
    %30 = math.tanh %29 : vector<2x8x32xf32>
    %31 = arith.mulf %8, %30 : vector<2x8x32xf32>
    %cst_23 = arith.constant dense<0.000000e+00> : vector<2x8xf32>
    %32 = vector.multi_reduction <add>, %31, %cst_23 [2] : vector<2x8x32xf32> to vector<2x8xf32>
    %33 = vector.shape_cast %32 : vector<2x8xf32> to vector<2x8x1xf32>
    %cst_24 = arith.constant -1.000000e+10 : f32
    %34 = vector.broadcast %cst_24 : f32 to vector<2x8x1xf32>
    %35 = arith.select %4, %33, %34 : vector<2x8x1xi1>, vector<2x8x1xf32>
    %cst_25 = arith.constant dense<0xFF800000> : vector<2x1xf32>
    %36 = vector.multi_reduction <maximumf>, %35, %cst_25 [1] : vector<2x8x1xf32> to vector<2x1xf32>
    %37 = vector.shape_cast %36 : vector<2x1xf32> to vector<2x1x1xf32>
    %38 = vector.broadcast %37 : vector<2x1x1xf32> to vector<2x8x1xf32>
    %39 = arith.subf %35, %38 : vector<2x8x1xf32>
    %40 = math.exp %39 : vector<2x8x1xf32>
    %cst_26 = arith.constant dense<0.000000e+00> : vector<2x1xf32>
    %41 = vector.multi_reduction <add>, %40, %cst_26 [1] : vector<2x8x1xf32> to vector<2x1xf32>
    %42 = vector.shape_cast %41 : vector<2x1xf32> to vector<2x1x1xf32>
    %43 = vector.broadcast %42 : vector<2x1x1xf32> to vector<2x8x1xf32>
    %44 = arith.divf %40, %43 : vector<2x8x1xf32>
    %45 = vector.broadcast %44 : vector<2x8x1xf32> to vector<2x8x32xf32>
    %46 = arith.mulf %45, %0 : vector<2x8x32xf32>
    %cst_27 = arith.constant dense<0.000000e+00> : vector<2x32xf32>
    %47 = vector.multi_reduction <add>, %46, %cst_27 [1] : vector<2x8x32xf32> to vector<2x32xf32>
    %48 = tpu.concatenate %25, %47, %24 in 1 : vector<2x16xf32>, vector<2x32xf32>, vector<2x32xf32> -> vector<2x80xf32>
    %c0_28 = arith.constant 0 : index
    %c0_29 = arith.constant 0 : index
    %49 = vector.load %arg8[%c0_28, %c0_29] : memref<80x128xf32, #tpu.memory_space<vmem>>, vector<80x128xf32>
    %cst_30 = arith.constant dense<0.000000e+00> : vector<2x128xf32>
    %50 = tpu.matmul %48, %49, %cst_30 {dimension_numbers = #tpu.dot_dimension_numbers<[1], [0], [0], [1], [0, 0, 1, 1], [], []>} : vector<2x80xf32>, vector<80x128xf32>, vector<2x128xf32> -> vector<2x128xf32>
    %51 = arith.addf %50, %11 : vector<2x128xf32>
    %52 = math.tanh %51 : vector<2x128xf32>
    %53 = arith.negf %51 : vector<2x128xf32>
    %54 = math.exp %53 : vector<2x128xf32>
    %cst_31 = arith.constant 1.000000e+00 : f32
    %55 = vector.broadcast %cst_31 : f32 to vector<2x128xf32>
    %56 = arith.addf %55, %54 : vector<2x128xf32>
    %57 = arith.divf %55, %56 : vector<2x128xf32>
    %58 = arith.select %21, %52, %57 : vector<2x128xi1>, vector<2x128xf32>
    %59 = vector.extract_strided_slice %58 {offsets = [0, 0], sizes = [2, 32], strides = [1, 1]} : vector<2x128xf32> to vector<2x32xf32>
    %60 = vector.extract_strided_slice %58 {offsets = [0, 32], sizes = [2, 32], strides = [1, 1]} : vector<2x128xf32> to vector<2x32xf32>
    %61 = vector.extract_strided_slice %58 {offsets = [0, 64], sizes = [2, 32], strides = [1, 1]} : vector<2x128xf32> to vector<2x32xf32>
    %62 = vector.extract_strided_slice %58 {offsets = [0, 96], sizes = [2, 32], strides = [1, 1]} : vector<2x128xf32> to vector<2x32xf32>
    %63 = arith.mulf %60, %15 : vector<2x32xf32>
    %64 = arith.mulf %59, %61 : vector<2x32xf32>
    %65 = arith.addf %63, %64 : vector<2x32xf32>
    %66 = math.tanh %65 : vector<2x32xf32>
    %67 = arith.mulf %62, %66 : vector<2x32xf32>
    %68 = tpu.concatenate %67, %47, %25 in 1 : vector<2x32xf32>, vector<2x32xf32>, vector<2x16xf32> -> vector<2x80xf32>
    %c0_32 = arith.constant 0 : index
    %c0_33 = arith.constant 0 : index
    %69 = vector.load %arg10[%c0_32, %c0_33] : memref<80x128xf32, #tpu.memory_space<vmem>>, vector<80x128xf32>
    %cst_34 = arith.constant dense<0.000000e+00> : vector<2x128xf32>
    %70 = tpu.matmul %68, %69, %cst_34 {dimension_numbers = #tpu.dot_dimension_numbers<[1], [0], [0], [1], [0, 0, 1, 1], [], []>} : vector<2x80xf32>, vector<80x128xf32>, vector<2x128xf32> -> vector<2x128xf32>
    %71 = arith.addf %70, %14 : vector<2x128xf32>
    %72 = arith.index_cast %c0_i32 : i32 to index
    %c0_35 = arith.constant 0 : index
    %c0_36 = arith.constant 0 : index
    %73 = vector.load %arg13[%72, %c0_35, %c0_36] : memref<5x2x128xf32, #tpu.memory_space<vmem>>, vector<1x2x128xf32>
    %74 = vector.shape_cast %73 : vector<1x2x128xf32> to vector<2x128xf32>
    %75 = vector.shape_cast %71 : vector<2x128xf32> to vector<1x2x128xf32>
    tpu.vector_store %arg13[%72, %c0_35, %c0_36], %75 {strides = array<i32>} : memref<5x2x128xf32, #tpu.memory_space<vmem>>, vector<1x2x128xf32>,
    %76 = arith.index_cast %c0_i32 : i32 to index
    %c0_37 = arith.constant 0 : index
    %c0_38 = arith.constant 0 : index
    %c0_39 = arith.constant 0 : index
    %77 = vector.load %arg14[%76, %c0_37, %c0_38, %c0_39] : memref<5x2x8x1xf32, #tpu.memory_space<vmem>>, vector<1x2x8x1xf32>
    %78 = vector.shape_cast %77 : vector<1x2x8x1xf32> to vector<2x8x1xf32>
    %79 = vector.shape_cast %44 : vector<2x8x1xf32> to vector<1x2x8x1xf32>
    tpu.vector_store %arg14[%76, %c0_37, %c0_38, %c0_39], %79 {strides = array<i32>} : memref<5x2x8x1xf32, #tpu.memory_space<vmem>>, vector<1x2x8x1xf32>,
    %cst_40 = arith.constant dense<0xFF800000> : vector<2xf32>
    %80 = vector.multi_reduction <maximumf>, %71, %cst_40 [1] : vector<2x128xf32> to vector<2xf32>
    %81 = vector.shape_cast %80 : vector<2xf32> to vector<2x1xf32>
    %82 = vector.broadcast %81 : vector<2x1xf32> to vector<2x128xf32>
    %83 = arith.cmpf oeq, %71, %82 : vector<2x128xf32>
    %cst_41 = arith.constant 1.280000e+02 : f32
    %84 = vector.broadcast %cst_41 : f32 to vector<2x128xf32>
    %85 = arith.select %83, %23, %84 : vector<2x128xi1>, vector<2x128xf32>
    %cst_42 = arith.constant dense<0x7F800000> : vector<2xf32>
    %86 = vector.multi_reduction <minimumf>, %85, %cst_42 [1] : vector<2x128xf32> to vector<2xf32>
    %87 = vector.shape_cast %86 : vector<2xf32> to vector<2x1xf32>
    %88 = vector.broadcast %87 : vector<2x1xf32> to vector<2x128xf32>
    %89 = arith.cmpf oeq, %23, %88 : vector<2x128xf32>
    %90 = arith.extui %89 : vector<2x128xi1> to vector<2x128xi32>
    %91 = arith.sitofp %90 : vector<2x128xi32> to vector<2x128xf32>
    %c0_43 = arith.constant 0 : index
    %c0_44 = arith.constant 0 : index
    %92 = vector.load %arg12[%c0_43, %c0_44] : memref<128x16xf32, #tpu.memory_space<vmem>>, vector<128x16xf32>
    %cst_45 = arith.constant dense<0.000000e+00> : vector<2x16xf32>
    %93 = tpu.matmul %91, %92, %cst_45 {dimension_numbers = #tpu.dot_dimension_numbers<[1], [0], [0], [1], [0, 0, 1, 1], [], []>} : vector<2x128xf32>, vector<128x16xf32>, vector<2x16xf32> -> vector<2x16xf32>
    %c1_i32 = arith.constant 1 : i32
    %cst_46 = arith.constant dense<0.000000e+00> : vector<2x32xf32>
    %94 = tpu.matmul %67, %5, %cst_46 {dimension_numbers = #tpu.dot_dimension_numbers<[1], [0], [0], [1], [0, 0, 1, 1], [], []>} : vector<2x32xf32>, vector<32x32xf32>, vector<2x32xf32> -> vector<2x32xf32>
    %95 = vector.shape_cast %94 : vector<2x32xf32> to vector<2x1x32xf32>
    %96 = vector.broadcast %95 : vector<2x1x32xf32> to vector<2x8x32xf32>
    %97 = arith.addf %96, %1 : vector<2x8x32xf32>
    %98 = math.tanh %97 : vector<2x8x32xf32>
    %99 = arith.mulf %8, %98 : vector<2x8x32xf32>
    %cst_47 = arith.constant dense<0.000000e+00> : vector<2x8xf32>
    %100 = vector.multi_reduction <add>, %99, %cst_47 [2] : vector<2x8x32xf32> to vector<2x8xf32>
    %101 = vector.shape_cast %100 : vector<2x8xf32> to vector<2x8x1xf32>
    %cst_48 = arith.constant -1.000000e+10 : f32
    %102 = vector.broadcast %cst_48 : f32 to vector<2x8x1xf32>
    %103 = arith.select %4, %101, %102 : vector<2x8x1xi1>, vector<2x8x1xf32>
    %cst_49 = arith.constant dense<0xFF800000> : vector<2x1xf32>
    %104 = vector.multi_reduction <maximumf>, %103, %cst_49 [1] : vector<2x8x1xf32> to vector<2x1xf32>
    %105 = vector.shape_cast %104 : vector<2x1xf32> to vector<2x1x1xf32>
    %106 = vector.broadcast %105 : vector<2x1x1xf32> to vector<2x8x1xf32>
    %107 = arith.subf %103, %106 : vector<2x8x1xf32>
    %108 = math.exp %107 : vector<2x8x1xf32>
    %cst_50 = arith.constant dense<0.000000e+00> : vector<2x1xf32>
    %109 = vector.multi_reduction <add>, %108, %cst_50 [1] : vector<2x8x1xf32> to vector<2x1xf32>
    %110 = vector.shape_cast %109 : vector<2x1xf32> to vector<2x1x1xf32>
    %111 = vector.broadcast %110 : vector<2x1x1xf32> to vector<2x8x1xf32>
    %112 = arith.divf %108, %111 : vector<2x8x1xf32>
    %113 = vector.broadcast %112 : vector<2x8x1xf32> to vector<2x8x32xf32>
    %114 = arith.mulf %113, %0 : vector<2x8x32xf32>
    %cst_51 = arith.constant dense<0.000000e+00> : vector<2x32xf32>
    %115 = vector.multi_reduction <add>, %114, %cst_51 [1] : vector<2x8x32xf32> to vector<2x32xf32>
    %116 = tpu.concatenate %93, %115, %67 in 1 : vector<2x16xf32>, vector<2x32xf32>, vector<2x32xf32> -> vector<2x80xf32>
    %c0_52 = arith.constant 0 : index
    %c0_53 = arith.constant 0 : index
    %117 = vector.load %arg8[%c0_52, %c0_53] : memref<80x128xf32, #tpu.memory_space<vmem>>, vector<80x128xf32>
    %cst_54 = arith.constant dense<0.000000e+00> : vector<2x128xf32>
    %118 = tpu.matmul %116, %117, %cst_54 {dimension_numbers = #tpu.dot_dimension_numbers<[1], [0], [0], [1], [0, 0, 1, 1], [], []>} : vector<2x80xf32>, vector<80x128xf32>, vector<2x128xf32> -> vector<2x128xf32>
    %119 = arith.addf %118, %11 : vector<2x128xf32>
    %120 = math.tanh %119 : vector<2x128xf32>
    %121 = arith.negf %119 : vector<2x128xf32>
    %122 = math.exp %121 : vector<2x128xf32>
    %cst_55 = arith.constant 1.000000e+00 : f32
    %123 = vector.broadcast %cst_55 : f32 to vector<2x128xf32>
    %124 = arith.addf %123, %122 : vector<2x128xf32>
    %125 = arith.divf %123, %124 : vector<2x128xf32>
    %126 = arith.select %21, %120, %125 : vector<2x128xi1>, vector<2x128xf32>
    %127 = vector.extract_strided_slice %126 {offsets = [0, 0], sizes = [2, 32], strides = [1, 1]} : vector<2x128xf32> to vector<2x32xf32>
    %128 = vector.extract_strided_slice %126 {offsets = [0, 32], sizes = [2, 32], strides = [1, 1]} : vector<2x128xf32> to vector<2x32xf32>
    %129 = vector.extract_strided_slice %126 {offsets = [0, 64], sizes = [2, 32], strides = [1, 1]} : vector<2x128xf32> to vector<2x32xf32>
    %130 = vector.extract_strided_slice %126 {offsets = [0, 96], sizes = [2, 32], strides = [1, 1]} : vector<2x128xf32> to vector<2x32xf32>
    %131 = arith.mulf %128, %15 : vector<2x32xf32>
    %132 = arith.mulf %127, %129 : vector<2x32xf32>
    %133 = arith.addf %131, %132 : vector<2x32xf32>
    %134 = math.tanh %133 : vector<2x32xf32>
    %135 = arith.mulf %130, %134 : vector<2x32xf32>
    %136 = tpu.concatenate %135, %115, %93 in 1 : vector<2x32xf32>, vector<2x32xf32>, vector<2x16xf32> -> vector<2x80xf32>
    %c0_56 = arith.constant 0 : index
    %c0_57 = arith.constant 0 : index
    %137 = vector.load %arg10[%c0_56, %c0_57] : memref<80x128xf32, #tpu.memory_space<vmem>>, vector<80x128xf32>
    %cst_58 = arith.constant dense<0.000000e+00> : vector<2x128xf32>
    %138 = tpu.matmul %136, %137, %cst_58 {dimension_numbers = #tpu.dot_dimension_numbers<[1], [0], [0], [1], [0, 0, 1, 1], [], []>} : vector<2x80xf32>, vector<80x128xf32>, vector<2x128xf32> -> vector<2x128xf32>
    %139 = arith.addf %138, %14 : vector<2x128xf32>
    %140 = arith.index_cast %c1_i32 : i32 to index
    %c0_59 = arith.constant 0 : index
    %c0_60 = arith.constant 0 : index
    %141 = vector.load %arg13[%140, %c0_59, %c0_60] : memref<5x2x128xf32, #tpu.memory_space<vmem>>, vector<1x2x128xf32>
    %142 = vector.shape_cast %141 : vector<1x2x128xf32> to vector<2x128xf32>
    %143 = vector.shape_cast %139 : vector<2x128xf32> to vector<1x2x128xf32>
    tpu.vector_store %arg13[%140, %c0_59, %c0_60], %143 {strides = array<i32>} : memref<5x2x128xf32, #tpu.memory_space<vmem>>, vector<1x2x128xf32>,
    %144 = arith.index_cast %c1_i32 : i32 to index
    %c0_61 = arith.constant 0 : index
    %c0_62 = arith.constant 0 : index
    %c0_63 = arith.constant 0 : index
    %145 = vector.load %arg14[%144, %c0_61, %c0_62, %c0_63] : memref<5x2x8x1xf32, #tpu.memory_space<vmem>>, vector<1x2x8x1xf32>
    %146 = vector.shape_cast %145 : vector<1x2x8x1xf32> to vector<2x8x1xf32>
    %147 = vector.shape_cast %112 : vector<2x8x1xf32> to vector<1x2x8x1xf32>
    tpu.vector_store %arg14[%144, %c0_61, %c0_62, %c0_63], %147 {strides = array<i32>} : memref<5x2x8x1xf32, #tpu.memory_space<vmem>>, vector<1x2x8x1xf32>,
    %cst_64 = arith.constant dense<0xFF800000> : vector<2xf32>
    %148 = vector.multi_reduction <maximumf>, %139, %cst_64 [1] : vector<2x128xf32> to vector<2xf32>
    %149 = vector.shape_cast %148 : vector<2xf32> to vector<2x1xf32>
    %150 = vector.broadcast %149 : vector<2x1xf32> to vector<2x128xf32>
    %151 = arith.cmpf oeq, %139, %150 : vector<2x128xf32>
    %cst_65 = arith.constant 1.280000e+02 : f32
    %152 = vector.broadcast %cst_65 : f32 to vector<2x128xf32>
    %153 = arith.select %151, %23, %152 : vector<2x128xi1>, vector<2x128xf32>
    %cst_66 = arith.constant dense<0x7F800000> : vector<2xf32>
    %154 = vector.multi_reduction <minimumf>, %153, %cst_66 [1] : vector<2x128xf32> to vector<2xf32>
    %155 = vector.shape_cast %154 : vector<2xf32> to vector<2x1xf32>
    %156 = vector.broadcast %155 : vector<2x1xf32> to vector<2x128xf32>
    %157 = arith.cmpf oeq, %23, %156 : vector<2x128xf32>
    %158 = arith.extui %157 : vector<2x128xi1> to vector<2x128xi32>
    %159 = arith.sitofp %158 : vector<2x128xi32> to vector<2x128xf32>
    %c0_67 = arith.constant 0 : index
    %c0_68 = arith.constant 0 : index
    %160 = vector.load %arg12[%c0_67, %c0_68] : memref<128x16xf32, #tpu.memory_space<vmem>>, vector<128x16xf32>
    %cst_69 = arith.constant dense<0.000000e+00> : vector<2x16xf32>
    %161 = tpu.matmul %159, %160, %cst_69 {dimension_numbers = #tpu.dot_dimension_numbers<[1], [0], [0], [1], [0, 0, 1, 1], [], []>} : vector<2x128xf32>, vector<128x16xf32>, vector<2x16xf32> -> vector<2x16xf32>
    %c2_i32 = arith.constant 2 : i32
    %cst_70 = arith.constant dense<0.000000e+00> : vector<2x32xf32>
    %162 = tpu.matmul %135, %5, %cst_70 {dimension_numbers = #tpu.dot_dimension_numbers<[1], [0], [0], [1], [0, 0, 1, 1], [], []>} : vector<2x32xf32>, vector<32x32xf32>, vector<2x32xf32> -> vector<2x32xf32>
    %163 = vector.shape_cast %162 : vector<2x32xf32> to vector<2x1x32xf32>
    %164 = vector.broadcast %163 : vector<2x1x32xf32> to vector<2x8x32xf32>
    %165 = arith.addf %164, %1 : vector<2x8x32xf32>
    %166 = math.tanh %165 : vector<2x8x32xf32>
    %167 = arith.mulf %8, %166 : vector<2x8x32xf32>
    %cst_71 = arith.constant dense<0.000000e+00> : vector<2x8xf32>
    %168 = vector.multi_reduction <add>, %167, %cst_71 [2] : vector<2x8x32xf32> to vector<2x8xf32>
    %169 = vector.shape_cast %168 : vector<2x8xf32> to vector<2x8x1xf32>
    %cst_72 = arith.constant -1.000000e+10 : f32
    %170 = vector.broadcast %cst_72 : f32 to vector<2x8x1xf32>
    %171 = arith.select %4, %169, %170 : vector<2x8x1xi1>, vector<2x8x1xf32>
    %cst_73 = arith.constant dense<0xFF800000> : vector<2x1xf32>
    %172 = vector.multi_reduction <maximumf>, %171, %cst_73 [1] : vector<2x8x1xf32> to vector<2x1xf32>
    %173 = vector.shape_cast %172 : vector<2x1xf32> to vector<2x1x1xf32>
    %174 = vector.broadcast %173 : vector<2x1x1xf32> to vector<2x8x1xf32>
    %175 = arith.subf %171, %174 : vector<2x8x1xf32>
    %176 = math.exp %175 : vector<2x8x1xf32>
    %cst_74 = arith.constant dense<0.000000e+00> : vector<2x1xf32>
    %177 = vector.multi_reduction <add>, %176, %cst_74 [1] : vector<2x8x1xf32> to vector<2x1xf32>
    %178 = vector.shape_cast %177 : vector<2x1xf32> to vector<2x1x1xf32>
    %179 = vector.broadcast %178 : vector<2x1x1xf32> to vector<2x8x1xf32>
    %180 = arith.divf %176, %179 : vector<2x8x1xf32>
    %181 = vector.broadcast %180 : vector<2x8x1xf32> to vector<2x8x32xf32>
    %182 = arith.mulf %181, %0 : vector<2x8x32xf32>
    %cst_75 = arith.constant dense<0.000000e+00> : vector<2x32xf32>
    %183 = vector.multi_reduction <add>, %182, %cst_75 [1] : vector<2x8x32xf32> to vector<2x32xf32>
    %184 = tpu.concatenate %161, %183, %135 in 1 : vector<2x16xf32>, vector<2x32xf32>, vector<2x32xf32> -> vector<2x80xf32>
    %c0_76 = arith.constant 0 : index
    %c0_77 = arith.constant 0 : index
    %185 = vector.load %arg8[%c0_76, %c0_77] : memref<80x128xf32, #tpu.memory_space<vmem>>, vector<80x128xf32>
    %cst_78 = arith.constant dense<0.000000e+00> : vector<2x128xf32>
    %186 = tpu.matmul %184, %185, %cst_78 {dimension_numbers = #tpu.dot_dimension_numbers<[1], [0], [0], [1], [0, 0, 1, 1], [], []>} : vector<2x80xf32>, vector<80x128xf32>, vector<2x128xf32> -> vector<2x128xf32>
    %187 = arith.addf %186, %11 : vector<2x128xf32>
    %188 = math.tanh %187 : vector<2x128xf32>
    %189 = arith.negf %187 : vector<2x128xf32>
    %190 = math.exp %189 : vector<2x128xf32>
    %cst_79 = arith.constant 1.000000e+00 : f32
    %191 = vector.broadcast %cst_79 : f32 to vector<2x128xf32>
    %192 = arith.addf %191, %190 : vector<2x128xf32>
    %193 = arith.divf %191, %192 : vector<2x128xf32>
    %194 = arith.select %21, %188, %193 : vector<2x128xi1>, vector<2x128xf32>
    %195 = vector.extract_strided_slice %194 {offsets = [0, 0], sizes = [2, 32], strides = [1, 1]} : vector<2x128xf32> to vector<2x32xf32>
    %196 = vector.extract_strided_slice %194 {offsets = [0, 32], sizes = [2, 32], strides = [1, 1]} : vector<2x128xf32> to vector<2x32xf32>
    %197 = vector.extract_strided_slice %194 {offsets = [0, 64], sizes = [2, 32], strides = [1, 1]} : vector<2x128xf32> to vector<2x32xf32>
    %198 = vector.extract_strided_slice %194 {offsets = [0, 96], sizes = [2, 32], strides = [1, 1]} : vector<2x128xf32> to vector<2x32xf32>
    %199 = arith.mulf %196, %15 : vector<2x32xf32>
    %200 = arith.mulf %195, %197 : vector<2x32xf32>
    %201 = arith.addf %199, %200 : vector<2x32xf32>
    %202 = math.tanh %201 : vector<2x32xf32>
    %203 = arith.mulf %198, %202 : vector<2x32xf32>
    %204 = tpu.concatenate %203, %183, %161 in 1 : vector<2x32xf32>, vector<2x32xf32>, vector<2x16xf32> -> vector<2x80xf32>
    %c0_80 = arith.constant 0 : index
    %c0_81 = arith.constant 0 : index
    %205 = vector.load %arg10[%c0_80, %c0_81] : memref<80x128xf32, #tpu.memory_space<vmem>>, vector<80x128xf32>
    %cst_82 = arith.constant dense<0.000000e+00> : vector<2x128xf32>
    %206 = tpu.matmul %204, %205, %cst_82 {dimension_numbers = #tpu.dot_dimension_numbers<[1], [0], [0], [1], [0, 0, 1, 1], [], []>} : vector<2x80xf32>, vector<80x128xf32>, vector<2x128xf32> -> vector<2x128xf32>
    %207 = arith.addf %206, %14 : vector<2x128xf32>
    %208 = arith.index_cast %c2_i32 : i32 to index
    %c0_83 = arith.constant 0 : index
    %c0_84 = arith.constant 0 : index
    %209 = vector.load %arg13[%208, %c0_83, %c0_84] : memref<5x2x128xf32, #tpu.memory_space<vmem>>, vector<1x2x128xf32>
    %210 = vector.shape_cast %209 : vector<1x2x128xf32> to vector<2x128xf32>
    %211 = vector.shape_cast %207 : vector<2x128xf32> to vector<1x2x128xf32>
    tpu.vector_store %arg13[%208, %c0_83, %c0_84], %211 {strides = array<i32>} : memref<5x2x128xf32, #tpu.memory_space<vmem>>, vector<1x2x128xf32>,
    %212 = arith.index_cast %c2_i32 : i32 to index
    %c0_85 = arith.constant 0 : index
    %c0_86 = arith.constant 0 : index
    %c0_87 = arith.constant 0 : index
    %213 = vector.load %arg14[%212, %c0_85, %c0_86, %c0_87] : memref<5x2x8x1xf32, #tpu.memory_space<vmem>>, vector<1x2x8x1xf32>
    %214 = vector.shape_cast %213 : vector<1x2x8x1xf32> to vector<2x8x1xf32>
    %215 = vector.shape_cast %180 : vector<2x8x1xf32> to vector<1x2x8x1xf32>
    tpu.vector_store %arg14[%212, %c0_85, %c0_86, %c0_87], %215 {strides = array<i32>} : memref<5x2x8x1xf32, #tpu.memory_space<vmem>>, vector<1x2x8x1xf32>,
    %cst_88 = arith.constant dense<0xFF800000> : vector<2xf32>
    %216 = vector.multi_reduction <maximumf>, %207, %cst_88 [1] : vector<2x128xf32> to vector<2xf32>
    %217 = vector.shape_cast %216 : vector<2xf32> to vector<2x1xf32>
    %218 = vector.broadcast %217 : vector<2x1xf32> to vector<2x128xf32>
    %219 = arith.cmpf oeq, %207, %218 : vector<2x128xf32>
    %cst_89 = arith.constant 1.280000e+02 : f32
    %220 = vector.broadcast %cst_89 : f32 to vector<2x128xf32>
    %221 = arith.select %219, %23, %220 : vector<2x128xi1>, vector<2x128xf32>
    %cst_90 = arith.constant dense<0x7F800000> : vector<2xf32>
    %222 = vector.multi_reduction <minimumf>, %221, %cst_90 [1] : vector<2x128xf32> to vector<2xf32>
    %223 = vector.shape_cast %222 : vector<2xf32> to vector<2x1xf32>
    %224 = vector.broadcast %223 : vector<2x1xf32> to vector<2x128xf32>
    %225 = arith.cmpf oeq, %23, %224 : vector<2x128xf32>
    %226 = arith.extui %225 : vector<2x128xi1> to vector<2x128xi32>
    %227 = arith.sitofp %226 : vector<2x128xi32> to vector<2x128xf32>
    %c0_91 = arith.constant 0 : index
    %c0_92 = arith.constant 0 : index
    %228 = vector.load %arg12[%c0_91, %c0_92] : memref<128x16xf32, #tpu.memory_space<vmem>>, vector<128x16xf32>
    %cst_93 = arith.constant dense<0.000000e+00> : vector<2x16xf32>
    %229 = tpu.matmul %227, %228, %cst_93 {dimension_numbers = #tpu.dot_dimension_numbers<[1], [0], [0], [1], [0, 0, 1, 1], [], []>} : vector<2x128xf32>, vector<128x16xf32>, vector<2x16xf32> -> vector<2x16xf32>
    %c3_i32 = arith.constant 3 : i32
    %cst_94 = arith.constant dense<0.000000e+00> : vector<2x32xf32>
    %230 = tpu.matmul %203, %5, %cst_94 {dimension_numbers = #tpu.dot_dimension_numbers<[1], [0], [0], [1], [0, 0, 1, 1], [], []>} : vector<2x32xf32>, vector<32x32xf32>, vector<2x32xf32> -> vector<2x32xf32>
    %231 = vector.shape_cast %230 : vector<2x32xf32> to vector<2x1x32xf32>
    %232 = vector.broadcast %231 : vector<2x1x32xf32> to vector<2x8x32xf32>
    %233 = arith.addf %232, %1 : vector<2x8x32xf32>
    %234 = math.tanh %233 : vector<2x8x32xf32>
    %235 = arith.mulf %8, %234 : vector<2x8x32xf32>
    %cst_95 = arith.constant dense<0.000000e+00> : vector<2x8xf32>
    %236 = vector.multi_reduction <add>, %235, %cst_95 [2] : vector<2x8x32xf32> to vector<2x8xf32>
    %237 = vector.shape_cast %236 : vector<2x8xf32> to vector<2x8x1xf32>
    %cst_96 = arith.constant -1.000000e+10 : f32
    %238 = vector.broadcast %cst_96 : f32 to vector<2x8x1xf32>
    %239 = arith.select %4, %237, %238 : vector<2x8x1xi1>, vector<2x8x1xf32>
    %cst_97 = arith.constant dense<0xFF800000> : vector<2x1xf32>
    %240 = vector.multi_reduction <maximumf>, %239, %cst_97 [1] : vector<2x8x1xf32> to vector<2x1xf32>
    %241 = vector.shape_cast %240 : vector<2x1xf32> to vector<2x1x1xf32>
    %242 = vector.broadcast %241 : vector<2x1x1xf32> to vector<2x8x1xf32>
    %243 = arith.subf %239, %242 : vector<2x8x1xf32>
    %244 = math.exp %243 : vector<2x8x1xf32>
    %cst_98 = arith.constant dense<0.000000e+00> : vector<2x1xf32>
    %245 = vector.multi_reduction <add>, %244, %cst_98 [1] : vector<2x8x1xf32> to vector<2x1xf32>
    %246 = vector.shape_cast %245 : vector<2x1xf32> to vector<2x1x1xf32>
    %247 = vector.broadcast %246 : vector<2x1x1xf32> to vector<2x8x1xf32>
    %248 = arith.divf %244, %247 : vector<2x8x1xf32>
    %249 = vector.broadcast %248 : vector<2x8x1xf32> to vector<2x8x32xf32>
    %250 = arith.mulf %249, %0 : vector<2x8x32xf32>
    %cst_99 = arith.constant dense<0.000000e+00> : vector<2x32xf32>
    %251 = vector.multi_reduction <add>, %250, %cst_99 [1] : vector<2x8x32xf32> to vector<2x32xf32>
    %252 = tpu.concatenate %229, %251, %203 in 1 : vector<2x16xf32>, vector<2x32xf32>, vector<2x32xf32> -> vector<2x80xf32>
    %c0_100 = arith.constant 0 : index
    %c0_101 = arith.constant 0 : index
    %253 = vector.load %arg8[%c0_100, %c0_101] : memref<80x128xf32, #tpu.memory_space<vmem>>, vector<80x128xf32>
    %cst_102 = arith.constant dense<0.000000e+00> : vector<2x128xf32>
    %254 = tpu.matmul %252, %253, %cst_102 {dimension_numbers = #tpu.dot_dimension_numbers<[1], [0], [0], [1], [0, 0, 1, 1], [], []>} : vector<2x80xf32>, vector<80x128xf32>, vector<2x128xf32> -> vector<2x128xf32>
    %255 = arith.addf %254, %11 : vector<2x128xf32>
    %256 = math.tanh %255 : vector<2x128xf32>
    %257 = arith.negf %255 : vector<2x128xf32>
    %258 = math.exp %257 : vector<2x128xf32>
    %cst_103 = arith.constant 1.000000e+00 : f32
    %259 = vector.broadcast %cst_103 : f32 to vector<2x128xf32>
    %260 = arith.addf %259, %258 : vector<2x128xf32>
    %261 = arith.divf %259, %260 : vector<2x128xf32>
    %262 = arith.select %21, %256, %261 : vector<2x128xi1>, vector<2x128xf32>
    %263 = vector.extract_strided_slice %262 {offsets = [0, 0], sizes = [2, 32], strides = [1, 1]} : vector<2x128xf32> to vector<2x32xf32>
    %264 = vector.extract_strided_slice %262 {offsets = [0, 32], sizes = [2, 32], strides = [1, 1]} : vector<2x128xf32> to vector<2x32xf32>
    %265 = vector.extract_strided_slice %262 {offsets = [0, 64], sizes = [2, 32], strides = [1, 1]} : vector<2x128xf32> to vector<2x32xf32>
    %266 = vector.extract_strided_slice %262 {offsets = [0, 96], sizes = [2, 32], strides = [1, 1]} : vector<2x128xf32> to vector<2x32xf32>
    %267 = arith.mulf %264, %15 : vector<2x32xf32>
    %268 = arith.mulf %263, %265 : vector<2x32xf32>
    %269 = arith.addf %267, %268 : vector<2x32xf32>
    %270 = math.tanh %269 : vector<2x32xf32>
    %271 = arith.mulf %266, %270 : vector<2x32xf32>
    %272 = tpu.concatenate %271, %251, %229 in 1 : vector<2x32xf32>, vector<2x32xf32>, vector<2x16xf32> -> vector<2x80xf32>
    %c0_104 = arith.constant 0 : index
    %c0_105 = arith.constant 0 : index
    %273 = vector.load %arg10[%c0_104, %c0_105] : memref<80x128xf32, #tpu.memory_space<vmem>>, vector<80x128xf32>
    %cst_106 = arith.constant dense<0.000000e+00> : vector<2x128xf32>
    %274 = tpu.matmul %272, %273, %cst_106 {dimension_numbers = #tpu.dot_dimension_numbers<[1], [0], [0], [1], [0, 0, 1, 1], [], []>} : vector<2x80xf32>, vector<80x128xf32>, vector<2x128xf32> -> vector<2x128xf32>
    %275 = arith.addf %274, %14 : vector<2x128xf32>
    %276 = arith.index_cast %c3_i32 : i32 to index
    %c0_107 = arith.constant 0 : index
    %c0_108 = arith.constant 0 : index
    %277 = vector.load %arg13[%276, %c0_107, %c0_108] : memref<5x2x128xf32, #tpu.memory_space<vmem>>, vector<1x2x128xf32>
    %278 = vector.shape_cast %277 : vector<1x2x128xf32> to vector<2x128xf32>
    %279 = vector.shape_cast %275 : vector<2x128xf32> to vector<1x2x128xf32>
    tpu.vector_store %arg13[%276, %c0_107, %c0_108], %279 {strides = array<i32>} : memref<5x2x128xf32, #tpu.memory_space<vmem>>, vector<1x2x128xf32>,
    %280 = arith.index_cast %c3_i32 : i32 to index
    %c0_109 = arith.constant 0 : index
    %c0_110 = arith.constant 0 : index
    %c0_111 = arith.constant 0 : index
    %281 = vector.load %arg14[%280, %c0_109, %c0_110, %c0_111] : memref<5x2x8x1xf32, #tpu.memory_space<vmem>>, vector<1x2x8x1xf32>
    %282 = vector.shape_cast %281 : vector<1x2x8x1xf32> to vector<2x8x1xf32>
    %283 = vector.shape_cast %248 : vector<2x8x1xf32> to vector<1x2x8x1xf32>
    tpu.vector_store %arg14[%280, %c0_109, %c0_110, %c0_111], %283 {strides = array<i32>} : memref<5x2x8x1xf32, #tpu.memory_space<vmem>>, vector<1x2x8x1xf32>,
    %cst_112 = arith.constant dense<0xFF800000> : vector<2xf32>
    %284 = vector.multi_reduction <maximumf>, %275, %cst_112 [1] : vector<2x128xf32> to vector<2xf32>
    %285 = vector.shape_cast %284 : vector<2xf32> to vector<2x1xf32>
    %286 = vector.broadcast %285 : vector<2x1xf32> to vector<2x128xf32>
    %287 = arith.cmpf oeq, %275, %286 : vector<2x128xf32>
    %cst_113 = arith.constant 1.280000e+02 : f32
    %288 = vector.broadcast %cst_113 : f32 to vector<2x128xf32>
    %289 = arith.select %287, %23, %288 : vector<2x128xi1>, vector<2x128xf32>
    %cst_114 = arith.constant dense<0x7F800000> : vector<2xf32>
    %290 = vector.multi_reduction <minimumf>, %289, %cst_114 [1] : vector<2x128xf32> to vector<2xf32>
    %291 = vector.shape_cast %290 : vector<2xf32> to vector<2x1xf32>
    %292 = vector.broadcast %291 : vector<2x1xf32> to vector<2x128xf32>
    %293 = arith.cmpf oeq, %23, %292 : vector<2x128xf32>
    %294 = arith.extui %293 : vector<2x128xi1> to vector<2x128xi32>
    %295 = arith.sitofp %294 : vector<2x128xi32> to vector<2x128xf32>
    %c0_115 = arith.constant 0 : index
    %c0_116 = arith.constant 0 : index
    %296 = vector.load %arg12[%c0_115, %c0_116] : memref<128x16xf32, #tpu.memory_space<vmem>>, vector<128x16xf32>
    %cst_117 = arith.constant dense<0.000000e+00> : vector<2x16xf32>
    %297 = tpu.matmul %295, %296, %cst_117 {dimension_numbers = #tpu.dot_dimension_numbers<[1], [0], [0], [1], [0, 0, 1, 1], [], []>} : vector<2x128xf32>, vector<128x16xf32>, vector<2x16xf32> -> vector<2x16xf32>
    %c4_i32 = arith.constant 4 : i32
    %cst_118 = arith.constant dense<0.000000e+00> : vector<2x32xf32>
    %298 = tpu.matmul %271, %5, %cst_118 {dimension_numbers = #tpu.dot_dimension_numbers<[1], [0], [0], [1], [0, 0, 1, 1], [], []>} : vector<2x32xf32>, vector<32x32xf32>, vector<2x32xf32> -> vector<2x32xf32>
    %299 = vector.shape_cast %298 : vector<2x32xf32> to vector<2x1x32xf32>
    %300 = vector.broadcast %299 : vector<2x1x32xf32> to vector<2x8x32xf32>
    %301 = arith.addf %300, %1 : vector<2x8x32xf32>
    %302 = math.tanh %301 : vector<2x8x32xf32>
    %303 = arith.mulf %8, %302 : vector<2x8x32xf32>
    %cst_119 = arith.constant dense<0.000000e+00> : vector<2x8xf32>
    %304 = vector.multi_reduction <add>, %303, %cst_119 [2] : vector<2x8x32xf32> to vector<2x8xf32>
    %305 = vector.shape_cast %304 : vector<2x8xf32> to vector<2x8x1xf32>
    %cst_120 = arith.constant -1.000000e+10 : f32
    %306 = vector.broadcast %cst_120 : f32 to vector<2x8x1xf32>
    %307 = arith.select %4, %305, %306 : vector<2x8x1xi1>, vector<2x8x1xf32>
    %cst_121 = arith.constant dense<0xFF800000> : vector<2x1xf32>
    %308 = vector.multi_reduction <maximumf>, %307, %cst_121 [1] : vector<2x8x1xf32> to vector<2x1xf32>
    %309 = vector.shape_cast %308 : vector<2x1xf32> to vector<2x1x1xf32>
    %310 = vector.broadcast %309 : vector<2x1x1xf32> to vector<2x8x1xf32>
    %311 = arith.subf %307, %310 : vector<2x8x1xf32>
    %312 = math.exp %311 : vector<2x8x1xf32>
    %cst_122 = arith.constant dense<0.000000e+00> : vector<2x1xf32>
    %313 = vector.multi_reduction <add>, %312, %cst_122 [1] : vector<2x8x1xf32> to vector<2x1xf32>
    %314 = vector.shape_cast %313 : vector<2x1xf32> to vector<2x1x1xf32>
    %315 = vector.broadcast %314 : vector<2x1x1xf32> to vector<2x8x1xf32>
    %316 = arith.divf %312, %315 : vector<2x8x1xf32>
    %317 = vector.broadcast %316 : vector<2x8x1xf32> to vector<2x8x32xf32>
    %318 = arith.mulf %317, %0 : vector<2x8x32xf32>
    %cst_123 = arith.constant dense<0.000000e+00> : vector<2x32xf32>
    %319 = vector.multi_reduction <add>, %318, %cst_123 [1] : vector<2x8x32xf32> to vector<2x32xf32>
    %320 = tpu.concatenate %297, %319, %271 in 1 : vector<2x16xf32>, vector<2x32xf32>, vector<2x32xf32> -> vector<2x80xf32>
    %c0_124 = arith.constant 0 : index
    %c0_125 = arith.constant 0 : index
    %321 = vector.load %arg8[%c0_124, %c0_125] : memref<80x128xf32, #tpu.memory_space<vmem>>, vector<80x128xf32>
    %cst_126 = arith.constant dense<0.000000e+00> : vector<2x128xf32>
    %322 = tpu.matmul %320, %321, %cst_126 {dimension_numbers = #tpu.dot_dimension_numbers<[1], [0], [0], [1], [0, 0, 1, 1], [], []>} : vector<2x80xf32>, vector<80x128xf32>, vector<2x128xf32> -> vector<2x128xf32>
    %323 = arith.addf %322, %11 : vector<2x128xf32>
    %324 = math.tanh %323 : vector<2x128xf32>
    %325 = arith.negf %323 : vector<2x128xf32>
    %326 = math.exp %325 : vector<2x128xf32>
    %cst_127 = arith.constant 1.000000e+00 : f32
    %327 = vector.broadcast %cst_127 : f32 to vector<2x128xf32>
    %328 = arith.addf %327, %326 : vector<2x128xf32>
    %329 = arith.divf %327, %328 : vector<2x128xf32>
    %330 = arith.select %21, %324, %329 : vector<2x128xi1>, vector<2x128xf32>
    %331 = vector.extract_strided_slice %330 {offsets = [0, 0], sizes = [2, 32], strides = [1, 1]} : vector<2x128xf32> to vector<2x32xf32>
    %332 = vector.extract_strided_slice %330 {offsets = [0, 32], sizes = [2, 32], strides = [1, 1]} : vector<2x128xf32> to vector<2x32xf32>
    %333 = vector.extract_strided_slice %330 {offsets = [0, 64], sizes = [2, 32], strides = [1, 1]} : vector<2x128xf32> to vector<2x32xf32>
    %334 = vector.extract_strided_slice %330 {offsets = [0, 96], sizes = [2, 32], strides = [1, 1]} : vector<2x128xf32> to vector<2x32xf32>
    %335 = arith.mulf %332, %15 : vector<2x32xf32>
    %336 = arith.mulf %331, %333 : vector<2x32xf32>
    %337 = arith.addf %335, %336 : vector<2x32xf32>
    %338 = math.tanh %337 : vector<2x32xf32>
    %339 = arith.mulf %334, %338 : vector<2x32xf32>
    %340 = tpu.concatenate %339, %319, %297 in 1 : vector<2x32xf32>, vector<2x32xf32>, vector<2x16xf32> -> vector<2x80xf32>
    %c0_128 = arith.constant 0 : index
    %c0_129 = arith.constant 0 : index
    %341 = vector.load %arg10[%c0_128, %c0_129] : memref<80x128xf32, #tpu.memory_space<vmem>>, vector<80x128xf32>
    %cst_130 = arith.constant dense<0.000000e+00> : vector<2x128xf32>
    %342 = tpu.matmul %340, %341, %cst_130 {dimension_numbers = #tpu.dot_dimension_numbers<[1], [0], [0], [1], [0, 0, 1, 1], [], []>} : vector<2x80xf32>, vector<80x128xf32>, vector<2x128xf32> -> vector<2x128xf32>
    %343 = arith.addf %342, %14 : vector<2x128xf32>
    %344 = arith.index_cast %c4_i32 : i32 to index
    %c0_131 = arith.constant 0 : index
    %c0_132 = arith.constant 0 : index
    %345 = vector.load %arg13[%344, %c0_131, %c0_132] : memref<5x2x128xf32, #tpu.memory_space<vmem>>, vector<1x2x128xf32>
    %346 = vector.shape_cast %345 : vector<1x2x128xf32> to vector<2x128xf32>
    %347 = vector.shape_cast %343 : vector<2x128xf32> to vector<1x2x128xf32>
    tpu.vector_store %arg13[%344, %c0_131, %c0_132], %347 {strides = array<i32>} : memref<5x2x128xf32, #tpu.memory_space<vmem>>, vector<1x2x128xf32>,
    %348 = arith.index_cast %c4_i32 : i32 to index
    %c0_133 = arith.constant 0 : index
    %c0_134 = arith.constant 0 : index
    %c0_135 = arith.constant 0 : index
    %349 = vector.load %arg14[%348, %c0_133, %c0_134, %c0_135] : memref<5x2x8x1xf32, #tpu.memory_space<vmem>>, vector<1x2x8x1xf32>
    %350 = vector.shape_cast %349 : vector<1x2x8x1xf32> to vector<2x8x1xf32>
    %351 = vector.shape_cast %316 : vector<2x8x1xf32> to vector<1x2x8x1xf32>
    tpu.vector_store %arg14[%348, %c0_133, %c0_134, %c0_135], %351 {strides = array<i32>} : memref<5x2x8x1xf32, #tpu.memory_space<vmem>>, vector<1x2x8x1xf32>,
    %cst_136 = arith.constant dense<0xFF800000> : vector<2xf32>
    %352 = vector.multi_reduction <maximumf>, %343, %cst_136 [1] : vector<2x128xf32> to vector<2xf32>
    %353 = vector.shape_cast %352 : vector<2xf32> to vector<2x1xf32>
    %354 = vector.broadcast %353 : vector<2x1xf32> to vector<2x128xf32>
    %355 = arith.cmpf oeq, %343, %354 : vector<2x128xf32>
    %cst_137 = arith.constant 1.280000e+02 : f32
    %356 = vector.broadcast %cst_137 : f32 to vector<2x128xf32>
    %357 = arith.select %355, %23, %356 : vector<2x128xi1>, vector<2x128xf32>
    %cst_138 = arith.constant dense<0x7F800000> : vector<2xf32>
    %358 = vector.multi_reduction <minimumf>, %357, %cst_138 [1] : vector<2x128xf32> to vector<2xf32>
    %359 = vector.shape_cast %358 : vector<2xf32> to vector<2x1xf32>
    %360 = vector.broadcast %359 : vector<2x1xf32> to vector<2x128xf32>
    %361 = arith.cmpf oeq, %23, %360 : vector<2x128xf32>
    %362 = arith.extui %361 : vector<2x128xi1> to vector<2x128xi32>
    %363 = arith.sitofp %362 : vector<2x128xi32> to vector<2x128xf32>
    %c0_139 = arith.constant 0 : index
    %c0_140 = arith.constant 0 : index
    %364 = vector.load %arg12[%c0_139, %c0_140] : memref<128x16xf32, #tpu.memory_space<vmem>>, vector<128x16xf32>
    %cst_141 = arith.constant dense<0.000000e+00> : vector<2x16xf32>
    %365 = tpu.matmul %363, %364, %cst_141 {dimension_numbers = #tpu.dot_dimension_numbers<[1], [0], [0], [1], [0, 0, 1, 1], [], []>} : vector<2x128xf32>, vector<128x16xf32>, vector<2x16xf32> -> vector<2x16xf32>
    %c5_i32 = arith.constant 5 : i32
    return
  }
}

</mosaic_0001>

<llo_original>
// kernel: seq2seq_forward.2
$region0: #{seq2seq_forward.2}
  #allocation0 [shape = 'u32[]', space=smem, size = 0x4, offset = 0x4, fixed_abs, tag = 'smem constant byte address 0x4 - core index']
  #allocation1 [shape = 'u32[144,128]{1,0:T(1,128)}', space=vmem, size = 0x12000, scoped, tag = 'internal scratch']
  %s0 = inlined_call_operand.vmem [shape: f32[8,2,128], index: 0, kind: input, shape index: {}]
  %s1 = inlined_call_operand.vmem [shape: f32[32,128], index: 1, kind: input, shape index: {}]
  %s2 = inlined_call_operand.vmem [shape: f32[32,32], index: 2, kind: input, shape index: {}]
  %s3 = inlined_call_operand.vmem [shape: f32[1,32], index: 3, kind: input, shape index: {}]
  %s4 = inlined_call_operand.vmem [shape: f32[2,8,32], index: 4, kind: output, shape index: {0}]
  %s5 = inlined_call_operand.vmem [shape: f32[2,8,32], index: 5, kind: output, shape index: {1}]
  %s6 = inlined_call_operand.vmem [shape: f32[2,32], index: 6, kind: output, shape index: {2}]
  %s7 = inlined_call_operand.vmem [shape: f32[2,32], index: 7, kind: output, shape index: {3}]
  %8 = xla_tuple %s4, %s5, %s6, %s7
  %s9 = sld [smem:[#allocation0]]
  $region50: #{seq2seq_forward.2} parent=0
    _
  %s11 = ssub.s32 1, %s9
  %s12 = scalar_select 0, %s11, %s9
  // Predicated region
  $region2: #{seq2seq_forward.2} parent=0 // pred_check
    _
  $region3: #{seq2seq_forward.2} parent=0 // pred_check_branch
    %14 = sbr.rel (0) target = $region5
  $region4: #{seq2seq_forward.2} parent=0 // pred_region
    _
  $region5: #{seq2seq_forward.2} parent=0 // pred_fallthru
    _
  // Predicated region
  $region6: #{seq2seq_forward.2} parent=0 // pred_check
    _
  $region7: #{seq2seq_forward.2} parent=0 // pred_check_branch
    %16 = sbr.rel (0) target = $region9
  $region8: #{seq2seq_forward.2} parent=0 // pred_region
    _
  $region9: #{seq2seq_forward.2} parent=0 // pred_fallthru
    _
  // Predicated region
  $region10: #{seq2seq_forward.2} parent=0 // pred_check
    _
  $region11: #{seq2seq_forward.2} parent=0 // pred_check_branch
    %18 = sbr.rel (0) target = $region13
  $region12: #{seq2seq_forward.2} parent=0 // pred_region
    _
  $region13: #{seq2seq_forward.2} parent=0 // pred_fallthru
    _
  // Predicated region
  $region14: #{seq2seq_forward.2} parent=0 // pred_check
    _
  $region15: #{seq2seq_forward.2} parent=0 // pred_check_branch
    %20 = sbr.rel (0) target = $region17
  $region16: #{seq2seq_forward.2} parent=0 // pred_region
    _
  $region17: #{seq2seq_forward.2} parent=0 // pred_fallthru
    _
  %v21 = vld [vmem:[%s1] sm:$0xff]
  %v22 = vld [vmem:[%s1 + $0x8] sm:$0xff]
  %v23 = vld [vmem:[%s1 + $0x10] sm:$0xff]
  %v24 = vld [vmem:[%s1 + $0x18] sm:$0xff]
  %v25 = vld [vmem:[%s2] sm:$0xff]
  %v26 = vld [vmem:[%s2 + $0x8] sm:$0xff]
  %v27 = vld [vmem:[%s2 + $0x10] sm:$0xff]
  %v28 = vld [vmem:[%s2 + $0x18] sm:$0xff]
  %v29 = vld [vmem:[%s3] sm:$0x1]
  %v31 = vlaneseq
  %v32 = vshrl.u32 %v31, 7
  %v33 = vsub.s32 0, %v32
  %v34 = vrot.slane %v29, %v33
  %v36 = vlaneseq
  %v37 = vand.u32 %v36, 127
  %vm38 = vcmp.ge.s32.totalorder %v37, 64
  %vm39 = vcmp.lt.s32.totalorder %v37, 96
  %vm40 = vmand %vm38, %vm39
  %v41 = vld [vmem:[%s0] sm:$0x3]
  %vm42 = vcmask 261120
  %v44 = vsel %vm42, 0.0, 0
  %46 = vmatprep.subr.mxu0 0.0
  %47 = vmatpush1.msra.mxu0 %v21
  %48 = vmatprep.subr.mxu0 0.0
  %49 = vmatpush1.msra.mxu0 %v22
  %50 = vmatprep.subr.mxu0 0.0
  %51 = vmatpush1.msra.mxu0 %v23
  %52 = vmatprep.subr.mxu0 0.0
  %53 = vmatpush1.msra.mxu0 %v24
  %54 = vmatprep.subr.mxu0 0.0
  %55 = vmatpush1.msra.mxu0 0.0
  %56 = vmatprep.subr.mxu0 0.0
  %57 = vmatpush1.msra.mxu0 0.0
  %58 = vmatprep.subr.mxu0 0.0
  %59 = vmatpush1.msra.mxu0 0.0
  %60 = vmatprep.subr.mxu0 0.0
  %61 = vmatpush1.msra.mxu0 0.0
  %62 = vmatprep.subr.mxu0 0.0
  %63 = vmatpush1.msra.mxu0 0.0
  %64 = vmatprep.subr.mxu0 0.0
  %65 = vmatpush1.msra.mxu0 0.0
  %66 = vmatprep.subr.mxu0 0.0
  %67 = vmatpush1.msra.mxu0 0.0
  %68 = vmatprep.subr.mxu0 0.0
  %69 = vmatpush1.msra.mxu0 0.0
  %70 = vmatprep.subr.mxu0 0.0
  %71 = vmatpush1.msra.mxu0 0.0
  %72 = vmatprep.subr.mxu0 0.0
  %73 = vmatpush1.msra.mxu0 0.0
  %74 = vmatprep.subr.mxu0 0.0
  %75 = vmatpush1.msra.mxu0 0.0
  %76 = vmatprep.subr.mxu0 0.0
  %77 = vmatpush1.msra.mxu0 0.0
  %78 = vmatprep.subr.mxu0 0.0
  %79 = vmatpush1.msra.mxu0 0.0
  %80 = vmatprep.subr.mxu0 0.0
  %81 = vmatpush1.msra.mxu0 0.0
  %82 = vmatprep.subr.mxu0 0.0
  %83 = vmatpush1.msra.mxu0 0.0
  %84 = vmatprep.subr.mxu0 0.0
  %85 = vmatpush1.msra.mxu0 0.0
  %86 = vmatprep.subr.mxu0 0.0
  %87 = vmatpush1.msra.mxu0 0.0
  %88 = vmatprep.subr.mxu0 0.0
  %89 = vmatpush1.msra.mxu0 0.0
  %90 = vmatprep.subr.mxu0 0.0
  %91 = vmatpush1.msra.mxu0 0.0
  %92 = vmatprep.subr.mxu0 0.0
  %93 = vmatpush1.msra.mxu0 0.0
  %94 = vmatprep.subr.mxu0 0.0
  %95 = vmatpush1.msra.mxu0 0.0
  %96 = vmatprep.subr.mxu0 0.0
  %97 = vmatpush1.msra.mxu0 0.0
  %98 = vmatprep.subr.mxu0 0.0
  %99 = vmatpush1.msra.mxu0 0.0
  %100 = vmatprep.subr.mxu0 0.0
  %101 = vmatpush1.msra.mxu0 0.0
  %102 = vmatprep.subr.mxu0 0.0
  %103 = vmatpush1.msra.mxu0 0.0
  %104 = vmatprep.subr.mxu0 0.0
  %105 = vmatpush1.msra.mxu0 0.0
  %106 = vmatprep.subr.mxu0 0.0
  %107 = vmatpush1.msra.mxu0 0.0
  %108 = vmatprep.subr.mxu0 0.0
  %109 = vmatpush1.msra.mxu0 0.0
  %110 = vmatprep.mubr.f32.mxu0 0.0
  %111 = vmatmul.mubr.f32.gmra.mrb[0].mxu0 %v44
  %v112 = vpop.f32.mrb[0].mxu0
  %v113 = vadd.f32 0.0, %v112
  %v114 = vpop.f32.mrb[0].mxu0
  %115 = vdwg.mxu0
  %v116 = vadd.f32 %v41, %v113
  %v117 = vtanh.pop %v116
  %v118 = vxor.u32 %v116, 2147483648
  %v119 = vmul.f32 %v118, 1.442695
  %v120 = vpow.pop %v119
  %v121 = vadd.f32 %v120, 1.0
  %v122 = vrcp.pop %v121
  %v123 = vmul.f32 1.0, %v122
  %v124 = vsel %vm40, %v117, %v123
  %v125 = vmul.f32 %v124, 0.0
  %127 = vrot.lane.b32.xlu0 %v124, 64
  %v128 = vpop.permute.xlu0 %127
  %v130 = vmul.f32 %v124, %v128
  %132 = vrot.lane.b32.xlu0 %v130, 32
  %v133 = vpop.permute.xlu0 %132
  %v135 = vadd.f32 %v125, %v133
  %v136 = vtanh.pop %v135
  %138 = vrot.lane.b32.xlu0 %v136, 64
  %v139 = vpop.permute.xlu0 %138
  %v141 = vmul.f32 %v124, %v139
  %v144 = vunpack.c.l.s4 1966171168
  %v145 = vunpack.c.0.s8 %v144
  %v146 = vlaneseq
  %v147 = vshrl.u32 %v146, 7
  %v148 = vsub.s32 %v145, %v147
  %v149 = vrot.slane %v141, %v148
  %v150 = vcombine.high %v149, %v149
  %v152 = vunpack.c.l.s4 1966171168
  %v153 = vunpack.c.0.s8 %v152
  %v154 = vlaneseq
  %v155 = vshrl.u32 %v154, 7
  %v156 = vsub.s32 %v153, %v155
  %v157 = vrot.slane %v149, %v156
  %v159 = vunpack.c.l.s4 1966171168
  %v160 = vunpack.c.0.s8 %v159
  %v161 = vlaneseq
  %v162 = vshrl.u32 %v161, 7
  %v163 = vsub.s32 %v160, %v162
  %v164 = vrot.slane %v150, %v163
  %v165 = vlaneseq
  %v166 = vshrl.u32 %v165, 7
  %v167 = vsub.s32 0, %v166
  %v168 = vrot.slane %v157, %v167
  %v169 = vlaneseq
  %v170 = vshrl.u32 %v169, 7
  %v171 = vsub.s32 0, %v170
  %v172 = vrot.slane %v164, %v171
  %173 = vrot.lane.b32.xlu0 %v168, 32
  %v174 = vpop.permute.xlu0 %173
  %175 = vrot.lane.b32.xlu0 %v172, 32
  %v176 = vpop.permute.xlu0 %175
  %vm179 = vcmask 253952
  %180 = vst.msk [vmem:[%s4] sm:$0x1] %vm179, %v174
  %181 = vst.msk [vmem:[%s4 + $0x8] sm:$0x1] %vm179, %v176
  %182 = vrot.lane.b32.xlu0 %v141, 32
  %v183 = vpop.permute.xlu0 %182
  %v184 = vsel %vm42, %v183, 0
  %186 = vmatprep.subr.mxu0 0.0
  %187 = vmatpush1.msra.mxu0 %v25
  %188 = vmatprep.subr.mxu0 0.0
  %189 = vmatpush1.msra.mxu0 %v26
  %190 = vmatprep.subr.mxu0 0.0
  %191 = vmatpush1.msra.mxu0 %v27
  %192 = vmatprep.subr.mxu0 0.0
  %193 = vmatpush1.msra.mxu0 %v28
  %194 = vmatprep.subr.mxu0 0.0
  %195 = vmatpush1.msra.mxu0 0.0
  %196 = vmatprep.subr.mxu0 0.0
  %197 = vmatpush1.msra.mxu0 0.0
  %198 = vmatprep.subr.mxu0 0.0
  %199 = vmatpush1.msra.mxu0 0.0
  %200 = vmatprep.subr.mxu0 0.0
  %201 = vmatpush1.msra.mxu0 0.0
  %202 = vmatprep.subr.mxu0 0.0
  %203 = vmatpush1.msra.mxu0 0.0
  %204 = vmatprep.subr.mxu0 0.0
  %205 = vmatpush1.msra.mxu0 0.0
  %206 = vmatprep.subr.mxu0 0.0
  %207 = vmatpush1.msra.mxu0 0.0
  %208 = vmatprep.subr.mxu0 0.0
  %209 = vmatpush1.msra.mxu0 0.0
  %210 = vmatprep.subr.mxu0 0.0
  %211 = vmatpush1.msra.mxu0 0.0
  %212 = vmatprep.subr.mxu0 0.0
  %213 = vmatpush1.msra.mxu0 0.0
  %214 = vmatprep.subr.mxu0 0.0
  %215 = vmatpush1.msra.mxu0 0.0
  %216 = vmatprep.subr.mxu0 0.0
  %217 = vmatpush1.msra.mxu0 0.0
  %218 = vmatprep.subr.mxu0 0.0
  %219 = vmatpush1.msra.mxu0 0.0
  %220 = vmatprep.subr.mxu0 0.0
  %221 = vmatpush1.msra.mxu0 0.0
  %222 = vmatprep.subr.mxu0 0.0
  %223 = vmatpush1.msra.mxu0 0.0
  %224 = vmatprep.subr.mxu0 0.0
  %225 = vmatpush1.msra.mxu0 0.0
  %226 = vmatprep.subr.mxu0 0.0
  %227 = vmatpush1.msra.mxu0 0.0
  %228 = vmatprep.subr.mxu0 0.0
  %229 = vmatpush1.msra.mxu0 0.0
  %230 = vmatprep.subr.mxu0 0.0
  %231 = vmatpush1.msra.mxu0 0.0
  %232 = vmatprep.subr.mxu0 0.0
  %233 = vmatpush1.msra.mxu0 0.0
  %234 = vmatprep.subr.mxu0 0.0
  %235 = vmatpush1.msra.mxu0 0.0
  %236 = vmatprep.subr.mxu0 0.0
  %237 = vmatpush1.msra.mxu0 0.0
  %238 = vmatprep.subr.mxu0 0.0
  %239 = vmatpush1.msra.mxu0 0.0
  %240 = vmatprep.subr.mxu0 0.0
  %241 = vmatpush1.msra.mxu0 0.0
  %242 = vmatprep.subr.mxu0 0.0
  %243 = vmatpush1.msra.mxu0 0.0
  %244 = vmatprep.subr.mxu0 0.0
  %245 = vmatpush1.msra.mxu0 0.0
  %246 = vmatprep.subr.mxu0 0.0
  %247 = vmatpush1.msra.mxu0 0.0
  %248 = vmatprep.subr.mxu0 0.0
  %249 = vmatpush1.msra.mxu0 0.0
  %250 = vmatprep.mubr.f32.mxu0 0.0
  %251 = vmatmul.mubr.f32.gmra.mrb[0].mxu0 %v184
  %v252 = vpop.f32.mrb[0].mxu0
  %v253 = vadd.f32 %v34, %v252
  %v254 = vpop.f32.mrb[0].mxu0
  %255 = vdwg.mxu0
  %v258 = vunpack.c.l.s4 1966171168
  %v259 = vunpack.c.0.s8 %v258
  %v260 = vlaneseq
  %v261 = vshrl.u32 %v260, 7
  %v262 = vsub.s32 %v259, %v261
  %v263 = vrot.slane %v253, %v262
  %v264 = vcombine.high %v263, %v263
  %v266 = vunpack.c.l.s4 1966171168
  %v267 = vunpack.c.0.s8 %v266
  %v268 = vlaneseq
  %v269 = vshrl.u32 %v268, 7
  %v270 = vsub.s32 %v267, %v269
  %v271 = vrot.slane %v263, %v270
  %v273 = vunpack.c.l.s4 1966171168
  %v274 = vunpack.c.0.s8 %v273
  %v275 = vlaneseq
  %v276 = vshrl.u32 %v275, 7
  %v277 = vsub.s32 %v274, %v276
  %v278 = vrot.slane %v264, %v277
  %281 = vst.msk [vmem:[%s5] sm:$0x1] %vm179, %v271
  %282 = vst.msk [vmem:[%s5 + $0x8] sm:$0x1] %vm179, %v278
  %s283 = scalar_lea.vmem %s0, 2
  %v284 = vld [vmem:[%s283] sm:$0x3]
  %285 = vmatprep.subr.mxu0 0.0
  %286 = vmatpush1.msra.mxu0 %v21
  %287 = vmatprep.subr.mxu0 0.0
  %288 = vmatpush1.msra.mxu0 %v22
  %289 = vmatprep.subr.mxu0 0.0
  %290 = vmatpush1.msra.mxu0 %v23
  %291 = vmatprep.subr.mxu0 0.0
  %292 = vmatpush1.msra.mxu0 %v24
  %293 = vmatprep.subr.mxu0 0.0
  %294 = vmatpush1.msra.mxu0 0.0
  %295 = vmatprep.subr.mxu0 0.0
  %296 = vmatpush1.msra.mxu0 0.0
  %297 = vmatprep.subr.mxu0 0.0
  %298 = vmatpush1.msra.mxu0 0.0
  %299 = vmatprep.subr.mxu0 0.0
  %300 = vmatpush1.msra.mxu0 0.0
  %301 = vmatprep.subr.mxu0 0.0
  %302 = vmatpush1.msra.mxu0 0.0
  %303 = vmatprep.subr.mxu0 0.0
  %304 = vmatpush1.msra.mxu0 0.0
  %305 = vmatprep.subr.mxu0 0.0
  %306 = vmatpush1.msra.mxu0 0.0
  %307 = vmatprep.subr.mxu0 0.0
  %308 = vmatpush1.msra.mxu0 0.0
  %309 = vmatprep.subr.mxu0 0.0
  %310 = vmatpush1.msra.mxu0 0.0
  %311 = vmatprep.subr.mxu0 0.0
  %312 = vmatpush1.msra.mxu0 0.0
  %313 = vmatprep.subr.mxu0 0.0
  %314 = vmatpush1.msra.mxu0 0.0
  %315 = vmatprep.subr.mxu0 0.0
  %316 = vmatpush1.msra.mxu0 0.0
  %317 = vmatprep.subr.mxu0 0.0
  %318 = vmatpush1.msra.mxu0 0.0
  %319 = vmatprep.subr.mxu0 0.0
  %320 = vmatpush1.msra.mxu0 0.0
  %321 = vmatprep.subr.mxu0 0.0
  %322 = vmatpush1.msra.mxu0 0.0
  %323 = vmatprep.subr.mxu0 0.0
  %324 = vmatpush1.msra.mxu0 0.0
  %325 = vmatprep.subr.mxu0 0.0
  %326 = vmatpush1.msra.mxu0 0.0
  %327 = vmatprep.subr.mxu0 0.0
  %328 = vmatpush1.msra.mxu0 0.0
  %329 = vmatprep.subr.mxu0 0.0
  %330 = vmatpush1.msra.mxu0 0.0
  %331 = vmatprep.subr.mxu0 0.0
  %332 = vmatpush1.msra.mxu0 0.0
  %333 = vmatprep.subr.mxu0 0.0
  %334 = vmatpush1.msra.mxu0 0.0
  %335 = vmatprep.subr.mxu0 0.0
  %336 = vmatpush1.msra.mxu0 0.0
  %337 = vmatprep.subr.mxu0 0.0
  %338 = vmatpush1.msra.mxu0 0.0
  %339 = vmatprep.subr.mxu0 0.0
  %340 = vmatpush1.msra.mxu0 0.0
  %341 = vmatprep.subr.mxu0 0.0
  %342 = vmatpush1.msra.mxu0 0.0
  %343 = vmatprep.subr.mxu0 0.0
  %344 = vmatpush1.msra.mxu0 0.0
  %345 = vmatprep.subr.mxu0 0.0
  %346 = vmatpush1.msra.mxu0 0.0
  %347 = vmatprep.subr.mxu0 0.0
  %348 = vmatpush1.msra.mxu0 0.0
  %349 = vmatprep.mubr.f32.mxu0 0.0
  %350 = vmatmul.mubr.f32.gmra.mrb[0].mxu0 %v184
  %v351 = vpop.f32.mrb[0].mxu0
  %v352 = vadd.f32 0.0, %v351
  %v353 = vpop.f32.mrb[0].mxu0
  %354 = vdwg.mxu0
  %v355 = vadd.f32 %v284, %v352
  %v356 = vtanh.pop %v355
  %v357 = vxor.u32 %v355, 2147483648
  %v358 = vmul.f32 %v357, 1.442695
  %v359 = vpow.pop %v358
  %v360 = vadd.f32 %v359, 1.0
  %v361 = vrcp.pop %v360
  %v362 = vmul.f32 1.0, %v361
  %v363 = vsel %vm40, %v356, %v362
  %v364 = vmul.f32 %v363, %v135
  %366 = vrot.lane.b32.xlu0 %v363, 64
  %v367 = vpop.permute.xlu0 %366
  %v369 = vmul.f32 %v363, %v367
  %371 = vrot.lane.b32.xlu0 %v369, 32
  %v372 = vpop.permute.xlu0 %371
  %v374 = vadd.f32 %v364, %v372
  %v375 = vtanh.pop %v374
  %377 = vrot.lane.b32.xlu0 %v375, 64
  %v378 = vpop.permute.xlu0 %377
  %v380 = vmul.f32 %v363, %v378
  %v383 = vunpack.c.l.s4 1966171168
  %v384 = vunpack.c.0.s8 %v383
  %v385 = vlaneseq
  %v386 = vshrl.u32 %v385, 7
  %v387 = vsub.s32 %v384, %v386
  %v388 = vrot.slane %v380, %v387
  %v389 = vcombine.high %v388, %v388
  %v391 = vunpack.c.l.s4 1966171168
  %v392 = vunpack.c.0.s8 %v391
  %v393 = vlaneseq
  %v394 = vshrl.u32 %v393, 7
  %v395 = vsub.s32 %v392, %v394
  %v396 = vrot.slane %v388, %v395
  %v398 = vunpack.c.l.s4 1966171168
  %v399 = vunpack.c.0.s8 %v398
  %v400 = vlaneseq
  %v401 = vshrl.u32 %v400, 7
  %v402 = vsub.s32 %v399, %v401
  %v403 = vrot.slane %v389, %v402
  %v404 = vlaneseq
  %v405 = vshrl.u32 %v404, 7
  %v406 = vsub.s32 0, %v405
  %v407 = vrot.slane %v396, %v406
  %v408 = vlaneseq
  %v409 = vshrl.u32 %v408, 7
  %v410 = vsub.s32 0, %v409
  %v411 = vrot.slane %v403, %v410
  %412 = vrot.lane.b32.xlu0 %v407, 32
  %v413 = vpop.permute.xlu0 %412
  %414 = vrot.lane.b32.xlu0 %v411, 32
  %v415 = vpop.permute.xlu0 %414
  %418 = vst.msk [vmem:[%s4 + $0x1] sm:$0x1] %vm179, %v413
  %419 = vst.msk [vmem:[%s4 + $0x9] sm:$0x1] %vm179, %v415
  %420 = vrot.lane.b32.xlu0 %v380, 32
  %v421 = vpop.permute.xlu0 %420
  %v422 = vsel %vm42, %v421, 0
  %424 = vmatprep.subr.mxu0 0.0
  %425 = vmatpush1.msra.mxu0 %v25
  %426 = vmatprep.subr.mxu0 0.0
  %427 = vmatpush1.msra.mxu0 %v26
  %428 = vmatprep.subr.mxu0 0.0
  %429 = vmatpush1.msra.mxu0 %v27
  %430 = vmatprep.subr.mxu0 0.0
  %431 = vmatpush1.msra.mxu0 %v28
  %432 = vmatprep.subr.mxu0 0.0
  %433 = vmatpush1.msra.mxu0 0.0
  %434 = vmatprep.subr.mxu0 0.0
  %435 = vmatpush1.msra.mxu0 0.0
  %436 = vmatprep.subr.mxu0 0.0
  %437 = vmatpush1.msra.mxu0 0.0
  %438 = vmatprep.subr.mxu0 0.0
  %439 = vmatpush1.msra.mxu0 0.0
  %440 = vmatprep.subr.mxu0 0.0
  %441 = vmatpush1.msra.mxu0 0.0
  %442 = vmatprep.subr.mxu0 0.0
  %443 = vmatpush1.msra.mxu0 0.0
  %444 = vmatprep.subr.mxu0 0.0
  %445 = vmatpush1.msra.mxu0 0.0
  %446 = vmatprep.subr.mxu0 0.0
  %447 = vmatpush1.msra.mxu0 0.0
  %448 = vmatprep.subr.mxu0 0.0
  %449 = vmatpush1.msra.mxu0 0.0
  %450 = vmatprep.subr.mxu0 0.0
  %451 = vmatpush1.msra.mxu0 0.0
  %452 = vmatprep.subr.mxu0 0.0
  %453 = vmatpush1.msra.mxu0 0.0
  %454 = vmatprep.subr.mxu0 0.0
  %455 = vmatpush1.msra.mxu0 0.0
  %456 = vmatprep.subr.mxu0 0.0
  %457 = vmatpush1.msra.mxu0 0.0
  %458 = vmatprep.subr.mxu0 0.0
  %459 = vmatpush1.msra.mxu0 0.0
  %460 = vmatprep.subr.mxu0 0.0
  %461 = vmatpush1.msra.mxu0 0.0
  %462 = vmatprep.subr.mxu0 0.0
  %463 = vmatpush1.msra.mxu0 0.0
  %464 = vmatprep.subr.mxu0 0.0
  %465 = vmatpush1.msra.mxu0 0.0
  %466 = vmatprep.subr.mxu0 0.0
  %467 = vmatpush1.msra.mxu0 0.0
  %468 = vmatprep.subr.mxu0 0.0
  %469 = vmatpush1.msra.mxu0 0.0
  %470 = vmatprep.subr.mxu0 0.0
  %471 = vmatpush1.msra.mxu0 0.0
  %472 = vmatprep.subr.mxu0 0.0
  %473 = vmatpush1.msra.mxu0 0.0
  %474 = vmatprep.subr.mxu0 0.0
  %475 = vmatpush1.msra.mxu0 0.0
  %476 = vmatprep.subr.mxu0 0.0
  %477 = vmatpush1.msra.mxu0 0.0
  %478 = vmatprep.subr.mxu0 0.0
  %479 = vmatpush1.msra.mxu0 0.0
  %480 = vmatprep.subr.mxu0 0.0
  %481 = vmatpush1.msra.mxu0 0.0
  %482 = vmatprep.subr.mxu0 0.0
  %483 = vmatpush1.msra.mxu0 0.0
  %484 = vmatprep.subr.mxu0 0.0
  %485 = vmatpush1.msra.mxu0 0.0
  %486 = vmatprep.subr.mxu0 0.0
  %487 = vmatpush1.msra.mxu0 0.0
  %488 = vmatprep.mubr.f32.mxu0 0.0
  %489 = vmatmul.mubr.f32.gmra.mrb[0].mxu0 %v422
  %v490 = vpop.f32.mrb[0].mxu0
  %v491 = vadd.f32 %v34, %v490
  %v492 = vpop.f32.mrb[0].mxu0
  %493 = vdwg.mxu0
  %v496 = vunpack.c.l.s4 1966171168
  %v497 = vunpack.c.0.s8 %v496
  %v498 = vlaneseq
  %v499 = vshrl.u32 %v498, 7
  %v500 = vsub.s32 %v497, %v499
  %v501 = vrot.slane %v491, %v500
  %v502 = vcombine.high %v501, %v501
  %v504 = vunpack.c.l.s4 1966171168
  %v505 = vunpack.c.0.s8 %v504
  %v506 = vlaneseq
  %v507 = vshrl.u32 %v506, 7
  %v508 = vsub.s32 %v505, %v507
  %v509 = vrot.slane %v501, %v508
  %v511 = vunpack.c.l.s4 1966171168
  %v512 = vunpack.c.0.s8 %v511
  %v513 = vlaneseq
  %v514 = vshrl.u32 %v513, 7
  %v515 = vsub.s32 %v512, %v514
  %v516 = vrot.slane %v502, %v515
  %519 = vst.msk [vmem:[%s5 + $0x1] sm:$0x1] %vm179, %v509
  %520 = vst.msk [vmem:[%s5 + $0x9] sm:$0x1] %vm179, %v516
  %s521 = scalar_lea.vmem %s0, 4
  %v522 = vld [vmem:[%s521] sm:$0x3]
  %523 = vmatprep.subr.mxu0 0.0
  %524 = vmatpush1.msra.mxu0 %v21
  %525 = vmatprep.subr.mxu0 0.0
  %526 = vmatpush1.msra.mxu0 %v22
  %527 = vmatprep.subr.mxu0 0.0
  %528 = vmatpush1.msra.mxu0 %v23
  %529 = vmatprep.subr.mxu0 0.0
  %530 = vmatpush1.msra.mxu0 %v24
  %531 = vmatprep.subr.mxu0 0.0
  %532 = vmatpush1.msra.mxu0 0.0
  %533 = vmatprep.subr.mxu0 0.0
  %534 = vmatpush1.msra.mxu0 0.0
  %535 = vmatprep.subr.mxu0 0.0
  %536 = vmatpush1.msra.mxu0 0.0
  %537 = vmatprep.subr.mxu0 0.0
  %538 = vmatpush1.msra.mxu0 0.0
  %539 = vmatprep.subr.mxu0 0.0
  %540 = vmatpush1.msra.mxu0 0.0
  %541 = vmatprep.subr.mxu0 0.0
  %542 = vmatpush1.msra.mxu0 0.0
  %543 = vmatprep.subr.mxu0 0.0
  %544 = vmatpush1.msra.mxu0 0.0
  %545 = vmatprep.subr.mxu0 0.0
  %546 = vmatpush1.msra.mxu0 0.0
  %547 = vmatprep.subr.mxu0 0.0
  %548 = vmatpush1.msra.mxu0 0.0
  %549 = vmatprep.subr.mxu0 0.0
  %550 = vmatpush1.msra.mxu0 0.0
  %551 = vmatprep.subr.mxu0 0.0
  %552 = vmatpush1.msra.mxu0 0.0
  %553 = vmatprep.subr.mxu0 0.0
  %554 = vmatpush1.msra.mxu0 0.0
  %555 = vmatprep.subr.mxu0 0.0
  %556 = vmatpush1.msra.mxu0 0.0
  %557 = vmatprep.subr.mxu0 0.0
  %558 = vmatpush1.msra.mxu0 0.0
  %559 = vmatprep.subr.mxu0 0.0
  %560 = vmatpush1.msra.mxu0 0.0
  %561 = vmatprep.subr.mxu0 0.0
  %562 = vmatpush1.msra.mxu0 0.0
  %563 = vmatprep.subr.mxu0 0.0
  %564 = vmatpush1.msra.mxu0 0.0
  %565 = vmatprep.subr.mxu0 0.0
  %566 = vmatpush1.msra.mxu0 0.0
  %567 = vmatprep.subr.mxu0 0.0
  %568 = vmatpush1.msra.mxu0 0.0
  %569 = vmatprep.subr.mxu0 0.0
  %570 = vmatpush1.msra.mxu0 0.0
  %571 = vmatprep.subr.mxu0 0.0
  %572 = vmatpush1.msra.mxu0 0.0
  %573 = vmatprep.subr.mxu0 0.0
  %574 = vmatpush1.msra.mxu0 0.0
  %575 = vmatprep.subr.mxu0 0.0
  %576 = vmatpush1.msra.mxu0 0.0
  %577 = vmatprep.subr.mxu0 0.0
  %578 = vmatpush1.msra.mxu0 0.0
  %579 = vmatprep.subr.mxu0 0.0
  %580 = vmatpush1.msra.mxu0 0.0
  %581 = vmatprep.subr.mxu0 0.0
  %582 = vmatpush1.msra.mxu0 0.0
  %583 = vmatprep.subr.mxu0 0.0
  %584 = vmatpush1.msra.mxu0 0.0
  %585 = vmatprep.subr.mxu0 0.0
  %586 = vmatpush1.msra.mxu0 0.0
  %587 = vmatprep.mubr.f32.mxu0 0.0
  %588 = vmatmul.mubr.f32.gmra.mrb[0].mxu0 %v422
  %v589 = vpop.f32.mrb[0].mxu0
  %v590 = vadd.f32 0.0, %v589
  %v591 = vpop.f32.mrb[0].mxu0
  %592 = vdwg.mxu0
  %v593 = vadd.f32 %v522, %v590
  %v594 = vtanh.pop %v593
  %v595 = vxor.u32 %v593, 2147483648
  %v596 = vmul.f32 %v595, 1.442695
  %v597 = vpow.pop %v596
  %v598 = vadd.f32 %v597, 1.0
  %v599 = vrcp.pop %v598
  %v600 = vmul.f32 1.0, %v599
  %v601 = vsel %vm40, %v594, %v600
  %v602 = vmul.f32 %v601, %v374
  %604 = vrot.lane.b32.xlu0 %v601, 64
  %v605 = vpop.permute.xlu0 %604
  %v607 = vmul.f32 %v601, %v605
  %609 = vrot.lane.b32.xlu0 %v607, 32
  %v610 = vpop.permute.xlu0 %609
  %v612 = vadd.f32 %v602, %v610
  %v613 = vtanh.pop %v612
  %615 = vrot.lane.b32.xlu0 %v613, 64
  %v616 = vpop.permute.xlu0 %615
  %v618 = vmul.f32 %v601, %v616
  %v621 = vunpack.c.l.s4 1966171168
  %v622 = vunpack.c.0.s8 %v621
  %v623 = vlaneseq
  %v624 = vshrl.u32 %v623, 7
  %v625 = vsub.s32 %v622, %v624
  %v626 = vrot.slane %v618, %v625
  %v627 = vcombine.high %v626, %v626
  %v629 = vunpack.c.l.s4 1966171168
  %v630 = vunpack.c.0.s8 %v629
  %v631 = vlaneseq
  %v632 = vshrl.u32 %v631, 7
  %v633 = vsub.s32 %v630, %v632
  %v634 = vrot.slane %v626, %v633
  %v636 = vunpack.c.l.s4 1966171168
  %v637 = vunpack.c.0.s8 %v636
  %v638 = vlaneseq
  %v639 = vshrl.u32 %v638, 7
  %v640 = vsub.s32 %v637, %v639
  %v641 = vrot.slane %v627, %v640
  %v642 = vlaneseq
  %v643 = vshrl.u32 %v642, 7
  %v644 = vsub.s32 0, %v643
  %v645 = vrot.slane %v634, %v644
  %v646 = vlaneseq
  %v647 = vshrl.u32 %v646, 7
  %v648 = vsub.s32 0, %v647
  %v649 = vrot.slane %v641, %v648
  %650 = vrot.lane.b32.xlu0 %v645, 32
  %v651 = vpop.permute.xlu0 %650
  %652 = vrot.lane.b32.xlu0 %v649, 32
  %v653 = vpop.permute.xlu0 %652
  %656 = vst.msk [vmem:[%s4 + $0x2] sm:$0x1] %vm179, %v651
  %657 = vst.msk [vmem:[%s4 + $0xa] sm:$0x1] %vm179, %v653
  %658 = vrot.lane.b32.xlu0 %v618, 32
  %v659 = vpop.permute.xlu0 %658
  %v660 = vsel %vm42, %v659, 0
  %662 = vmatprep.subr.mxu0 0.0
  %663 = vmatpush1.msra.mxu0 %v25
  %664 = vmatprep.subr.mxu0 0.0
  %665 = vmatpush1.msra.mxu0 %v26
  %666 = vmatprep.subr.mxu0 0.0
  %667 = vmatpush1.msra.mxu0 %v27
  %668 = vmatprep.subr.mxu0 0.0
  %669 = vmatpush1.msra.mxu0 %v28
  %670 = vmatprep.subr.mxu0 0.0
  %671 = vmatpush1.msra.mxu0 0.0
  %672 = vmatprep.subr.mxu0 0.0
  %673 = vmatpush1.msra.mxu0 0.0
  %674 = vmatprep.subr.mxu0 0.0
  %675 = vmatpush1.msra.mxu0 0.0
  %676 = vmatprep.subr.mxu0 0.0
  %677 = vmatpush1.msra.mxu0 0.0
  %678 = vmatprep.subr.mxu0 0.0
  %679 = vmatpush1.msra.mxu0 0.0
  %680 = vmatprep.subr.mxu0 0.0
  %681 = vmatpush1.msra.mxu0 0.0
  %682 = vmatprep.subr.mxu0 0.0
  %683 = vmatpush1.msra.mxu0 0.0
  %684 = vmatprep.subr.mxu0 0.0
  %685 = vmatpush1.msra.mxu0 0.0
  %686 = vmatprep.subr.mxu0 0.0
  %687 = vmatpush1.msra.mxu0 0.0
  %688 = vmatprep.subr.mxu0 0.0
  %689 = vmatpush1.msra.mxu0 0.0
  %690 = vmatprep.subr.mxu0 0.0
  %691 = vmatpush1.msra.mxu0 0.0
  %692 = vmatprep.subr.mxu0 0.0
  %693 = vmatpush1.msra.mxu0 0.0
  %694 = vmatprep.subr.mxu0 0.0
  %695 = vmatpush1.msra.mxu0 0.0
  %696 = vmatprep.subr.mxu0 0.0
  %697 = vmatpush1.msra.mxu0 0.0
  %698 = vmatprep.subr.mxu0 0.0
  %699 = vmatpush1.msra.mxu0 0.0
  %700 = vmatprep.subr.mxu0 0.0
  %701 = vmatpush1.msra.mxu0 0.0
  %702 = vmatprep.subr.mxu0 0.0
  %703 = vmatpush1.msra.mxu0 0.0
  %704 = vmatprep.subr.mxu0 0.0
  %705 = vmatpush1.msra.mxu0 0.0
  %706 = vmatprep.subr.mxu0 0.0
  %707 = vmatpush1.msra.mxu0 0.0
  %708 = vmatprep.subr.mxu0 0.0
  %709 = vmatpush1.msra.mxu0 0.0
  %710 = vmatprep.subr.mxu0 0.0
  %711 = vmatpush1.msra.mxu0 0.0
  %712 = vmatprep.subr.mxu0 0.0
  %713 = vmatpush1.msra.mxu0 0.0
  %714 = vmatprep.subr.mxu0 0.0
  %715 = vmatpush1.msra.mxu0 0.0
  %716 = vmatprep.subr.mxu0 0.0
  %717 = vmatpush1.msra.mxu0 0.0
  %718 = vmatprep.subr.mxu0 0.0
  %719 = vmatpush1.msra.mxu0 0.0
  %720 = vmatprep.subr.mxu0 0.0
  %721 = vmatpush1.msra.mxu0 0.0
  %722 = vmatprep.subr.mxu0 0.0
  %723 = vmatpush1.msra.mxu0 0.0
  %724 = vmatprep.subr.mxu0 0.0
  %725 = vmatpush1.msra.mxu0 0.0
  %726 = vmatprep.mubr.f32.mxu0 0.0
  %727 = vmatmul.mubr.f32.gmra.mrb[0].mxu0 %v660
  %v728 = vpop.f32.mrb[0].mxu0
  %v729 = vadd.f32 %v34, %v728
  %v730 = vpop.f32.mrb[0].mxu0
  %731 = vdwg.mxu0
  %v734 = vunpack.c.l.s4 1966171168
  %v735 = vunpack.c.0.s8 %v734
  %v736 = vlaneseq
  %v737 = vshrl.u32 %v736, 7
  %v738 = vsub.s32 %v735, %v737
  %v739 = vrot.slane %v729, %v738
  %v740 = vcombine.high %v739, %v739
  %v742 = vunpack.c.l.s4 1966171168
  %v743 = vunpack.c.0.s8 %v742
  %v744 = vlaneseq
  %v745 = vshrl.u32 %v744, 7
  %v746 = vsub.s32 %v743, %v745
  %v747 = vrot.slane %v739, %v746
  %v749 = vunpack.c.l.s4 1966171168
  %v750 = vunpack.c.0.s8 %v749
  %v751 = vlaneseq
  %v752 = vshrl.u32 %v751, 7
  %v753 = vsub.s32 %v750, %v752
  %v754 = vrot.slane %v740, %v753
  %757 = vst.msk [vmem:[%s5 + $0x2] sm:$0x1] %vm179, %v747
  %758 = vst.msk [vmem:[%s5 + $0xa] sm:$0x1] %vm179, %v754
  %s759 = scalar_lea.vmem %s0, 6
  %v760 = vld [vmem:[%s759] sm:$0x3]
  %761 = vmatprep.subr.mxu0 0.0
  %762 = vmatpush1.msra.mxu0 %v21
  %763 = vmatprep.subr.mxu0 0.0
  %764 = vmatpush1.msra.mxu0 %v22
  %765 = vmatprep.subr.mxu0 0.0
  %766 = vmatpush1.msra.mxu0 %v23
  %767 = vmatprep.subr.mxu0 0.0
  %768 = vmatpush1.msra.mxu0 %v24
  %769 = vmatprep.subr.mxu0 0.0
  %770 = vmatpush1.msra.mxu0 0.0
  %771 = vmatprep.subr.mxu0 0.0
  %772 = vmatpush1.msra.mxu0 0.0
  %773 = vmatprep.subr.mxu0 0.0
  %774 = vmatpush1.msra.mxu0 0.0
  %775 = vmatprep.subr.mxu0 0.0
  %776 = vmatpush1.msra.mxu0 0.0
  %777 = vmatprep.subr.mxu0 0.0
  %778 = vmatpush1.msra.mxu0 0.0
  %779 = vmatprep.subr.mxu0 0.0
  %780 = vmatpush1.msra.mxu0 0.0
  %781 = vmatprep.subr.mxu0 0.0
  %782 = vmatpush1.msra.mxu0 0.0
  %783 = vmatprep.subr.mxu0 0.0
  %784 = vmatpush1.msra.mxu0 0.0
  %785 = vmatprep.subr.mxu0 0.0
  %786 = vmatpush1.msra.mxu0 0.0
  %787 = vmatprep.subr.mxu0 0.0
  %788 = vmatpush1.msra.mxu0 0.0
  %789 = vmatprep.subr.mxu0 0.0
  %790 = vmatpush1.msra.mxu0 0.0
  %791 = vmatprep.subr.mxu0 0.0
  %792 = vmatpush1.msra.mxu0 0.0
  %793 = vmatprep.subr.mxu0 0.0
  %794 = vmatpush1.msra.mxu0 0.0
  %795 = vmatprep.subr.mxu0 0.0
  %796 = vmatpush1.msra.mxu0 0.0
  %797 = vmatprep.subr.mxu0 0.0
  %798 = vmatpush1.msra.mxu0 0.0
  %799 = vmatprep.subr.mxu0 0.0
  %800 = vmatpush1.msra.mxu0 0.0
  %801 = vmatprep.subr.mxu0 0.0
  %802 = vmatpush1.msra.mxu0 0.0
  %803 = vmatprep.subr.mxu0 0.0
  %804 = vmatpush1.msra.mxu0 0.0
  %805 = vmatprep.subr.mxu0 0.0
  %806 = vmatpush1.msra.mxu0 0.0
  %807 = vmatprep.subr.mxu0 0.0
  %808 = vmatpush1.msra.mxu0 0.0
  %809 = vmatprep.subr.mxu0 0.0
  %810 = vmatpush1.msra.mxu0 0.0
  %811 = vmatprep.subr.mxu0 0.0
  %812 = vmatpush1.msra.mxu0 0.0
  %813 = vmatprep.subr.mxu0 0.0
  %814 = vmatpush1.msra.mxu0 0.0
  %815 = vmatprep.subr.mxu0 0.0
  %816 = vmatpush1.msra.mxu0 0.0
  %817 = vmatprep.subr.mxu0 0.0
  %818 = vmatpush1.msra.mxu0 0.0
  %819 = vmatprep.subr.mxu0 0.0
  %820 = vmatpush1.msra.mxu0 0.0
  %821 = vmatprep.subr.mxu0 0.0
  %822 = vmatpush1.msra.mxu0 0.0
  %823 = vmatprep.subr.mxu0 0.0
  %824 = vmatpush1.msra.mxu0 0.0
  %825 = vmatprep.mubr.f32.mxu0 0.0
  %826 = vmatmul.mubr.f32.gmra.mrb[0].mxu0 %v660
  %v827 = vpop.f32.mrb[0].mxu0
  %v828 = vadd.f32 0.0, %v827
  %v829 = vpop.f32.mrb[0].mxu0
  %830 = vdwg.mxu0
  %v831 = vadd.f32 %v760, %v828
  %v832 = vtanh.pop %v831
  %v833 = vxor.u32 %v831, 2147483648
  %v834 = vmul.f32 %v833, 1.442695
  %v835 = vpow.pop %v834
  %v836 = vadd.f32 %v835, 1.0
  %v837 = vrcp.pop %v836
  %v838 = vmul.f32 1.0, %v837
  %v839 = vsel %vm40, %v832, %v838
  %v840 = vmul.f32 %v839, %v612
  %842 = vrot.lane.b32.xlu0 %v839, 64
  %v843 = vpop.permute.xlu0 %842
  %v845 = vmul.f32 %v839, %v843
  %847 = vrot.lane.b32.xlu0 %v845, 32
  %v848 = vpop.permute.xlu0 %847
  %v850 = vadd.f32 %v840, %v848
  %v851 = vtanh.pop %v850
  %853 = vrot.lane.b32.xlu0 %v851, 64
  %v854 = vpop.permute.xlu0 %853
  %v856 = vmul.f32 %v839, %v854
  %v859 = vunpack.c.l.s4 1966171168
  %v860 = vunpack.c.0.s8 %v859
  %v861 = vlaneseq
  %v862 = vshrl.u32 %v861, 7
  %v863 = vsub.s32 %v860, %v862
  %v864 = vrot.slane %v856, %v863
  %v865 = vcombine.high %v864, %v864
  %v867 = vunpack.c.l.s4 1966171168
  %v868 = vunpack.c.0.s8 %v867
  %v869 = vlaneseq
  %v870 = vshrl.u32 %v869, 7
  %v871 = vsub.s32 %v868, %v870
  %v872 = vrot.slane %v864, %v871
  %v874 = vunpack.c.l.s4 1966171168
  %v875 = vunpack.c.0.s8 %v874
  %v876 = vlaneseq
  %v877 = vshrl.u32 %v876, 7
  %v878 = vsub.s32 %v875, %v877
  %v879 = vrot.slane %v865, %v878
  %v880 = vlaneseq
  %v881 = vshrl.u32 %v880, 7
  %v882 = vsub.s32 0, %v881
  %v883 = vrot.slane %v872, %v882
  %v884 = vlaneseq
  %v885 = vshrl.u32 %v884, 7
  %v886 = vsub.s32 0, %v885
  %v887 = vrot.slane %v879, %v886
  %888 = vrot.lane.b32.xlu0 %v883, 32
  %v889 = vpop.permute.xlu0 %888
  %890 = vrot.lane.b32.xlu0 %v887, 32
  %v891 = vpop.permute.xlu0 %890
  %894 = vst.msk [vmem:[%s4 + $0x3] sm:$0x1] %vm179, %v889
  %895 = vst.msk [vmem:[%s4 + $0xb] sm:$0x1] %vm179, %v891
  %896 = vrot.lane.b32.xlu0 %v856, 32
  %v897 = vpop.permute.xlu0 %896
  %v898 = vsel %vm42, %v897, 0
  %900 = vmatprep.subr.mxu0 0.0
  %901 = vmatpush1.msra.mxu0 %v25
  %902 = vmatprep.subr.mxu0 0.0
  %903 = vmatpush1.msra.mxu0 %v26
  %904 = vmatprep.subr.mxu0 0.0
  %905 = vmatpush1.msra.mxu0 %v27
  %906 = vmatprep.subr.mxu0 0.0
  %907 = vmatpush1.msra.mxu0 %v28
  %908 = vmatprep.subr.mxu0 0.0
  %909 = vmatpush1.msra.mxu0 0.0
  %910 = vmatprep.subr.mxu0 0.0
  %911 = vmatpush1.msra.mxu0 0.0
  %912 = vmatprep.subr.mxu0 0.0
  %913 = vmatpush1.msra.mxu0 0.0
  %914 = vmatprep.subr.mxu0 0.0
  %915 = vmatpush1.msra.mxu0 0.0
  %916 = vmatprep.subr.mxu0 0.0
  %917 = vmatpush1.msra.mxu0 0.0
  %918 = vmatprep.subr.mxu0 0.0
  %919 = vmatpush1.msra.mxu0 0.0
  %920 = vmatprep.subr.mxu0 0.0
  %921 = vmatpush1.msra.mxu0 0.0
  %922 = vmatprep.subr.mxu0 0.0
  %923 = vmatpush1.msra.mxu0 0.0
  %924 = vmatprep.subr.mxu0 0.0
  %925 = vmatpush1.msra.mxu0 0.0
  %926 = vmatprep.subr.mxu0 0.0
  %927 = vmatpush1.msra.mxu0 0.0
  %928 = vmatprep.subr.mxu0 0.0
  %929 = vmatpush1.msra.mxu0 0.0
  %930 = vmatprep.subr.mxu0 0.0
  %931 = vmatpush1.msra.mxu0 0.0
  %932 = vmatprep.subr.mxu0 0.0
  %933 = vmatpush1.msra.mxu0 0.0
  %934 = vmatprep.subr.mxu0 0.0
  %935 = vmatpush1.msra.mxu0 0.0
  %936 = vmatprep.subr.mxu0 0.0
  %937 = vmatpush1.msra.mxu0 0.0
  %938 = vmatprep.subr.mxu0 0.0
  %939 = vmatpush1.msra.mxu0 0.0
  %940 = vmatprep.subr.mxu0 0.0
  %941 = vmatpush1.msra.mxu0 0.0
  %942 = vmatprep.subr.mxu0 0.0
  %943 = vmatpush1.msra.mxu0 0.0
  %944 = vmatprep.subr.mxu0 0.0
  %945 = vmatpush1.msra.mxu0 0.0
  %946 = vmatprep.subr.mxu0 0.0
  %947 = vmatpush1.msra.mxu0 0.0
  %948 = vmatprep.subr.mxu0 0.0
  %949 = vmatpush1.msra.mxu0 0.0
  %950 = vmatprep.subr.mxu0 0.0
  %951 = vmatpush1.msra.mxu0 0.0
  %952 = vmatprep.subr.mxu0 0.0
  %953 = vmatpush1.msra.mxu0 0.0
  %954 = vmatprep.subr.mxu0 0.0
  %955 = vmatpush1.msra.mxu0 0.0
  %956 = vmatprep.subr.mxu0 0.0
  %957 = vmatpush1.msra.mxu0 0.0
  %958 = vmatprep.subr.mxu0 0.0
  %959 = vmatpush1.msra.mxu0 0.0
  %960 = vmatprep.subr.mxu0 0.0
  %961 = vmatpush1.msra.mxu0 0.0
  %962 = vmatprep.subr.mxu0 0.0
  %963 = vmatpush1.msra.mxu0 0.0
  %964 = vmatprep.mubr.f32.mxu0 0.0
  %965 = vmatmul.mubr.f32.gmra.mrb[0].mxu0 %v898
  %v966 = vpop.f32.mrb[0].mxu0
  %v967 = vadd.f32 %v34, %v966
  %v968 = vpop.f32.mrb[0].mxu0
  %969 = vdwg.mxu0
  %v972 = vunpack.c.l.s4 1966171168
  %v973 = vunpack.c.0.s8 %v972
  %v974 = vlaneseq
  %v975 = vshrl.u32 %v974, 7
  %v976 = vsub.s32 %v973, %v975
  %v977 = vrot.slane %v967, %v976
  %v978 = vcombine.high %v977, %v977
  %v980 = vunpack.c.l.s4 1966171168
  %v981 = vunpack.c.0.s8 %v980
  %v982 = vlaneseq
  %v983 = vshrl.u32 %v982, 7
  %v984 = vsub.s32 %v981, %v983
  %v985 = vrot.slane %v977, %v984
  %v987 = vunpack.c.l.s4 1966171168
  %v988 = vunpack.c.0.s8 %v987
  %v989 = vlaneseq
  %v990 = vshrl.u32 %v989, 7
  %v991 = vsub.s32 %v988, %v990
  %v992 = vrot.slane %v978, %v991
  %995 = vst.msk [vmem:[%s5 + $0x3] sm:$0x1] %vm179, %v985
  %996 = vst.msk [vmem:[%s5 + $0xb] sm:$0x1] %vm179, %v992
  %s997 = scalar_lea.vmem %s0, 8
  %v998 = vld [vmem:[%s997] sm:$0x3]
  %999 = vmatprep.subr.mxu0 0.0
  %1000 = vmatpush1.msra.mxu0 %v21
  %1001 = vmatprep.subr.mxu0 0.0
  %1002 = vmatpush1.msra.mxu0 %v22
  %1003 = vmatprep.subr.mxu0 0.0
  %1004 = vmatpush1.msra.mxu0 %v23
  %1005 = vmatprep.subr.mxu0 0.0
  %1006 = vmatpush1.msra.mxu0 %v24
  %1007 = vmatprep.subr.mxu0 0.0
  %1008 = vmatpush1.msra.mxu0 0.0
  %1009 = vmatprep.subr.mxu0 0.0
  %1010 = vmatpush1.msra.mxu0 0.0
  %1011 = vmatprep.subr.mxu0 0.0
  %1012 = vmatpush1.msra.mxu0 0.0
  %1013 = vmatprep.subr.mxu0 0.0
  %1014 = vmatpush1.msra.mxu0 0.0
  %1015 = vmatprep.subr.mxu0 0.0
  %1016 = vmatpush1.msra.mxu0 0.0
  %1017 = vmatprep.subr.mxu0 0.0
  %1018 = vmatpush1.msra.mxu0 0.0
  %1019 = vmatprep.subr.mxu0 0.0
  %1020 = vmatpush1.msra.mxu0 0.0
  %1021 = vmatprep.subr.mxu0 0.0
  %1022 = vmatpush1.msra.mxu0 0.0
  %1023 = vmatprep.subr.mxu0 0.0
  %1024 = vmatpush1.msra.mxu0 0.0
  %1025 = vmatprep.subr.mxu0 0.0
  %1026 = vmatpush1.msra.mxu0 0.0
  %1027 = vmatprep.subr.mxu0 0.0
  %1028 = vmatpush1.msra.mxu0 0.0
  %1029 = vmatprep.subr.mxu0 0.0
  %1030 = vmatpush1.msra.mxu0 0.0
  %1031 = vmatprep.subr.mxu0 0.0
  %1032 = vmatpush1.msra.mxu0 0.0
  %1033 = vmatprep.subr.mxu0 0.0
  %1034 = vmatpush1.msra.mxu0 0.0
  %1035 = vmatprep.subr.mxu0 0.0
  %1036 = vmatpush1.msra.mxu0 0.0
  %1037 = vmatprep.subr.mxu0 0.0
  %1038 = vmatpush1.msra.mxu0 0.0
  %1039 = vmatprep.subr.mxu0 0.0
  %1040 = vmatpush1.msra.mxu0 0.0
  %1041 = vmatprep.subr.mxu0 0.0
  %1042 = vmatpush1.msra.mxu0 0.0
  %1043 = vmatprep.subr.mxu0 0.0
  %1044 = vmatpush1.msra.mxu0 0.0
  %1045 = vmatprep.subr.mxu0 0.0
  %1046 = vmatpush1.msra.mxu0 0.0
  %1047 = vmatprep.subr.mxu0 0.0
  %1048 = vmatpush1.msra.mxu0 0.0
  %1049 = vmatprep.subr.mxu0 0.0
  %1050 = vmatpush1.msra.mxu0 0.0
  %1051 = vmatprep.subr.mxu0 0.0
  %1052 = vmatpush1.msra.mxu0 0.0
  %1053 = vmatprep.subr.mxu0 0.0
  %1054 = vmatpush1.msra.mxu0 0.0
  %1055 = vmatprep.subr.mxu0 0.0
  %1056 = vmatpush1.msra.mxu0 0.0
  %1057 = vmatprep.subr.mxu0 0.0
  %1058 = vmatpush1.msra.mxu0 0.0
  %1059 = vmatprep.subr.mxu0 0.0
  %1060 = vmatpush1.msra.mxu0 0.0
  %1061 = vmatprep.subr.mxu0 0.0
  %1062 = vmatpush1.msra.mxu0 0.0
  %1063 = vmatprep.mubr.f32.mxu0 0.0
  %1064 = vmatmul.mubr.f32.gmra.mrb[0].mxu0 %v898
  %v1065 = vpop.f32.mrb[0].mxu0
  %v1066 = vadd.f32 0.0, %v1065
  %v1067 = vpop.f32.mrb[0].mxu0
  %1068 = vdwg.mxu0
  %v1069 = vadd.f32 %v998, %v1066
  %v1070 = vtanh.pop %v1069
  %v1071 = vxor.u32 %v1069, 2147483648
  %v1072 = vmul.f32 %v1071, 1.442695
  %v1073 = vpow.pop %v1072
  %v1074 = vadd.f32 %v1073, 1.0
  %v1075 = vrcp.pop %v1074
  %v1076 = vmul.f32 1.0, %v1075
  %v1077 = vsel %vm40, %v1070, %v1076
  %v1078 = vmul.f32 %v1077, %v850
  %1080 = vrot.lane.b32.xlu0 %v1077, 64
  %v1081 = vpop.permute.xlu0 %1080
  %v1083 = vmul.f32 %v1077, %v1081
  %1085 = vrot.lane.b32.xlu0 %v1083, 32
  %v1086 = vpop.permute.xlu0 %1085
  %v1088 = vadd.f32 %v1078, %v1086
  %v1089 = vtanh.pop %v1088
  %1091 = vrot.lane.b32.xlu0 %v1089, 64
  %v1092 = vpop.permute.xlu0 %1091
  %v1094 = vmul.f32 %v1077, %v1092
  %v1097 = vunpack.c.l.s4 1966171168
  %v1098 = vunpack.c.0.s8 %v1097
  %v1099 = vlaneseq
  %v1100 = vshrl.u32 %v1099, 7
  %v1101 = vsub.s32 %v1098, %v1100
  %v1102 = vrot.slane %v1094, %v1101
  %v1103 = vcombine.high %v1102, %v1102
  %v1105 = vunpack.c.l.s4 1966171168
  %v1106 = vunpack.c.0.s8 %v1105
  %v1107 = vlaneseq
  %v1108 = vshrl.u32 %v1107, 7
  %v1109 = vsub.s32 %v1106, %v1108
  %v1110 = vrot.slane %v1102, %v1109
  %v1112 = vunpack.c.l.s4 1966171168
  %v1113 = vunpack.c.0.s8 %v1112
  %v1114 = vlaneseq
  %v1115 = vshrl.u32 %v1114, 7
  %v1116 = vsub.s32 %v1113, %v1115
  %v1117 = vrot.slane %v1103, %v1116
  %v1118 = vlaneseq
  %v1119 = vshrl.u32 %v1118, 7
  %v1120 = vsub.s32 0, %v1119
  %v1121 = vrot.slane %v1110, %v1120
  %v1122 = vlaneseq
  %v1123 = vshrl.u32 %v1122, 7
  %v1124 = vsub.s32 0, %v1123
  %v1125 = vrot.slane %v1117, %v1124
  %1126 = vrot.lane.b32.xlu0 %v1121, 32
  %v1127 = vpop.permute.xlu0 %1126
  %1128 = vrot.lane.b32.xlu0 %v1125, 32
  %v1129 = vpop.permute.xlu0 %1128
  %1132 = vst.msk [vmem:[%s4 + $0x4] sm:$0x1] %vm179, %v1127
  %1133 = vst.msk [vmem:[%s4 + $0xc] sm:$0x1] %vm179, %v1129
  %1134 = vrot.lane.b32.xlu0 %v1094, 32
  %v1135 = vpop.permute.xlu0 %1134
  %v1136 = vsel %vm42, %v1135, 0
  %1138 = vmatprep.subr.mxu0 0.0
  %1139 = vmatpush1.msra.mxu0 %v25
  %1140 = vmatprep.subr.mxu0 0.0
  %1141 = vmatpush1.msra.mxu0 %v26
  %1142 = vmatprep.subr.mxu0 0.0
  %1143 = vmatpush1.msra.mxu0 %v27
  %1144 = vmatprep.subr.mxu0 0.0
  %1145 = vmatpush1.msra.mxu0 %v28
  %1146 = vmatprep.subr.mxu0 0.0
  %1147 = vmatpush1.msra.mxu0 0.0
  %1148 = vmatprep.subr.mxu0 0.0
  %1149 = vmatpush1.msra.mxu0 0.0
  %1150 = vmatprep.subr.mxu0 0.0
  %1151 = vmatpush1.msra.mxu0 0.0
  %1152 = vmatprep.subr.mxu0 0.0
  %1153 = vmatpush1.msra.mxu0 0.0
  %1154 = vmatprep.subr.mxu0 0.0
  %1155 = vmatpush1.msra.mxu0 0.0
  %1156 = vmatprep.subr.mxu0 0.0
  %1157 = vmatpush1.msra.mxu0 0.0
  %1158 = vmatprep.subr.mxu0 0.0
  %1159 = vmatpush1.msra.mxu0 0.0
  %1160 = vmatprep.subr.mxu0 0.0
  %1161 = vmatpush1.msra.mxu0 0.0
  %1162 = vmatprep.subr.mxu0 0.0
  %1163 = vmatpush1.msra.mxu0 0.0
  %1164 = vmatprep.subr.mxu0 0.0
  %1165 = vmatpush1.msra.mxu0 0.0
  %1166 = vmatprep.subr.mxu0 0.0
  %1167 = vmatpush1.msra.mxu0 0.0
  %1168 = vmatprep.subr.mxu0 0.0
  %1169 = vmatpush1.msra.mxu0 0.0
  %1170 = vmatprep.subr.mxu0 0.0
  %1171 = vmatpush1.msra.mxu0 0.0
  %1172 = vmatprep.subr.mxu0 0.0
  %1173 = vmatpush1.msra.mxu0 0.0
  %1174 = vmatprep.subr.mxu0 0.0
  %1175 = vmatpush1.msra.mxu0 0.0
  %1176 = vmatprep.subr.mxu0 0.0
  %1177 = vmatpush1.msra.mxu0 0.0
  %1178 = vmatprep.subr.mxu0 0.0
  %1179 = vmatpush1.msra.mxu0 0.0
  %1180 = vmatprep.subr.mxu0 0.0
  %1181 = vmatpush1.msra.mxu0 0.0
  %1182 = vmatprep.subr.mxu0 0.0
  %1183 = vmatpush1.msra.mxu0 0.0
  %1184 = vmatprep.subr.mxu0 0.0
  %1185 = vmatpush1.msra.mxu0 0.0
  %1186 = vmatprep.subr.mxu0 0.0
  %1187 = vmatpush1.msra.mxu0 0.0
  %1188 = vmatprep.subr.mxu0 0.0
  %1189 = vmatpush1.msra.mxu0 0.0
  %1190 = vmatprep.subr.mxu0 0.0
  %1191 = vmatpush1.msra.mxu0 0.0
  %1192 = vmatprep.subr.mxu0 0.0
  %1193 = vmatpush1.msra.mxu0 0.0
  %1194 = vmatprep.subr.mxu0 0.0
  %1195 = vmatpush1.msra.mxu0 0.0
  %1196 = vmatprep.subr.mxu0 0.0
  %1197 = vmatpush1.msra.mxu0 0.0
  %1198 = vmatprep.subr.mxu0 0.0
  %1199 = vmatpush1.msra.mxu0 0.0
  %1200 = vmatprep.subr.mxu0 0.0
  %1201 = vmatpush1.msra.mxu0 0.0
  %1202 = vmatprep.mubr.f32.mxu0 0.0
  %1203 = vmatmul.mubr.f32.gmra.mrb[0].mxu0 %v1136
  %v1204 = vpop.f32.mrb[0].mxu0
  %v1205 = vadd.f32 %v34, %v1204
  %v1206 = vpop.f32.mrb[0].mxu0
  %1207 = vdwg.mxu0
  %v1210 = vunpack.c.l.s4 1966171168
  %v1211 = vunpack.c.0.s8 %v1210
  %v1212 = vlaneseq
  %v1213 = vshrl.u32 %v1212, 7
  %v1214 = vsub.s32 %v1211, %v1213
  %v1215 = vrot.slane %v1205, %v1214
  %v1216 = vcombine.high %v1215, %v1215
  %v1218 = vunpack.c.l.s4 1966171168
  %v1219 = vunpack.c.0.s8 %v1218
  %v1220 = vlaneseq
  %v1221 = vshrl.u32 %v1220, 7
  %v1222 = vsub.s32 %v1219, %v1221
  %v1223 = vrot.slane %v1215, %v1222
  %v1225 = vunpack.c.l.s4 1966171168
  %v1226 = vunpack.c.0.s8 %v1225
  %v1227 = vlaneseq
  %v1228 = vshrl.u32 %v1227, 7
  %v1229 = vsub.s32 %v1226, %v1228
  %v1230 = vrot.slane %v1216, %v1229
  %1233 = vst.msk [vmem:[%s5 + $0x4] sm:$0x1] %vm179, %v1223
  %1234 = vst.msk [vmem:[%s5 + $0xc] sm:$0x1] %vm179, %v1230
  %s1235 = scalar_lea.vmem %s0, 10
  %v1236 = vld [vmem:[%s1235] sm:$0x3]
  %1237 = vmatprep.subr.mxu0 0.0
  %1238 = vmatpush1.msra.mxu0 %v21
  %1239 = vmatprep.subr.mxu0 0.0
  %1240 = vmatpush1.msra.mxu0 %v22
  %1241 = vmatprep.subr.mxu0 0.0
  %1242 = vmatpush1.msra.mxu0 %v23
  %1243 = vmatprep.subr.mxu0 0.0
  %1244 = vmatpush1.msra.mxu0 %v24
  %1245 = vmatprep.subr.mxu0 0.0
  %1246 = vmatpush1.msra.mxu0 0.0
  %1247 = vmatprep.subr.mxu0 0.0
  %1248 = vmatpush1.msra.mxu0 0.0
  %1249 = vmatprep.subr.mxu0 0.0
  %1250 = vmatpush1.msra.mxu0 0.0
  %1251 = vmatprep.subr.mxu0 0.0
  %1252 = vmatpush1.msra.mxu0 0.0
  %1253 = vmatprep.subr.mxu0 0.0
  %1254 = vmatpush1.msra.mxu0 0.0
  %1255 = vmatprep.subr.mxu0 0.0
  %1256 = vmatpush1.msra.mxu0 0.0
  %1257 = vmatprep.subr.mxu0 0.0
  %1258 = vmatpush1.msra.mxu0 0.0
  %1259 = vmatprep.subr.mxu0 0.0
  %1260 = vmatpush1.msra.mxu0 0.0
  %1261 = vmatprep.subr.mxu0 0.0
  %1262 = vmatpush1.msra.mxu0 0.0
  %1263 = vmatprep.subr.mxu0 0.0
  %1264 = vmatpush1.msra.mxu0 0.0
  %1265 = vmatprep.subr.mxu0 0.0
  %1266 = vmatpush1.msra.mxu0 0.0
  %1267 = vmatprep.subr.mxu0 0.0
  %1268 = vmatpush1.msra.mxu0 0.0
  %1269 = vmatprep.subr.mxu0 0.0
  %1270 = vmatpush1.msra.mxu0 0.0
  %1271 = vmatprep.subr.mxu0 0.0
  %1272 = vmatpush1.msra.mxu0 0.0
  %1273 = vmatprep.subr.mxu0 0.0
  %1274 = vmatpush1.msra.mxu0 0.0
  %1275 = vmatprep.subr.mxu0 0.0
  %1276 = vmatpush1.msra.mxu0 0.0
  %1277 = vmatprep.subr.mxu0 0.0
  %1278 = vmatpush1.msra.mxu0 0.0
  %1279 = vmatprep.subr.mxu0 0.0
  %1280 = vmatpush1.msra.mxu0 0.0
  %1281 = vmatprep.subr.mxu0 0.0
  %1282 = vmatpush1.msra.mxu0 0.0
  %1283 = vmatprep.subr.mxu0 0.0
  %1284 = vmatpush1.msra.mxu0 0.0
  %1285 = vmatprep.subr.mxu0 0.0
  %1286 = vmatpush1.msra.mxu0 0.0
  %1287 = vmatprep.subr.mxu0 0.0
  %1288 = vmatpush1.msra.mxu0 0.0
  %1289 = vmatprep.subr.mxu0 0.0
  %1290 = vmatpush1.msra.mxu0 0.0
  %1291 = vmatprep.subr.mxu0 0.0
  %1292 = vmatpush1.msra.mxu0 0.0
  %1293 = vmatprep.subr.mxu0 0.0
  %1294 = vmatpush1.msra.mxu0 0.0
  %1295 = vmatprep.subr.mxu0 0.0
  %1296 = vmatpush1.msra.mxu0 0.0
  %1297 = vmatprep.subr.mxu0 0.0
  %1298 = vmatpush1.msra.mxu0 0.0
  %1299 = vmatprep.subr.mxu0 0.0
  %1300 = vmatpush1.msra.mxu0 0.0
  %1301 = vmatprep.mubr.f32.mxu0 0.0
  %1302 = vmatmul.mubr.f32.gmra.mrb[0].mxu0 %v1136
  %v1303 = vpop.f32.mrb[0].mxu0
  %v1304 = vadd.f32 0.0, %v1303
  %v1305 = vpop.f32.mrb[0].mxu0
  %1306 = vdwg.mxu0
  %v1307 = vadd.f32 %v1236, %v1304
  %v1308 = vtanh.pop %v1307
  %v1309 = vxor.u32 %v1307, 2147483648
  %v1310 = vmul.f32 %v1309, 1.442695
  %v1311 = vpow.pop %v1310
  %v1312 = vadd.f32 %v1311, 1.0
  %v1313 = vrcp.pop %v1312
  %v1314 = vmul.f32 1.0, %v1313
  %v1315 = vsel %vm40, %v1308, %v1314
  %v1316 = vmul.f32 %v1315, %v1088
  %1318 = vrot.lane.b32.xlu0 %v1315, 64
  %v1319 = vpop.permute.xlu0 %1318
  %v1321 = vmul.f32 %v1315, %v1319
  %1323 = vrot.lane.b32.xlu0 %v1321, 32
  %v1324 = vpop.permute.xlu0 %1323
  %v1326 = vadd.f32 %v1316, %v1324
  %v1327 = vtanh.pop %v1326
  %1329 = vrot.lane.b32.xlu0 %v1327, 64
  %v1330 = vpop.permute.xlu0 %1329
  %v1332 = vmul.f32 %v1315, %v1330
  %v1335 = vunpack.c.l.s4 1966171168
  %v1336 = vunpack.c.0.s8 %v1335
  %v1337 = vlaneseq
  %v1338 = vshrl.u32 %v1337, 7
  %v1339 = vsub.s32 %v1336, %v1338
  %v1340 = vrot.slane %v1332, %v1339
  %v1341 = vcombine.high %v1340, %v1340
  %v1343 = vunpack.c.l.s4 1966171168
  %v1344 = vunpack.c.0.s8 %v1343
  %v1345 = vlaneseq
  %v1346 = vshrl.u32 %v1345, 7
  %v1347 = vsub.s32 %v1344, %v1346
  %v1348 = vrot.slane %v1340, %v1347
  %v1350 = vunpack.c.l.s4 1966171168
  %v1351 = vunpack.c.0.s8 %v1350
  %v1352 = vlaneseq
  %v1353 = vshrl.u32 %v1352, 7
  %v1354 = vsub.s32 %v1351, %v1353
  %v1355 = vrot.slane %v1341, %v1354
  %v1356 = vlaneseq
  %v1357 = vshrl.u32 %v1356, 7
  %v1358 = vsub.s32 0, %v1357
  %v1359 = vrot.slane %v1348, %v1358
  %v1360 = vlaneseq
  %v1361 = vshrl.u32 %v1360, 7
  %v1362 = vsub.s32 0, %v1361
  %v1363 = vrot.slane %v1355, %v1362
  %1364 = vrot.lane.b32.xlu0 %v1359, 32
  %v1365 = vpop.permute.xlu0 %1364
  %1366 = vrot.lane.b32.xlu0 %v1363, 32
  %v1367 = vpop.permute.xlu0 %1366
  %1370 = vst.msk [vmem:[%s4 + $0x5] sm:$0x1] %vm179, %v1365
  %1371 = vst.msk [vmem:[%s4 + $0xd] sm:$0x1] %vm179, %v1367
  %1372 = vrot.lane.b32.xlu0 %v1332, 32
  %v1373 = vpop.permute.xlu0 %1372
  %v1374 = vsel %vm42, %v1373, 0
  %1376 = vmatprep.subr.mxu0 0.0
  %1377 = vmatpush1.msra.mxu0 %v25
  %1378 = vmatprep.subr.mxu0 0.0
  %1379 = vmatpush1.msra.mxu0 %v26
  %1380 = vmatprep.subr.mxu0 0.0
  %1381 = vmatpush1.msra.mxu0 %v27
  %1382 = vmatprep.subr.mxu0 0.0
  %1383 = vmatpush1.msra.mxu0 %v28
  %1384 = vmatprep.subr.mxu0 0.0
  %1385 = vmatpush1.msra.mxu0 0.0
  %1386 = vmatprep.subr.mxu0 0.0
  %1387 = vmatpush1.msra.mxu0 0.0
  %1388 = vmatprep.subr.mxu0 0.0
  %1389 = vmatpush1.msra.mxu0 0.0
  %1390 = vmatprep.subr.mxu0 0.0
  %1391 = vmatpush1.msra.mxu0 0.0
  %1392 = vmatprep.subr.mxu0 0.0
  %1393 = vmatpush1.msra.mxu0 0.0
  %1394 = vmatprep.subr.mxu0 0.0
  %1395 = vmatpush1.msra.mxu0 0.0
  %1396 = vmatprep.subr.mxu0 0.0
  %1397 = vmatpush1.msra.mxu0 0.0
  %1398 = vmatprep.subr.mxu0 0.0
  %1399 = vmatpush1.msra.mxu0 0.0
  %1400 = vmatprep.subr.mxu0 0.0
  %1401 = vmatpush1.msra.mxu0 0.0
  %1402 = vmatprep.subr.mxu0 0.0
  %1403 = vmatpush1.msra.mxu0 0.0
  %1404 = vmatprep.subr.mxu0 0.0
  %1405 = vmatpush1.msra.mxu0 0.0
  %1406 = vmatprep.subr.mxu0 0.0
  %1407 = vmatpush1.msra.mxu0 0.0
  %1408 = vmatprep.subr.mxu0 0.0
  %1409 = vmatpush1.msra.mxu0 0.0
  %1410 = vmatprep.subr.mxu0 0.0
  %1411 = vmatpush1.msra.mxu0 0.0
  %1412 = vmatprep.subr.mxu0 0.0
  %1413 = vmatpush1.msra.mxu0 0.0
  %1414 = vmatprep.subr.mxu0 0.0
  %1415 = vmatpush1.msra.mxu0 0.0
  %1416 = vmatprep.subr.mxu0 0.0
  %1417 = vmatpush1.msra.mxu0 0.0
  %1418 = vmatprep.subr.mxu0 0.0
  %1419 = vmatpush1.msra.mxu0 0.0
  %1420 = vmatprep.subr.mxu0 0.0
  %1421 = vmatpush1.msra.mxu0 0.0
  %1422 = vmatprep.subr.mxu0 0.0
  %1423 = vmatpush1.msra.mxu0 0.0
  %1424 = vmatprep.subr.mxu0 0.0
  %1425 = vmatpush1.msra.mxu0 0.0
  %1426 = vmatprep.subr.mxu0 0.0
  %1427 = vmatpush1.msra.mxu0 0.0
  %1428 = vmatprep.subr.mxu0 0.0
  %1429 = vmatpush1.msra.mxu0 0.0
  %1430 = vmatprep.subr.mxu0 0.0
  %1431 = vmatpush1.msra.mxu0 0.0
  %1432 = vmatprep.subr.mxu0 0.0
  %1433 = vmatpush1.msra.mxu0 0.0
  %1434 = vmatprep.subr.mxu0 0.0
  %1435 = vmatpush1.msra.mxu0 0.0
  %1436 = vmatprep.subr.mxu0 0.0
  %1437 = vmatpush1.msra.mxu0 0.0
  %1438 = vmatprep.subr.mxu0 0.0
  %1439 = vmatpush1.msra.mxu0 0.0
  %1440 = vmatprep.mubr.f32.mxu0 0.0
  %1441 = vmatmul.mubr.f32.gmra.mrb[0].mxu0 %v1374
  %v1442 = vpop.f32.mrb[0].mxu0
  %v1443 = vadd.f32 %v34, %v1442
  %v1444 = vpop.f32.mrb[0].mxu0
  %1445 = vdwg.mxu0
  %v1448 = vunpack.c.l.s4 1966171168
  %v1449 = vunpack.c.0.s8 %v1448
  %v1450 = vlaneseq
  %v1451 = vshrl.u32 %v1450, 7
  %v1452 = vsub.s32 %v1449, %v1451
  %v1453 = vrot.slane %v1443, %v1452
  %v1454 = vcombine.high %v1453, %v1453
  %v1456 = vunpack.c.l.s4 1966171168
  %v1457 = vunpack.c.0.s8 %v1456
  %v1458 = vlaneseq
  %v1459 = vshrl.u32 %v1458, 7
  %v1460 = vsub.s32 %v1457, %v1459
  %v1461 = vrot.slane %v1453, %v1460
  %v1463 = vunpack.c.l.s4 1966171168
  %v1464 = vunpack.c.0.s8 %v1463
  %v1465 = vlaneseq
  %v1466 = vshrl.u32 %v1465, 7
  %v1467 = vsub.s32 %v1464, %v1466
  %v1468 = vrot.slane %v1454, %v1467
  %1471 = vst.msk [vmem:[%s5 + $0x5] sm:$0x1] %vm179, %v1461
  %1472 = vst.msk [vmem:[%s5 + $0xd] sm:$0x1] %vm179, %v1468
  %s1473 = scalar_lea.vmem %s0, 12
  %v1474 = vld [vmem:[%s1473] sm:$0x3]
  %1475 = vmatprep.subr.mxu0 0.0
  %1476 = vmatpush1.msra.mxu0 %v21
  %1477 = vmatprep.subr.mxu0 0.0
  %1478 = vmatpush1.msra.mxu0 %v22
  %1479 = vmatprep.subr.mxu0 0.0
  %1480 = vmatpush1.msra.mxu0 %v23
  %1481 = vmatprep.subr.mxu0 0.0
  %1482 = vmatpush1.msra.mxu0 %v24
  %1483 = vmatprep.subr.mxu0 0.0
  %1484 = vmatpush1.msra.mxu0 0.0
  %1485 = vmatprep.subr.mxu0 0.0
  %1486 = vmatpush1.msra.mxu0 0.0
  %1487 = vmatprep.subr.mxu0 0.0
  %1488 = vmatpush1.msra.mxu0 0.0
  %1489 = vmatprep.subr.mxu0 0.0
  %1490 = vmatpush1.msra.mxu0 0.0
  %1491 = vmatprep.subr.mxu0 0.0
  %1492 = vmatpush1.msra.mxu0 0.0
  %1493 = vmatprep.subr.mxu0 0.0
  %1494 = vmatpush1.msra.mxu0 0.0
  %1495 = vmatprep.subr.mxu0 0.0
  %1496 = vmatpush1.msra.mxu0 0.0
  %1497 = vmatprep.subr.mxu0 0.0
  %1498 = vmatpush1.msra.mxu0 0.0
  %1499 = vmatprep.subr.mxu0 0.0
  %1500 = vmatpush1.msra.mxu0 0.0
  %1501 = vmatprep.subr.mxu0 0.0
  %1502 = vmatpush1.msra.mxu0 0.0
  %1503 = vmatprep.subr.mxu0 0.0
  %1504 = vmatpush1.msra.mxu0 0.0
  %1505 = vmatprep.subr.mxu0 0.0
  %1506 = vmatpush1.msra.mxu0 0.0
  %1507 = vmatprep.subr.mxu0 0.0
  %1508 = vmatpush1.msra.mxu0 0.0
  %1509 = vmatprep.subr.mxu0 0.0
  %1510 = vmatpush1.msra.mxu0 0.0
  %1511 = vmatprep.subr.mxu0 0.0
  %1512 = vmatpush1.msra.mxu0 0.0
  %1513 = vmatprep.subr.mxu0 0.0
  %1514 = vmatpush1.msra.mxu0 0.0
  %1515 = vmatprep.subr.mxu0 0.0
  %1516 = vmatpush1.msra.mxu0 0.0
  %1517 = vmatprep.subr.mxu0 0.0
  %1518 = vmatpush1.msra.mxu0 0.0
  %1519 = vmatprep.subr.mxu0 0.0
  %1520 = vmatpush1.msra.mxu0 0.0
  %1521 = vmatprep.subr.mxu0 0.0
  %1522 = vmatpush1.msra.mxu0 0.0
  %1523 = vmatprep.subr.mxu0 0.0
  %1524 = vmatpush1.msra.mxu0 0.0
  %1525 = vmatprep.subr.mxu0 0.0
  %1526 = vmatpush1.msra.mxu0 0.0
  %1527 = vmatprep.subr.mxu0 0.0
  %1528 = vmatpush1.msra.mxu0 0.0
  %1529 = vmatprep.subr.mxu0 0.0
  %1530 = vmatpush1.msra.mxu0 0.0
  %1531 = vmatprep.subr.mxu0 0.0
  %1532 = vmatpush1.msra.mxu0 0.0
  %1533 = vmatprep.subr.mxu0 0.0
  %1534 = vmatpush1.msra.mxu0 0.0
  %1535 = vmatprep.subr.mxu0 0.0
  %1536 = vmatpush1.msra.mxu0 0.0
  %1537 = vmatprep.subr.mxu0 0.0
  %1538 = vmatpush1.msra.mxu0 0.0
  %1539 = vmatprep.mubr.f32.mxu0 0.0
  %1540 = vmatmul.mubr.f32.gmra.mrb[0].mxu0 %v1374
  %v1541 = vpop.f32.mrb[0].mxu0
  %v1542 = vadd.f32 0.0, %v1541
  %v1543 = vpop.f32.mrb[0].mxu0
  %1544 = vdwg.mxu0
  %v1545 = vadd.f32 %v1474, %v1542
  %v1546 = vtanh.pop %v1545
  %v1547 = vxor.u32 %v1545, 2147483648
  %v1548 = vmul.f32 %v1547, 1.442695
  %v1549 = vpow.pop %v1548
  %v1550 = vadd.f32 %v1549, 1.0
  %v1551 = vrcp.pop %v1550
  %v1552 = vmul.f32 1.0, %v1551
  %v1553 = vsel %vm40, %v1546, %v1552
  %v1554 = vmul.f32 %v1553, %v1326
  %1556 = vrot.lane.b32.xlu0 %v1553, 64
  %v1557 = vpop.permute.xlu0 %1556
  %v1559 = vmul.f32 %v1553, %v1557
  %1561 = vrot.lane.b32.xlu0 %v1559, 32
  %v1562 = vpop.permute.xlu0 %1561
  %v1564 = vadd.f32 %v1554, %v1562
  %v1565 = vtanh.pop %v1564
  %1567 = vrot.lane.b32.xlu0 %v1565, 64
  %v1568 = vpop.permute.xlu0 %1567
  %v1570 = vmul.f32 %v1553, %v1568
  %v1573 = vunpack.c.l.s4 1966171168
  %v1574 = vunpack.c.0.s8 %v1573
  %v1575 = vlaneseq
  %v1576 = vshrl.u32 %v1575, 7
  %v1577 = vsub.s32 %v1574, %v1576
  %v1578 = vrot.slane %v1570, %v1577
  %v1579 = vcombine.high %v1578, %v1578
  %v1581 = vunpack.c.l.s4 1966171168
  %v1582 = vunpack.c.0.s8 %v1581
  %v1583 = vlaneseq
  %v1584 = vshrl.u32 %v1583, 7
  %v1585 = vsub.s32 %v1582, %v1584
  %v1586 = vrot.slane %v1578, %v1585
  %v1588 = vunpack.c.l.s4 1966171168
  %v1589 = vunpack.c.0.s8 %v1588
  %v1590 = vlaneseq
  %v1591 = vshrl.u32 %v1590, 7
  %v1592 = vsub.s32 %v1589, %v1591
  %v1593 = vrot.slane %v1579, %v1592
  %v1594 = vlaneseq
  %v1595 = vshrl.u32 %v1594, 7
  %v1596 = vsub.s32 0, %v1595
  %v1597 = vrot.slane %v1586, %v1596
  %v1598 = vlaneseq
  %v1599 = vshrl.u32 %v1598, 7
  %v1600 = vsub.s32 0, %v1599
  %v1601 = vrot.slane %v1593, %v1600
  %1602 = vrot.lane.b32.xlu0 %v1597, 32
  %v1603 = vpop.permute.xlu0 %1602
  %1604 = vrot.lane.b32.xlu0 %v1601, 32
  %v1605 = vpop.permute.xlu0 %1604
  %1608 = vst.msk [vmem:[%s4 + $0x6] sm:$0x1] %vm179, %v1603
  %1609 = vst.msk [vmem:[%s4 + $0xe] sm:$0x1] %vm179, %v1605
  %1610 = vrot.lane.b32.xlu0 %v1570, 32
  %v1611 = vpop.permute.xlu0 %1610
  %v1612 = vsel %vm42, %v1611, 0
  %1614 = vmatprep.subr.mxu0 0.0
  %1615 = vmatpush1.msra.mxu0 %v25
  %1616 = vmatprep.subr.mxu0 0.0
  %1617 = vmatpush1.msra.mxu0 %v26
  %1618 = vmatprep.subr.mxu0 0.0
  %1619 = vmatpush1.msra.mxu0 %v27
  %1620 = vmatprep.subr.mxu0 0.0
  %1621 = vmatpush1.msra.mxu0 %v28
  %1622 = vmatprep.subr.mxu0 0.0
  %1623 = vmatpush1.msra.mxu0 0.0
  %1624 = vmatprep.subr.mxu0 0.0
  %1625 = vmatpush1.msra.mxu0 0.0
  %1626 = vmatprep.subr.mxu0 0.0
  %1627 = vmatpush1.msra.mxu0 0.0
  %1628 = vmatprep.subr.mxu0 0.0
  %1629 = vmatpush1.msra.mxu0 0.0
  %1630 = vmatprep.subr.mxu0 0.0
  %1631 = vmatpush1.msra.mxu0 0.0
  %1632 = vmatprep.subr.mxu0 0.0
  %1633 = vmatpush1.msra.mxu0 0.0
  %1634 = vmatprep.subr.mxu0 0.0
  %1635 = vmatpush1.msra.mxu0 0.0
  %1636 = vmatprep.subr.mxu0 0.0
  %1637 = vmatpush1.msra.mxu0 0.0
  %1638 = vmatprep.subr.mxu0 0.0
  %1639 = vmatpush1.msra.mxu0 0.0
  %1640 = vmatprep.subr.mxu0 0.0
  %1641 = vmatpush1.msra.mxu0 0.0
  %1642 = vmatprep.subr.mxu0 0.0
  %1643 = vmatpush1.msra.mxu0 0.0
  %1644 = vmatprep.subr.mxu0 0.0
  %1645 = vmatpush1.msra.mxu0 0.0
  %1646 = vmatprep.subr.mxu0 0.0
  %1647 = vmatpush1.msra.mxu0 0.0
  %1648 = vmatprep.subr.mxu0 0.0
  %1649 = vmatpush1.msra.mxu0 0.0
  %1650 = vmatprep.subr.mxu0 0.0
  %1651 = vmatpush1.msra.mxu0 0.0
  %1652 = vmatprep.subr.mxu0 0.0
  %1653 = vmatpush1.msra.mxu0 0.0
  %1654 = vmatprep.subr.mxu0 0.0
  %1655 = vmatpush1.msra.mxu0 0.0
  %1656 = vmatprep.subr.mxu0 0.0
  %1657 = vmatpush1.msra.mxu0 0.0
  %1658 = vmatprep.subr.mxu0 0.0
  %1659 = vmatpush1.msra.mxu0 0.0
  %1660 = vmatprep.subr.mxu0 0.0
  %1661 = vmatpush1.msra.mxu0 0.0
  %1662 = vmatprep.subr.mxu0 0.0
  %1663 = vmatpush1.msra.mxu0 0.0
  %1664 = vmatprep.subr.mxu0 0.0
  %1665 = vmatpush1.msra.mxu0 0.0
  %1666 = vmatprep.subr.mxu0 0.0
  %1667 = vmatpush1.msra.mxu0 0.0
  %1668 = vmatprep.subr.mxu0 0.0
  %1669 = vmatpush1.msra.mxu0 0.0
  %1670 = vmatprep.subr.mxu0 0.0
  %1671 = vmatpush1.msra.mxu0 0.0
  %1672 = vmatprep.subr.mxu0 0.0
  %1673 = vmatpush1.msra.mxu0 0.0
  %1674 = vmatprep.subr.mxu0 0.0
  %1675 = vmatpush1.msra.mxu0 0.0
  %1676 = vmatprep.subr.mxu0 0.0
  %1677 = vmatpush1.msra.mxu0 0.0
  %1678 = vmatprep.mubr.f32.mxu0 0.0
  %1679 = vmatmul.mubr.f32.gmra.mrb[0].mxu0 %v1612
  %v1680 = vpop.f32.mrb[0].mxu0
  %v1681 = vadd.f32 %v34, %v1680
  %v1682 = vpop.f32.mrb[0].mxu0
  %1683 = vdwg.mxu0
  %v1686 = vunpack.c.l.s4 1966171168
  %v1687 = vunpack.c.0.s8 %v1686
  %v1688 = vlaneseq
  %v1689 = vshrl.u32 %v1688, 7
  %v1690 = vsub.s32 %v1687, %v1689
  %v1691 = vrot.slane %v1681, %v1690
  %v1692 = vcombine.high %v1691, %v1691
  %v1694 = vunpack.c.l.s4 1966171168
  %v1695 = vunpack.c.0.s8 %v1694
  %v1696 = vlaneseq
  %v1697 = vshrl.u32 %v1696, 7
  %v1698 = vsub.s32 %v1695, %v1697
  %v1699 = vrot.slane %v1691, %v1698
  %v1701 = vunpack.c.l.s4 1966171168
  %v1702 = vunpack.c.0.s8 %v1701
  %v1703 = vlaneseq
  %v1704 = vshrl.u32 %v1703, 7
  %v1705 = vsub.s32 %v1702, %v1704
  %v1706 = vrot.slane %v1692, %v1705
  %1709 = vst.msk [vmem:[%s5 + $0x6] sm:$0x1] %vm179, %v1699
  %1710 = vst.msk [vmem:[%s5 + $0xe] sm:$0x1] %vm179, %v1706
  %s1711 = scalar_lea.vmem %s0, 14
  %v1712 = vld [vmem:[%s1711] sm:$0x3]
  %1713 = vmatprep.subr.mxu0 0.0
  %1714 = vmatpush1.msra.mxu0 %v21
  %1715 = vmatprep.subr.mxu0 0.0
  %1716 = vmatpush1.msra.mxu0 %v22
  %1717 = vmatprep.subr.mxu0 0.0
  %1718 = vmatpush1.msra.mxu0 %v23
  %1719 = vmatprep.subr.mxu0 0.0
  %1720 = vmatpush1.msra.mxu0 %v24
  %1721 = vmatprep.subr.mxu0 0.0
  %1722 = vmatpush1.msra.mxu0 0.0
  %1723 = vmatprep.subr.mxu0 0.0
  %1724 = vmatpush1.msra.mxu0 0.0
  %1725 = vmatprep.subr.mxu0 0.0
  %1726 = vmatpush1.msra.mxu0 0.0
  %1727 = vmatprep.subr.mxu0 0.0
  %1728 = vmatpush1.msra.mxu0 0.0
  %1729 = vmatprep.subr.mxu0 0.0
  %1730 = vmatpush1.msra.mxu0 0.0
  %1731 = vmatprep.subr.mxu0 0.0
  %1732 = vmatpush1.msra.mxu0 0.0
  %1733 = vmatprep.subr.mxu0 0.0
  %1734 = vmatpush1.msra.mxu0 0.0
  %1735 = vmatprep.subr.mxu0 0.0
  %1736 = vmatpush1.msra.mxu0 0.0
  %1737 = vmatprep.subr.mxu0 0.0
  %1738 = vmatpush1.msra.mxu0 0.0
  %1739 = vmatprep.subr.mxu0 0.0
  %1740 = vmatpush1.msra.mxu0 0.0
  %1741 = vmatprep.subr.mxu0 0.0
  %1742 = vmatpush1.msra.mxu0 0.0
  %1743 = vmatprep.subr.mxu0 0.0
  %1744 = vmatpush1.msra.mxu0 0.0
  %1745 = vmatprep.subr.mxu0 0.0
  %1746 = vmatpush1.msra.mxu0 0.0
  %1747 = vmatprep.subr.mxu0 0.0
  %1748 = vmatpush1.msra.mxu0 0.0
  %1749 = vmatprep.subr.mxu0 0.0
  %1750 = vmatpush1.msra.mxu0 0.0
  %1751 = vmatprep.subr.mxu0 0.0
  %1752 = vmatpush1.msra.mxu0 0.0
  %1753 = vmatprep.subr.mxu0 0.0
  %1754 = vmatpush1.msra.mxu0 0.0
  %1755 = vmatprep.subr.mxu0 0.0
  %1756 = vmatpush1.msra.mxu0 0.0
  %1757 = vmatprep.subr.mxu0 0.0
  %1758 = vmatpush1.msra.mxu0 0.0
  %1759 = vmatprep.subr.mxu0 0.0
  %1760 = vmatpush1.msra.mxu0 0.0
  %1761 = vmatprep.subr.mxu0 0.0
  %1762 = vmatpush1.msra.mxu0 0.0
  %1763 = vmatprep.subr.mxu0 0.0
  %1764 = vmatpush1.msra.mxu0 0.0
  %1765 = vmatprep.subr.mxu0 0.0
  %1766 = vmatpush1.msra.mxu0 0.0
  %1767 = vmatprep.subr.mxu0 0.0
  %1768 = vmatpush1.msra.mxu0 0.0
  %1769 = vmatprep.subr.mxu0 0.0
  %1770 = vmatpush1.msra.mxu0 0.0
  %1771 = vmatprep.subr.mxu0 0.0
  %1772 = vmatpush1.msra.mxu0 0.0
  %1773 = vmatprep.subr.mxu0 0.0
  %1774 = vmatpush1.msra.mxu0 0.0
  %1775 = vmatprep.subr.mxu0 0.0
  %1776 = vmatpush1.msra.mxu0 0.0
  %1777 = vmatprep.mubr.f32.mxu0 0.0
  %1778 = vmatmul.mubr.f32.gmra.mrb[0].mxu0 %v1612
  %v1779 = vpop.f32.mrb[0].mxu0
  %v1780 = vadd.f32 0.0, %v1779
  %v1781 = vpop.f32.mrb[0].mxu0
  %1782 = vdwg.mxu0
  %v1783 = vadd.f32 %v1712, %v1780
  %v1784 = vtanh.pop %v1783
  %v1785 = vxor.u32 %v1783, 2147483648
  %v1786 = vmul.f32 %v1785, 1.442695
  %v1787 = vpow.pop %v1786
  %v1788 = vadd.f32 %v1787, 1.0
  %v1789 = vrcp.pop %v1788
  %v1790 = vmul.f32 1.0, %v1789
  %v1791 = vsel %vm40, %v1784, %v1790
  %v1792 = vmul.f32 %v1791, %v1564
  %1794 = vrot.lane.b32.xlu0 %v1791, 64
  %v1795 = vpop.permute.xlu0 %1794
  %v1797 = vmul.f32 %v1791, %v1795
  %1799 = vrot.lane.b32.xlu0 %v1797, 32
  %v1800 = vpop.permute.xlu0 %1799
  %v1802 = vadd.f32 %v1792, %v1800
  %v1803 = vtanh.pop %v1802
  %1805 = vrot.lane.b32.xlu0 %v1803, 64
  %v1806 = vpop.permute.xlu0 %1805
  %v1808 = vmul.f32 %v1791, %v1806
  %v1811 = vunpack.c.l.s4 1966171168
  %v1812 = vunpack.c.0.s8 %v1811
  %v1813 = vlaneseq
  %v1814 = vshrl.u32 %v1813, 7
  %v1815 = vsub.s32 %v1812, %v1814
  %v1816 = vrot.slane %v1808, %v1815
  %v1817 = vcombine.high %v1816, %v1816
  %v1819 = vunpack.c.l.s4 1966171168
  %v1820 = vunpack.c.0.s8 %v1819
  %v1821 = vlaneseq
  %v1822 = vshrl.u32 %v1821, 7
  %v1823 = vsub.s32 %v1820, %v1822
  %v1824 = vrot.slane %v1816, %v1823
  %v1826 = vunpack.c.l.s4 1966171168
  %v1827 = vunpack.c.0.s8 %v1826
  %v1828 = vlaneseq
  %v1829 = vshrl.u32 %v1828, 7
  %v1830 = vsub.s32 %v1827, %v1829
  %v1831 = vrot.slane %v1817, %v1830
  %v1832 = vlaneseq
  %v1833 = vshrl.u32 %v1832, 7
  %v1834 = vsub.s32 0, %v1833
  %v1835 = vrot.slane %v1824, %v1834
  %v1836 = vlaneseq
  %v1837 = vshrl.u32 %v1836, 7
  %v1838 = vsub.s32 0, %v1837
  %v1839 = vrot.slane %v1831, %v1838
  %1840 = vrot.lane.b32.xlu0 %v1835, 32
  %v1841 = vpop.permute.xlu0 %1840
  %1842 = vrot.lane.b32.xlu0 %v1839, 32
  %v1843 = vpop.permute.xlu0 %1842
  %1846 = vst.msk [vmem:[%s4 + $0x7] sm:$0x1] %vm179, %v1841
  %1847 = vst.msk [vmem:[%s4 + $0xf] sm:$0x1] %vm179, %v1843
  %1848 = vrot.lane.b32.xlu0 %v1808, 32
  %v1849 = vpop.permute.xlu0 %1848
  %v1850 = vsel %vm42, %v1849, 0
  %1852 = vmatprep.subr.mxu0 0.0
  %1853 = vmatpush1.msra.mxu0 %v25
  %1854 = vmatprep.subr.mxu0 0.0
  %1855 = vmatpush1.msra.mxu0 %v26
  %1856 = vmatprep.subr.mxu0 0.0
  %1857 = vmatpush1.msra.mxu0 %v27
  %1858 = vmatprep.subr.mxu0 0.0
  %1859 = vmatpush1.msra.mxu0 %v28
  %1860 = vmatprep.subr.mxu0 0.0
  %1861 = vmatpush1.msra.mxu0 0.0
  %1862 = vmatprep.subr.mxu0 0.0
  %1863 = vmatpush1.msra.mxu0 0.0
  %1864 = vmatprep.subr.mxu0 0.0
  %1865 = vmatpush1.msra.mxu0 0.0
  %1866 = vmatprep.subr.mxu0 0.0
  %1867 = vmatpush1.msra.mxu0 0.0
  %1868 = vmatprep.subr.mxu0 0.0
  %1869 = vmatpush1.msra.mxu0 0.0
  %1870 = vmatprep.subr.mxu0 0.0
  %1871 = vmatpush1.msra.mxu0 0.0
  %1872 = vmatprep.subr.mxu0 0.0
  %1873 = vmatpush1.msra.mxu0 0.0
  %1874 = vmatprep.subr.mxu0 0.0
  %1875 = vmatpush1.msra.mxu0 0.0
  %1876 = vmatprep.subr.mxu0 0.0
  %1877 = vmatpush1.msra.mxu0 0.0
  %1878 = vmatprep.subr.mxu0 0.0
  %1879 = vmatpush1.msra.mxu0 0.0
  %1880 = vmatprep.subr.mxu0 0.0
  %1881 = vmatpush1.msra.mxu0 0.0
  %1882 = vmatprep.subr.mxu0 0.0
  %1883 = vmatpush1.msra.mxu0 0.0
  %1884 = vmatprep.subr.mxu0 0.0
  %1885 = vmatpush1.msra.mxu0 0.0
  %1886 = vmatprep.subr.mxu0 0.0
  %1887 = vmatpush1.msra.mxu0 0.0
  %1888 = vmatprep.subr.mxu0 0.0
  %1889 = vmatpush1.msra.mxu0 0.0
  %1890 = vmatprep.subr.mxu0 0.0
  %1891 = vmatpush1.msra.mxu0 0.0
  %1892 = vmatprep.subr.mxu0 0.0
  %1893 = vmatpush1.msra.mxu0 0.0
  %1894 = vmatprep.subr.mxu0 0.0
  %1895 = vmatpush1.msra.mxu0 0.0
  %1896 = vmatprep.subr.mxu0 0.0
  %1897 = vmatpush1.msra.mxu0 0.0
  %1898 = vmatprep.subr.mxu0 0.0
  %1899 = vmatpush1.msra.mxu0 0.0
  %1900 = vmatprep.subr.mxu0 0.0
  %1901 = vmatpush1.msra.mxu0 0.0
  %1902 = vmatprep.subr.mxu0 0.0
  %1903 = vmatpush1.msra.mxu0 0.0
  %1904 = vmatprep.subr.mxu0 0.0
  %1905 = vmatpush1.msra.mxu0 0.0
  %1906 = vmatprep.subr.mxu0 0.0
  %1907 = vmatpush1.msra.mxu0 0.0
  %1908 = vmatprep.subr.mxu0 0.0
  %1909 = vmatpush1.msra.mxu0 0.0
  %1910 = vmatprep.subr.mxu0 0.0
  %1911 = vmatpush1.msra.mxu0 0.0
  %1912 = vmatprep.subr.mxu0 0.0
  %1913 = vmatpush1.msra.mxu0 0.0
  %1914 = vmatprep.subr.mxu0 0.0
  %1915 = vmatpush1.msra.mxu0 0.0
  %1916 = vmatprep.mubr.f32.mxu0 0.0
  %1917 = vmatmul.mubr.f32.gmra.mrb[0].mxu0 %v1850
  %v1918 = vpop.f32.mrb[0].mxu0
  %v1919 = vadd.f32 %v34, %v1918
  %v1920 = vpop.f32.mrb[0].mxu0
  %1921 = vdwg.mxu0
  %v1924 = vunpack.c.l.s4 1966171168
  %v1925 = vunpack.c.0.s8 %v1924
  %v1926 = vlaneseq
  %v1927 = vshrl.u32 %v1926, 7
  %v1928 = vsub.s32 %v1925, %v1927
  %v1929 = vrot.slane %v1919, %v1928
  %v1930 = vcombine.high %v1929, %v1929
  %v1932 = vunpack.c.l.s4 1966171168
  %v1933 = vunpack.c.0.s8 %v1932
  %v1934 = vlaneseq
  %v1935 = vshrl.u32 %v1934, 7
  %v1936 = vsub.s32 %v1933, %v1935
  %v1937 = vrot.slane %v1929, %v1936
  %v1939 = vunpack.c.l.s4 1966171168
  %v1940 = vunpack.c.0.s8 %v1939
  %v1941 = vlaneseq
  %v1942 = vshrl.u32 %v1941, 7
  %v1943 = vsub.s32 %v1940, %v1942
  %v1944 = vrot.slane %v1930, %v1943
  %1947 = vst.msk [vmem:[%s5 + $0x7] sm:$0x1] %vm179, %v1937
  %1948 = vst.msk [vmem:[%s5 + $0xf] sm:$0x1] %vm179, %v1944
  %vm1950 = vcmask 254976
  %1951 = vst.msk [vmem:[%s6] sm:$0x3] %vm1950, %v1849
  %1953 = vrot.lane.b32.xlu0 %v1802, 96
  %v1954 = vpop.permute.xlu0 %1953
  %1956 = vst.msk [vmem:[%s7] sm:$0x3] %vm1950, %v1954
  // Predicated region
  $region18: #{seq2seq_forward.2} parent=0 // pred_check
    _
  $region19: #{seq2seq_forward.2} parent=0 // pred_check_branch
    %1958 = sbr.rel (0) target = $region21
  $region20: #{seq2seq_forward.2} parent=0 // pred_region
    _
  $region21: #{seq2seq_forward.2} parent=0 // pred_fallthru
    _
  // Predicated region
  $region22: #{seq2seq_forward.2} parent=0 // pred_check
    _
  $region23: #{seq2seq_forward.2} parent=0 // pred_check_branch
    %1960 = sbr.rel (0) target = $region25
  $region24: #{seq2seq_forward.2} parent=0 // pred_region
    _
  $region25: #{seq2seq_forward.2} parent=0 // pred_fallthru
    _
  // Predicated region
  $region26: #{seq2seq_forward.2} parent=0 // pred_check
    _
  $region27: #{seq2seq_forward.2} parent=0 // pred_check_branch
    %1962 = sbr.rel (0) target = $region29
  $region28: #{seq2seq_forward.2} parent=0 // pred_region
    _
  $region29: #{seq2seq_forward.2} parent=0 // pred_fallthru
    _
  // Predicated region
  $region30: #{seq2seq_forward.2} parent=0 // pred_check
    _
  $region31: #{seq2seq_forward.2} parent=0 // pred_check_branch
    %1964 = sbr.rel (0) target = $region33
  $region32: #{seq2seq_forward.2} parent=0 // pred_region
    _
  $region33: #{seq2seq_forward.2} parent=0 // pred_fallthru
    _
  // Predicated region
  $region34: #{seq2seq_forward.2} parent=0 // pred_check
    _
  $region35: #{seq2seq_forward.2} parent=0 // pred_check_branch
    %1966 = sbr.rel (0) target = $region37
  $region36: #{seq2seq_forward.2} parent=0 // pred_region
    _
  $region37: #{seq2seq_forward.2} parent=0 // pred_fallthru
    _
  // Predicated region
  $region38: #{seq2seq_forward.2} parent=0 // pred_check
    _
  $region39: #{seq2seq_forward.2} parent=0 // pred_check_branch
    %1968 = sbr.rel (0) target = $region41
  $region40: #{seq2seq_forward.2} parent=0 // pred_region
    _
  $region41: #{seq2seq_forward.2} parent=0 // pred_fallthru
    _
  // Predicated region
  $region42: #{seq2seq_forward.2} parent=0 // pred_check
    _
  $region43: #{seq2seq_forward.2} parent=0 // pred_check_branch
    %1970 = sbr.rel (0) target = $region45
  $region44: #{seq2seq_forward.2} parent=0 // pred_region
    _
  $region45: #{seq2seq_forward.2} parent=0 // pred_fallthru
    _
  // Predicated region
  $region46: #{seq2seq_forward.2} parent=0 // pred_check
    _
  $region47: #{seq2seq_forward.2} parent=0 // pred_check_branch
    %1972 = sbr.rel (0) target = $region49
  $region48: #{seq2seq_forward.2} parent=0 // pred_region
    _
  $region49: #{seq2seq_forward.2} parent=0 // pred_fallthru
    _

// kernel: seq2seq_forward.3
$region0: #{seq2seq_forward.3}
  #allocation0 [shape = 'u32[]', space=smem, size = 0x4, offset = 0x4, fixed_abs, tag = 'smem constant byte address 0x4 - core index']
  #allocation1 [shape = 'u32[144,128]{1,0:T(1,128)}', space=vmem, size = 0x12000, scoped, tag = 'internal scratch']
  %s0 = inlined_call_operand.vmem [shape: f32[2,16], index: 0, kind: input, shape index: {}]
  %s1 = inlined_call_operand.vmem [shape: f32[2,32], index: 1, kind: input, shape index: {}]
  %s2 = inlined_call_operand.vmem [shape: f32[2,32], index: 2, kind: input, shape index: {}]
  %s3 = inlined_call_operand.vmem [shape: f32[2,8,32], index: 3, kind: input, shape index: {}]
  %s4 = inlined_call_operand.vmem [shape: f32[2,8,32], index: 4, kind: input, shape index: {}]
  %s5 = inlined_call_operand.vmem [shape: f32[2,8,1], index: 5, kind: input, shape index: {}]
  %s6 = inlined_call_operand.vmem [shape: f32[32,32], index: 6, kind: input, shape index: {}]
  %s7 = inlined_call_operand.vmem [shape: f32[1,32], index: 7, kind: input, shape index: {}]
  %s8 = inlined_call_operand.vmem [shape: f32[80,128], index: 8, kind: input, shape index: {}]
  %s9 = inlined_call_operand.vmem [shape: f32[1,128], index: 9, kind: input, shape index: {}]
  %s10 = inlined_call_operand.vmem [shape: f32[80,128], index: 10, kind: input, shape index: {}]
  %s11 = inlined_call_operand.vmem [shape: f32[1,128], index: 11, kind: input, shape index: {}]
  %s12 = inlined_call_operand.vmem [shape: f32[128,16], index: 12, kind: input, shape index: {}]
  %s13 = inlined_call_operand.vmem [shape: f32[5,2,128], index: 13, kind: output, shape index: {0}]
  %s14 = inlined_call_operand.vmem [shape: f32[5,2,8,1], index: 14, kind: output, shape index: {1}]
  %15 = xla_tuple %s13, %s14
  %s16 = sld [smem:[#allocation0]]
  $region70: #{seq2seq_forward.3} parent=0
    _
  %s18 = ssub.s32 1, %s16
  %s19 = scalar_select 0, %s18, %s16
  // Predicated region
  $region2: #{seq2seq_forward.3} parent=0 // pred_check
    _
  $region3: #{seq2seq_forward.3} parent=0 // pred_check_branch
    %21 = sbr.rel (0) target = $region5
  $region4: #{seq2seq_forward.3} parent=0 // pred_region
    _
  $region5: #{seq2seq_forward.3} parent=0 // pred_fallthru
    _
  // Predicated region
  $region6: #{seq2seq_forward.3} parent=0 // pred_check
    _
  $region7: #{seq2seq_forward.3} parent=0 // pred_check_branch
    %23 = sbr.rel (0) target = $region9
  $region8: #{seq2seq_forward.3} parent=0 // pred_region
    _
  $region9: #{seq2seq_forward.3} parent=0 // pred_fallthru
    _
  // Predicated region
  $region10: #{seq2seq_forward.3} parent=0 // pred_check
    _
  $region11: #{seq2seq_forward.3} parent=0 // pred_check_branch
    %25 = sbr.rel (0) target = $region13
  $region12: #{seq2seq_forward.3} parent=0 // pred_region
    _
  $region13: #{seq2seq_forward.3} parent=0 // pred_fallthru
    _
  // Predicated region
  $region14: #{seq2seq_forward.3} parent=0 // pred_check
    _
  $region15: #{seq2seq_forward.3} parent=0 // pred_check_branch
    %27 = sbr.rel (0) target = $region17
  $region16: #{seq2seq_forward.3} parent=0 // pred_region
    _
  $region17: #{seq2seq_forward.3} parent=0 // pred_fallthru
    _
  // Predicated region
  $region18: #{seq2seq_forward.3} parent=0 // pred_check
    _
  $region19: #{seq2seq_forward.3} parent=0 // pred_check_branch
    %29 = sbr.rel (0) target = $region21
  $region20: #{seq2seq_forward.3} parent=0 // pred_region
    _
  $region21: #{seq2seq_forward.3} parent=0 // pred_fallthru
    _
  // Predicated region
  $region22: #{seq2seq_forward.3} parent=0 // pred_check
    _
  $region23: #{seq2seq_forward.3} parent=0 // pred_check_branch
    %31 = sbr.rel (0) target = $region25
  $region24: #{seq2seq_forward.3} parent=0 // pred_region
    _
  $region25: #{seq2seq_forward.3} parent=0 // pred_fallthru
    _
  // Predicated region
  $region26: #{seq2seq_forward.3} parent=0 // pred_check
    _
  $region27: #{seq2seq_forward.3} parent=0 // pred_check_branch
    %33 = sbr.rel (0) target = $region29
  $region28: #{seq2seq_forward.3} parent=0 // pred_region
    _
  $region29: #{seq2seq_forward.3} parent=0 // pred_fallthru
    _
  // Predicated region
  $region30: #{seq2seq_forward.3} parent=0 // pred_check
    _
  $region31: #{seq2seq_forward.3} parent=0 // pred_check_branch
    %35 = sbr.rel (0) target = $region33
  $region32: #{seq2seq_forward.3} parent=0 // pred_region
    _
  $region33: #{seq2seq_forward.3} parent=0 // pred_fallthru
    _
  // Predicated region
  $region34: #{seq2seq_forward.3} parent=0 // pred_check
    _
  $region35: #{seq2seq_forward.3} parent=0 // pred_check_branch
    %37 = sbr.rel (0) target = $region37
  $region36: #{seq2seq_forward.3} parent=0 // pred_region
    _
  $region37: #{seq2seq_forward.3} parent=0 // pred_fallthru
    _
  // Predicated region
  $region38: #{seq2seq_forward.3} parent=0 // pred_check
    _
  $region39: #{seq2seq_forward.3} parent=0 // pred_check_branch
    %39 = sbr.rel (0) target = $region41
  $region40: #{seq2seq_forward.3} parent=0 // pred_region
    _
  $region41: #{seq2seq_forward.3} parent=0 // pred_fallthru
    _
  // Predicated region
  $region42: #{seq2seq_forward.3} parent=0 // pred_check
    _
  $region43: #{seq2seq_forward.3} parent=0 // pred_check_branch
    %41 = sbr.rel (0) target = $region45
  $region44: #{seq2seq_forward.3} parent=0 // pred_region
    _
  $region45: #{seq2seq_forward.3} parent=0 // pred_fallthru
    _
  // Predicated region
  $region46: #{seq2seq_forward.3} parent=0 // pred_check
    _
  $region47: #{seq2seq_forward.3} parent=0 // pred_check_branch
    %43 = sbr.rel (0) target = $region49
  $region48: #{seq2seq_forward.3} parent=0 // pred_region
    _
  $region49: #{seq2seq_forward.3} parent=0 // pred_fallthru
    _
  // Predicated region
  $region50: #{seq2seq_forward.3} parent=0 // pred_check
    _
  $region51: #{seq2seq_forward.3} parent=0 // pred_check_branch
    %45 = sbr.rel (0) target = $region53
  $region52: #{seq2seq_forward.3} parent=0 // pred_region
    _
  $region53: #{seq2seq_forward.3} parent=0 // pred_fallthru
    _
  %v46 = vld [vmem:[%s3] sm:$0xff]
  %v47 = vld [vmem:[%s3 + $0x8] sm:$0xff]
  %v48 = vld [vmem:[%s4] sm:$0xff]
  %v49 = vld [vmem:[%s4 + $0x8] sm:$0xff]
  %v50 = vld [vmem:[%s5] sm:$0xff]
  %v51 = vld [vmem:[%s5 + $0x8] sm:$0xff]
  %vm52 = vcmp.gt.f32.partialorder %v50, 0.0
  %vm53 = vcmp.gt.f32.partialorder %v51, 0.0
  %v54 = vld [vmem:[%s6] sm:$0xff]
  %v55 = vld [vmem:[%s6 + $0x8] sm:$0xff]
  %v56 = vld [vmem:[%s6 + $0x10] sm:$0xff]
  %v57 = vld [vmem:[%s6 + $0x18] sm:$0xff]
  %v58 = vld [vmem:[%s7] sm:$0x1]
  %v60 = vlaneseq
  %v61 = vshrl.u32 %v60, 7
  %v62 = vsub.s32 0, %v61
  %v63 = vrot.slane %v58, %v62
  %v65 = vld [vmem:[%s9] sm:$0x1]
  %v67 = vlaneseq
  %v68 = vshrl.u32 %v67, 7
  %v69 = vsub.s32 0, %v68
  %v70 = vrot.slane %v65, %v69
  %v72 = vld [vmem:[%s11] sm:$0x1]
  %v74 = vlaneseq
  %v75 = vshrl.u32 %v74, 7
  %v76 = vsub.s32 0, %v75
  %v77 = vrot.slane %v72, %v76
  %v79 = vld [vmem:[%s2] sm:$0x3]
  %v80 = vlaneseq
  %v81 = vand.u32 %v80, 127
  %vm82 = vcmp.ge.s32.totalorder %v81, 64
  %vm83 = vcmp.lt.s32.totalorder %v81, 96
  %vm84 = vmand %vm82, %vm83
  %v85 = vcvt.s32.f32 %v81
  %v86 = vld [vmem:[%s1] sm:$0x3]
  %v87 = vld [vmem:[%s0] sm:$0x3]
  %vm88 = vcmask 261120
  %v90 = vsel %vm88, %v86, 0
  %92 = vmatprep.subr.mxu0 0.0
  %93 = vmatpush1.msra.mxu0 %v54
  %94 = vmatprep.subr.mxu0 0.0
  %95 = vmatpush1.msra.mxu0 %v55
  %96 = vmatprep.subr.mxu0 0.0
  %97 = vmatpush1.msra.mxu0 %v56
  %98 = vmatprep.subr.mxu0 0.0
  %99 = vmatpush1.msra.mxu0 %v57
  %100 = vmatprep.subr.mxu0 0.0
  %101 = vmatpush1.msra.mxu0 0.0
  %102 = vmatprep.subr.mxu0 0.0
  %103 = vmatpush1.msra.mxu0 0.0
  %104 = vmatprep.subr.mxu0 0.0
  %105 = vmatpush1.msra.mxu0 0.0
  %106 = vmatprep.subr.mxu0 0.0
  %107 = vmatpush1.msra.mxu0 0.0
  %108 = vmatprep.subr.mxu0 0.0
  %109 = vmatpush1.msra.mxu0 0.0
  %110 = vmatprep.subr.mxu0 0.0
  %111 = vmatpush1.msra.mxu0 0.0
  %112 = vmatprep.subr.mxu0 0.0
  %113 = vmatpush1.msra.mxu0 0.0
  %114 = vmatprep.subr.mxu0 0.0
  %115 = vmatpush1.msra.mxu0 0.0
  %116 = vmatprep.subr.mxu0 0.0
  %117 = vmatpush1.msra.mxu0 0.0
  %118 = vmatprep.subr.mxu0 0.0
  %119 = vmatpush1.msra.mxu0 0.0
  %120 = vmatprep.subr.mxu0 0.0
  %121 = vmatpush1.msra.mxu0 0.0
  %122 = vmatprep.subr.mxu0 0.0
  %123 = vmatpush1.msra.mxu0 0.0
  %124 = vmatprep.subr.mxu0 0.0
  %125 = vmatpush1.msra.mxu0 0.0
  %126 = vmatprep.subr.mxu0 0.0
  %127 = vmatpush1.msra.mxu0 0.0
  %128 = vmatprep.subr.mxu0 0.0
  %129 = vmatpush1.msra.mxu0 0.0
  %130 = vmatprep.subr.mxu0 0.0
  %131 = vmatpush1.msra.mxu0 0.0
  %132 = vmatprep.subr.mxu0 0.0
  %133 = vmatpush1.msra.mxu0 0.0
  %134 = vmatprep.subr.mxu0 0.0
  %135 = vmatpush1.msra.mxu0 0.0
  %136 = vmatprep.subr.mxu0 0.0
  %137 = vmatpush1.msra.mxu0 0.0
  %138 = vmatprep.subr.mxu0 0.0
  %139 = vmatpush1.msra.mxu0 0.0
  %140 = vmatprep.subr.mxu0 0.0
  %141 = vmatpush1.msra.mxu0 0.0
  %142 = vmatprep.subr.mxu0 0.0
  %143 = vmatpush1.msra.mxu0 0.0
  %144 = vmatprep.subr.mxu0 0.0
  %145 = vmatpush1.msra.mxu0 0.0
  %146 = vmatprep.subr.mxu0 0.0
  %147 = vmatpush1.msra.mxu0 0.0
  %148 = vmatprep.subr.mxu0 0.0
  %149 = vmatpush1.msra.mxu0 0.0
  %150 = vmatprep.subr.mxu0 0.0
  %151 = vmatpush1.msra.mxu0 0.0
  %152 = vmatprep.subr.mxu0 0.0
  %153 = vmatpush1.msra.mxu0 0.0
  %154 = vmatprep.subr.mxu0 0.0
  %155 = vmatpush1.msra.mxu0 0.0
  %156 = vmatprep.mubr.f32.mxu0 0.0
  %157 = vmatmul.mubr.f32.gmra.mrb[0].mxu0 %v90
  %v158 = vpop.f32.mrb[0].mxu0
  %v159 = vadd.f32 0.0, %v158
  %v160 = vpop.f32.mrb[0].mxu0
  %161 = vdwg.mxu0
  %v164 = vunpack.c.l.s4 1966171168
  %v165 = vunpack.c.0.s8 %v164
  %v166 = vlaneseq
  %v167 = vshrl.u32 %v166, 7
  %v168 = vsub.s32 %v165, %v167
  %v169 = vrot.slane %v159, %v168
  %v170 = vcombine.high %v169, %v169
  %v172 = vunpack.c.l.s4 1966171168
  %v173 = vunpack.c.0.s8 %v172
  %v174 = vlaneseq
  %v175 = vshrl.u32 %v174, 7
  %v176 = vsub.s32 %v173, %v175
  %v177 = vrot.slane %v169, %v176
  %v179 = vunpack.c.l.s4 1966171168
  %v180 = vunpack.c.0.s8 %v179
  %v181 = vlaneseq
  %v182 = vshrl.u32 %v181, 7
  %v183 = vsub.s32 %v180, %v182
  %v184 = vrot.slane %v170, %v183
  %v185 = vlaneseq
  %v186 = vshrl.u32 %v185, 7
  %v187 = vsub.s32 0, %v186
  %v188 = vrot.slane %v177, %v187
  %v189 = vlaneseq
  %v190 = vshrl.u32 %v189, 7
  %v191 = vsub.s32 0, %v190
  %v192 = vrot.slane %v184, %v191
  %v195 = vadd.f32 %v188, %v48
  %v196 = vadd.f32 %v192, %v49
  %v197 = vtanh.pop %v195
  %v198 = vtanh.pop %v196
  %v199 = vmul.f32 %v63, %v197
  %v200 = vmul.f32 %v63, %v198
  %v201 = vsel %vm88, %v199, 0.0
  %202 = vadd.xlane.f32.xlu0 %v201
  %v203 = vpop.xlane.xlu0 %202
  %v204 = vsel %vm88, %v200, 0.0
  %205 = vadd.xlane.f32.xlu0 %v204
  %v206 = vpop.xlane.xlu0 %205
  %v207 = vsel %vm52, %v203, -1e+10
  %v208 = vsel %vm53, %v206, -1e+10
  %vm209 = vcmask 7168
  %v210 = vsel %vm209, %v207, -inf
  %v211 = vrot.slane %v210, 4
  %v212 = vmax.f32 %v210, %v211
  %v213 = vrot.slane %v212, 2
  %v214 = vmax.f32 %v212, %v213
  %v215 = vrot.slane %v214, 1
  %v216 = vmax.f32 %v214, %v215
  %v217 = vsel %vm209, %v208, -inf
  %v218 = vrot.slane %v217, 4
  %v219 = vmax.f32 %v217, %v218
  %v220 = vrot.slane %v219, 2
  %v221 = vmax.f32 %v219, %v220
  %v222 = vrot.slane %v221, 1
  %v223 = vmax.f32 %v221, %v222
  %v224 = vsub.f32 %v207, %v216
  %v225 = vsub.f32 %v208, %v223
  %v226 = vmul.f32 %v224, 1.442695
  %v227 = vpow.pop %v226
  %v228 = vmul.f32 %v225, 1.442695
  %v229 = vpow.pop %v228
  %v230 = vsel %vm209, %v227, 0.0
  %v231 = vrot.slane %v230, 4
  %v232 = vadd.f32 %v230, %v231
  %v233 = vrot.slane %v232, 2
  %v234 = vadd.f32 %v232, %v233
  %v235 = vrot.slane %v234, 1
  %v236 = vadd.f32 %v234, %v235
  %v237 = vsel %vm209, %v229, 0.0
  %v238 = vrot.slane %v237, 4
  %v239 = vadd.f32 %v237, %v238
  %v240 = vrot.slane %v239, 2
  %v241 = vadd.f32 %v239, %v240
  %v242 = vrot.slane %v241, 1
  %v243 = vadd.f32 %v241, %v242
  %v244 = vrcp.pop %v236
  %v245 = vmul.f32 %v227, %v244
  %v246 = vrcp.pop %v243
  %v247 = vmul.f32 %v229, %v246
  %249 = vset.pattern.permute.xlu0 0
  %250 = vperm.xlu0 %249, %v245
  %v251 = vpop.permute.xlu0 %250
  %254 = vset.pattern.permute.xlu0 0
  %255 = vperm.xlu0 %254, %v247
  %v256 = vpop.permute.xlu0 %255
  %v258 = vmul.f32 %v251, %v46
  %v259 = vmul.f32 %v256, %v47
  %v260 = vsel %vm88, %v258, 0.0
  %v261 = vrot.slane %v260, 4
  %v262 = vadd.f32 %v260, %v261
  %v263 = vrot.slane %v262, 2
  %v264 = vadd.f32 %v262, %v263
  %v265 = vrot.slane %v264, 1
  %v266 = vadd.f32 %v264, %v265
  %v267 = vsel %vm88, %v259, 0.0
  %v268 = vrot.slane %v267, 4
  %v269 = vadd.f32 %v267, %v268
  %v270 = vrot.slane %v269, 2
  %v271 = vadd.f32 %v269, %v270
  %v272 = vrot.slane %v271, 1
  %v273 = vadd.f32 %v271, %v272
  %vm276 = vcmask 1041409
  %v277 = vsel %vm276, %v273, %v266
  %278 = vrot.lane.b32.xlu0 %v277, 16
  %v279 = vpop.permute.xlu0 %278
  %281 = vrot.lane.b32.xlu0 %v86, 48
  %v282 = vpop.permute.xlu0 %281
  %vm284 = vcmask 130048
  %v285 = vsel %vm284, %v87, %v279
  %vm286 = vcmask 392192
  %v287 = vsel %vm286, %v285, %v282
  %v288 = vld [vmem:[%s8] sm:$0xff]
  %v289 = vld [vmem:[%s8 + $0x8] sm:$0xff]
  %v290 = vld [vmem:[%s8 + $0x10] sm:$0xff]
  %v291 = vld [vmem:[%s8 + $0x18] sm:$0xff]
  %v292 = vld [vmem:[%s8 + $0x20] sm:$0xff]
  %v293 = vld [vmem:[%s8 + $0x28] sm:$0xff]
  %v294 = vld [vmem:[%s8 + $0x30] sm:$0xff]
  %v295 = vld [vmem:[%s8 + $0x38] sm:$0xff]
  %v296 = vld [vmem:[%s8 + $0x40] sm:$0xff]
  %v297 = vld [vmem:[%s8 + $0x48] sm:$0xff]
  %vm298 = vcmask 654336
  %v300 = vsel %vm298, %v287, 0
  %302 = vmatprep.subr.mxu0 0.0
  %303 = vmatpush1.msra.mxu0 %v288
  %304 = vmatprep.subr.mxu0 0.0
  %305 = vmatpush1.msra.mxu0 %v289
  %306 = vmatprep.subr.mxu0 0.0
  %307 = vmatpush1.msra.mxu0 %v290
  %308 = vmatprep.subr.mxu0 0.0
  %309 = vmatpush1.msra.mxu0 %v291
  %310 = vmatprep.subr.mxu0 0.0
  %311 = vmatpush1.msra.mxu0 %v292
  %312 = vmatprep.subr.mxu0 0.0
  %313 = vmatpush1.msra.mxu0 %v293
  %314 = vmatprep.subr.mxu0 0.0
  %315 = vmatpush1.msra.mxu0 %v294
  %316 = vmatprep.subr.mxu0 0.0
  %317 = vmatpush1.msra.mxu0 %v295
  %318 = vmatprep.subr.mxu0 0.0
  %319 = vmatpush1.msra.mxu0 %v296
  %320 = vmatprep.subr.mxu0 0.0
  %321 = vmatpush1.msra.mxu0 %v297
  %322 = vmatprep.subr.mxu0 0.0
  %323 = vmatpush1.msra.mxu0 0.0
  %324 = vmatprep.subr.mxu0 0.0
  %325 = vmatpush1.msra.mxu0 0.0
  %326 = vmatprep.subr.mxu0 0.0
  %327 = vmatpush1.msra.mxu0 0.0
  %328 = vmatprep.subr.mxu0 0.0
  %329 = vmatpush1.msra.mxu0 0.0
  %330 = vmatprep.subr.mxu0 0.0
  %331 = vmatpush1.msra.mxu0 0.0
  %332 = vmatprep.subr.mxu0 0.0
  %333 = vmatpush1.msra.mxu0 0.0
  %334 = vmatprep.subr.mxu0 0.0
  %335 = vmatpush1.msra.mxu0 0.0
  %336 = vmatprep.subr.mxu0 0.0
  %337 = vmatpush1.msra.mxu0 0.0
  %338 = vmatprep.subr.mxu0 0.0
  %339 = vmatpush1.msra.mxu0 0.0
  %340 = vmatprep.subr.mxu0 0.0
  %341 = vmatpush1.msra.mxu0 0.0
  %342 = vmatprep.subr.mxu0 0.0
  %343 = vmatpush1.msra.mxu0 0.0
  %344 = vmatprep.subr.mxu0 0.0
  %345 = vmatpush1.msra.mxu0 0.0
  %346 = vmatprep.subr.mxu0 0.0
  %347 = vmatpush1.msra.mxu0 0.0
  %348 = vmatprep.subr.mxu0 0.0
  %349 = vmatpush1.msra.mxu0 0.0
  %350 = vmatprep.subr.mxu0 0.0
  %351 = vmatpush1.msra.mxu0 0.0
  %352 = vmatprep.subr.mxu0 0.0
  %353 = vmatpush1.msra.mxu0 0.0
  %354 = vmatprep.subr.mxu0 0.0
  %355 = vmatpush1.msra.mxu0 0.0
  %356 = vmatprep.subr.mxu0 0.0
  %357 = vmatpush1.msra.mxu0 0.0
  %358 = vmatprep.subr.mxu0 0.0
  %359 = vmatpush1.msra.mxu0 0.0
  %360 = vmatprep.subr.mxu0 0.0
  %361 = vmatpush1.msra.mxu0 0.0
  %362 = vmatprep.subr.mxu0 0.0
  %363 = vmatpush1.msra.mxu0 0.0
  %364 = vmatprep.subr.mxu0 0.0
  %365 = vmatpush1.msra.mxu0 0.0
  %366 = vmatprep.mubr.f32.mxu0 0.0
  %367 = vmatmul.mubr.f32.gmra.mrb[0].mxu0 %v300
  %v368 = vpop.f32.mrb[0].mxu0
  %v369 = vadd.f32 %v70, %v368
  %v370 = vpop.f32.mrb[0].mxu0
  %371 = vdwg.mxu0
  %v372 = vtanh.pop %v369
  %v373 = vxor.u32 %v369, 2147483648
  %v374 = vmul.f32 %v373, 1.442695
  %v375 = vpow.pop %v374
  %v376 = vadd.f32 %v375, 1.0
  %v377 = vrcp.pop %v376
  %v378 = vmul.f32 1.0, %v377
  %v379 = vsel %vm84, %v372, %v378
  %381 = vrot.lane.b32.xlu0 %v79, 32
  %v382 = vpop.permute.xlu0 %381
  %v384 = vmul.f32 %v379, %v382
  %386 = vrot.lane.b32.xlu0 %v379, 64
  %v387 = vpop.permute.xlu0 %386
  %v389 = vmul.f32 %v379, %v387
  %391 = vrot.lane.b32.xlu0 %v389, 32
  %v392 = vpop.permute.xlu0 %391
  %v394 = vadd.f32 %v384, %v392
  %v395 = vtanh.pop %v394
  %397 = vrot.lane.b32.xlu0 %v395, 64
  %v398 = vpop.permute.xlu0 %397
  %v400 = vmul.f32 %v379, %v398
  %402 = vrot.lane.b32.xlu0 %v400, 32
  %v403 = vpop.permute.xlu0 %402
  %405 = vrot.lane.b32.xlu0 %v277, 32
  %v406 = vpop.permute.xlu0 %405
  %409 = vrot.lane.b32.xlu0 %v87, 64
  %v410 = vpop.permute.xlu0 %409
  %v412 = vsel %vm88, %v403, %v406
  %vm413 = vcmask 523264
  %v414 = vsel %vm413, %v412, %v410
  %v415 = vld [vmem:[%s10] sm:$0xff]
  %v416 = vld [vmem:[%s10 + $0x8] sm:$0xff]
  %v417 = vld [vmem:[%s10 + $0x10] sm:$0xff]
  %v418 = vld [vmem:[%s10 + $0x18] sm:$0xff]
  %v419 = vld [vmem:[%s10 + $0x20] sm:$0xff]
  %v420 = vld [vmem:[%s10 + $0x28] sm:$0xff]
  %v421 = vld [vmem:[%s10 + $0x30] sm:$0xff]
  %v422 = vld [vmem:[%s10 + $0x38] sm:$0xff]
  %v423 = vld [vmem:[%s10 + $0x40] sm:$0xff]
  %v424 = vld [vmem:[%s10 + $0x48] sm:$0xff]
  %v426 = vsel %vm298, %v414, 0
  %428 = vmatprep.subr.mxu0 0.0
  %429 = vmatpush1.msra.mxu0 %v415
  %430 = vmatprep.subr.mxu0 0.0
  %431 = vmatpush1.msra.mxu0 %v416
  %432 = vmatprep.subr.mxu0 0.0
  %433 = vmatpush1.msra.mxu0 %v417
  %434 = vmatprep.subr.mxu0 0.0
  %435 = vmatpush1.msra.mxu0 %v418
  %436 = vmatprep.subr.mxu0 0.0
  %437 = vmatpush1.msra.mxu0 %v419
  %438 = vmatprep.subr.mxu0 0.0
  %439 = vmatpush1.msra.mxu0 %v420
  %440 = vmatprep.subr.mxu0 0.0
  %441 = vmatpush1.msra.mxu0 %v421
  %442 = vmatprep.subr.mxu0 0.0
  %443 = vmatpush1.msra.mxu0 %v422
  %444 = vmatprep.subr.mxu0 0.0
  %445 = vmatpush1.msra.mxu0 %v423
  %446 = vmatprep.subr.mxu0 0.0
  %447 = vmatpush1.msra.mxu0 %v424
  %448 = vmatprep.subr.mxu0 0.0
  %449 = vmatpush1.msra.mxu0 0.0
  %450 = vmatprep.subr.mxu0 0.0
  %451 = vmatpush1.msra.mxu0 0.0
  %452 = vmatprep.subr.mxu0 0.0
  %453 = vmatpush1.msra.mxu0 0.0
  %454 = vmatprep.subr.mxu0 0.0
  %455 = vmatpush1.msra.mxu0 0.0
  %456 = vmatprep.subr.mxu0 0.0
  %457 = vmatpush1.msra.mxu0 0.0
  %458 = vmatprep.subr.mxu0 0.0
  %459 = vmatpush1.msra.mxu0 0.0
  %460 = vmatprep.subr.mxu0 0.0
  %461 = vmatpush1.msra.mxu0 0.0
  %462 = vmatprep.subr.mxu0 0.0
  %463 = vmatpush1.msra.mxu0 0.0
  %464 = vmatprep.subr.mxu0 0.0
  %465 = vmatpush1.msra.mxu0 0.0
  %466 = vmatprep.subr.mxu0 0.0
  %467 = vmatpush1.msra.mxu0 0.0
  %468 = vmatprep.subr.mxu0 0.0
  %469 = vmatpush1.msra.mxu0 0.0
  %470 = vmatprep.subr.mxu0 0.0
  %471 = vmatpush1.msra.mxu0 0.0
  %472 = vmatprep.subr.mxu0 0.0
  %473 = vmatpush1.msra.mxu0 0.0
  %474 = vmatprep.subr.mxu0 0.0
  %475 = vmatpush1.msra.mxu0 0.0
  %476 = vmatprep.subr.mxu0 0.0
  %477 = vmatpush1.msra.mxu0 0.0
  %478 = vmatprep.subr.mxu0 0.0
  %479 = vmatpush1.msra.mxu0 0.0
  %480 = vmatprep.subr.mxu0 0.0
  %481 = vmatpush1.msra.mxu0 0.0
  %482 = vmatprep.subr.mxu0 0.0
  %483 = vmatpush1.msra.mxu0 0.0
  %484 = vmatprep.subr.mxu0 0.0
  %485 = vmatpush1.msra.mxu0 0.0
  %486 = vmatprep.subr.mxu0 0.0
  %487 = vmatpush1.msra.mxu0 0.0
  %488 = vmatprep.subr.mxu0 0.0
  %489 = vmatpush1.msra.mxu0 0.0
  %490 = vmatprep.subr.mxu0 0.0
  %491 = vmatpush1.msra.mxu0 0.0
  %492 = vmatprep.mubr.f32.mxu0 0.0
  %493 = vmatmul.mubr.f32.gmra.mrb[0].mxu0 %v426
  %v494 = vpop.f32.mrb[0].mxu0
  %v495 = vadd.f32 %v77, %v494
  %v496 = vpop.f32.mrb[0].mxu0
  %497 = vdwg.mxu0
  %498 = vst [vmem:[%s13] sm:$0x3] %v495
  %499 = vst.msk [vmem:[%s14] sm:$0xff] %vm209, %v245
  %500 = vst.msk [vmem:[%s14 + $0x8] sm:$0xff] %vm209, %v247
  %vm501 = vcmask 1041408
  %v502 = vsel %vm501, %v495, -inf
  %503 = vmax.xlane.f32.xlu0 %v502
  %v504 = vpop.xlane.xlu0 %503
  %vm505 = vcmp.eq.f32.partialorder %v495, %v504
  %v506 = vsel %vm505, %v85, 128.0
  %v507 = vsel %vm501, %v506, inf
  %508 = vmin.xlane.f32.xlu0 %v507
  %v509 = vpop.xlane.xlu0 %508
  %vm510 = vcmp.eq.f32.partialorder %v85, %v509
  %v511 = vsel %vm510, 1, 0
  %v512 = vcvt.s32.f32 %v511
  %v513 = vld [vmem:[%s12] sm:$0xff]
  %v514 = vld [vmem:[%s12 + $0x8] sm:$0xff]
  %v515 = vld [vmem:[%s12 + $0x10] sm:$0xff]
  %v516 = vld [vmem:[%s12 + $0x18] sm:$0xff]
  %v517 = vld [vmem:[%s12 + $0x20] sm:$0xff]
  %v518 = vld [vmem:[%s12 + $0x28] sm:$0xff]
  %v519 = vld [vmem:[%s12 + $0x30] sm:$0xff]
  %v520 = vld [vmem:[%s12 + $0x38] sm:$0xff]
  %v521 = vld [vmem:[%s12 + $0x40] sm:$0xff]
  %v522 = vld [vmem:[%s12 + $0x48] sm:$0xff]
  %v523 = vld [vmem:[%s12 + $0x50] sm:$0xff]
  %v524 = vld [vmem:[%s12 + $0x58] sm:$0xff]
  %v525 = vld [vmem:[%s12 + $0x60] sm:$0xff]
  %v526 = vld [vmem:[%s12 + $0x68] sm:$0xff]
  %v527 = vld [vmem:[%s12 + $0x70] sm:$0xff]
  %v528 = vld [vmem:[%s12 + $0x78] sm:$0xff]
  %529 = vmatprep.subr.mxu0 0.0
  %530 = vmatpush1.msra.mxu0 %v513
  %531 = vmatprep.subr.mxu0 0.0
  %532 = vmatpush1.msra.mxu0 %v514
  %533 = vmatprep.subr.mxu0 0.0
  %534 = vmatpush1.msra.mxu0 %v515
  %535 = vmatprep.subr.mxu0 0.0
  %536 = vmatpush1.msra.mxu0 %v516
  %537 = vmatprep.subr.mxu0 0.0
  %538 = vmatpush1.msra.mxu0 %v517
  %539 = vmatprep.subr.mxu0 0.0
  %540 = vmatpush1.msra.mxu0 %v518
  %541 = vmatprep.subr.mxu0 0.0
  %542 = vmatpush1.msra.mxu0 %v519
  %543 = vmatprep.subr.mxu0 0.0
  %544 = vmatpush1.msra.mxu0 %v520
  %545 = vmatprep.subr.mxu0 0.0
  %546 = vmatpush1.msra.mxu0 %v521
  %547 = vmatprep.subr.mxu0 0.0
  %548 = vmatpush1.msra.mxu0 %v522
  %549 = vmatprep.subr.mxu0 0.0
  %550 = vmatpush1.msra.mxu0 %v523
  %551 = vmatprep.subr.mxu0 0.0
  %552 = vmatpush1.msra.mxu0 %v524
  %553 = vmatprep.subr.mxu0 0.0
  %554 = vmatpush1.msra.mxu0 %v525
  %555 = vmatprep.subr.mxu0 0.0
  %556 = vmatpush1.msra.mxu0 %v526
  %557 = vmatprep.subr.mxu0 0.0
  %558 = vmatpush1.msra.mxu0 %v527
  %559 = vmatprep.subr.mxu0 0.0
  %560 = vmatpush1.msra.mxu0 %v528
  %561 = vmatprep.subr.mxu0 0.0
  %562 = vmatpush1.msra.mxu0 0.0
  %563 = vmatprep.subr.mxu0 0.0
  %564 = vmatpush1.msra.mxu0 0.0
  %565 = vmatprep.subr.mxu0 0.0
  %566 = vmatpush1.msra.mxu0 0.0
  %567 = vmatprep.subr.mxu0 0.0
  %568 = vmatpush1.msra.mxu0 0.0
  %569 = vmatprep.subr.mxu0 0.0
  %570 = vmatpush1.msra.mxu0 0.0
  %571 = vmatprep.subr.mxu0 0.0
  %572 = vmatpush1.msra.mxu0 0.0
  %573 = vmatprep.subr.mxu0 0.0
  %574 = vmatpush1.msra.mxu0 0.0
  %575 = vmatprep.subr.mxu0 0.0
  %576 = vmatpush1.msra.mxu0 0.0
  %577 = vmatprep.subr.mxu0 0.0
  %578 = vmatpush1.msra.mxu0 0.0
  %579 = vmatprep.subr.mxu0 0.0
  %580 = vmatpush1.msra.mxu0 0.0
  %581 = vmatprep.subr.mxu0 0.0
  %582 = vmatpush1.msra.mxu0 0.0
  %583 = vmatprep.subr.mxu0 0.0
  %584 = vmatpush1.msra.mxu0 0.0
  %585 = vmatprep.subr.mxu0 0.0
  %586 = vmatpush1.msra.mxu0 0.0
  %587 = vmatprep.subr.mxu0 0.0
  %588 = vmatpush1.msra.mxu0 0.0
  %589 = vmatprep.subr.mxu0 0.0
  %590 = vmatpush1.msra.mxu0 0.0
  %591 = vmatprep.subr.mxu0 0.0
  %592 = vmatpush1.msra.mxu0 0.0
  %593 = vmatprep.mubr.f32.mxu0 0.0
  %594 = vmatmul.mubr.f32.gmra.mrb[0].mxu0 %v512
  %v595 = vpop.f32.mrb[0].mxu0
  %v596 = vadd.f32 0.0, %v595
  %v597 = vpop.f32.mrb[0].mxu0
  %598 = vdwg.mxu0
  %v599 = vsel %vm88, %v403, 0
  %601 = vmatprep.subr.mxu0 0.0
  %602 = vmatpush1.msra.mxu0 %v54
  %603 = vmatprep.subr.mxu0 0.0
  %604 = vmatpush1.msra.mxu0 %v55
  %605 = vmatprep.subr.mxu0 0.0
  %606 = vmatpush1.msra.mxu0 %v56
  %607 = vmatprep.subr.mxu0 0.0
  %608 = vmatpush1.msra.mxu0 %v57
  %609 = vmatprep.subr.mxu0 0.0
  %610 = vmatpush1.msra.mxu0 0.0
  %611 = vmatprep.subr.mxu0 0.0
  %612 = vmatpush1.msra.mxu0 0.0
  %613 = vmatprep.subr.mxu0 0.0
  %614 = vmatpush1.msra.mxu0 0.0
  %615 = vmatprep.subr.mxu0 0.0
  %616 = vmatpush1.msra.mxu0 0.0
  %617 = vmatprep.subr.mxu0 0.0
  %618 = vmatpush1.msra.mxu0 0.0
  %619 = vmatprep.subr.mxu0 0.0
  %620 = vmatpush1.msra.mxu0 0.0
  %621 = vmatprep.subr.mxu0 0.0
  %622 = vmatpush1.msra.mxu0 0.0
  %623 = vmatprep.subr.mxu0 0.0
  %624 = vmatpush1.msra.mxu0 0.0
  %625 = vmatprep.subr.mxu0 0.0
  %626 = vmatpush1.msra.mxu0 0.0
  %627 = vmatprep.subr.mxu0 0.0
  %628 = vmatpush1.msra.mxu0 0.0
  %629 = vmatprep.subr.mxu0 0.0
  %630 = vmatpush1.msra.mxu0 0.0
  %631 = vmatprep.subr.mxu0 0.0
  %632 = vmatpush1.msra.mxu0 0.0
  %633 = vmatprep.subr.mxu0 0.0
  %634 = vmatpush1.msra.mxu0 0.0
  %635 = vmatprep.subr.mxu0 0.0
  %636 = vmatpush1.msra.mxu0 0.0
  %637 = vmatprep.subr.mxu0 0.0
  %638 = vmatpush1.msra.mxu0 0.0
  %639 = vmatprep.subr.mxu0 0.0
  %640 = vmatpush1.msra.mxu0 0.0
  %641 = vmatprep.subr.mxu0 0.0
  %642 = vmatpush1.msra.mxu0 0.0
  %643 = vmatprep.subr.mxu0 0.0
  %644 = vmatpush1.msra.mxu0 0.0
  %645 = vmatprep.subr.mxu0 0.0
  %646 = vmatpush1.msra.mxu0 0.0
  %647 = vmatprep.subr.mxu0 0.0
  %648 = vmatpush1.msra.mxu0 0.0
  %649 = vmatprep.subr.mxu0 0.0
  %650 = vmatpush1.msra.mxu0 0.0
  %651 = vmatprep.subr.mxu0 0.0
  %652 = vmatpush1.msra.mxu0 0.0
  %653 = vmatprep.subr.mxu0 0.0
  %654 = vmatpush1.msra.mxu0 0.0
  %655 = vmatprep.subr.mxu0 0.0
  %656 = vmatpush1.msra.mxu0 0.0
  %657 = vmatprep.subr.mxu0 0.0
  %658 = vmatpush1.msra.mxu0 0.0
  %659 = vmatprep.subr.mxu0 0.0
  %660 = vmatpush1.msra.mxu0 0.0
  %661 = vmatprep.subr.mxu0 0.0
  %662 = vmatpush1.msra.mxu0 0.0
  %663 = vmatprep.subr.mxu0 0.0
  %664 = vmatpush1.msra.mxu0 0.0
  %665 = vmatprep.mubr.f32.mxu0 0.0
  %666 = vmatmul.mubr.f32.gmra.mrb[0].mxu0 %v599
  %v667 = vpop.f32.mrb[0].mxu0
  %v668 = vadd.f32 0.0, %v667
  %v669 = vpop.f32.mrb[0].mxu0
  %670 = vdwg.mxu0
  %v673 = vunpack.c.l.s4 1966171168
  %v674 = vunpack.c.0.s8 %v673
  %v675 = vlaneseq
  %v676 = vshrl.u32 %v675, 7
  %v677 = vsub.s32 %v674, %v676
  %v678 = vrot.slane %v668, %v677
  %v679 = vcombine.high %v678, %v678
  %v681 = vunpack.c.l.s4 1966171168
  %v682 = vunpack.c.0.s8 %v681
  %v683 = vlaneseq
  %v684 = vshrl.u32 %v683, 7
  %v685 = vsub.s32 %v682, %v684
  %v686 = vrot.slane %v678, %v685
  %v688 = vunpack.c.l.s4 1966171168
  %v689 = vunpack.c.0.s8 %v688
  %v690 = vlaneseq
  %v691 = vshrl.u32 %v690, 7
  %v692 = vsub.s32 %v689, %v691
  %v693 = vrot.slane %v679, %v692
  %v694 = vlaneseq
  %v695 = vshrl.u32 %v694, 7
  %v696 = vsub.s32 0, %v695
  %v697 = vrot.slane %v686, %v696
  %v698 = vlaneseq
  %v699 = vshrl.u32 %v698, 7
  %v700 = vsub.s32 0, %v699
  %v701 = vrot.slane %v693, %v700
  %v704 = vadd.f32 %v697, %v48
  %v705 = vadd.f32 %v701, %v49
  %v706 = vtanh.pop %v704
  %v707 = vtanh.pop %v705
  %v708 = vmul.f32 %v63, %v706
  %v709 = vmul.f32 %v63, %v707
  %v710 = vsel %vm88, %v708, 0.0
  %711 = vadd.xlane.f32.xlu0 %v710
  %v712 = vpop.xlane.xlu0 %711
  %v713 = vsel %vm88, %v709, 0.0
  %714 = vadd.xlane.f32.xlu0 %v713
  %v715 = vpop.xlane.xlu0 %714
  %v716 = vsel %vm52, %v712, -1e+10
  %v717 = vsel %vm53, %v715, -1e+10
  %v718 = vsel %vm209, %v716, -inf
  %v719 = vrot.slane %v718, 4
  %v720 = vmax.f32 %v718, %v719
  %v721 = vrot.slane %v720, 2
  %v722 = vmax.f32 %v720, %v721
  %v723 = vrot.slane %v722, 1
  %v724 = vmax.f32 %v722, %v723
  %v725 = vsel %vm209, %v717, -inf
  %v726 = vrot.slane %v725, 4
  %v727 = vmax.f32 %v725, %v726
  %v728 = vrot.slane %v727, 2
  %v729 = vmax.f32 %v727, %v728
  %v730 = vrot.slane %v729, 1
  %v731 = vmax.f32 %v729, %v730
  %v732 = vsub.f32 %v716, %v724
  %v733 = vsub.f32 %v717, %v731
  %v734 = vmul.f32 %v732, 1.442695
  %v735 = vpow.pop %v734
  %v736 = vmul.f32 %v733, 1.442695
  %v737 = vpow.pop %v736
  %v738 = vsel %vm209, %v735, 0.0
  %v739 = vrot.slane %v738, 4
  %v740 = vadd.f32 %v738, %v739
  %v741 = vrot.slane %v740, 2
  %v742 = vadd.f32 %v740, %v741
  %v743 = vrot.slane %v742, 1
  %v744 = vadd.f32 %v742, %v743
  %v745 = vsel %vm209, %v737, 0.0
  %v746 = vrot.slane %v745, 4
  %v747 = vadd.f32 %v745, %v746
  %v748 = vrot.slane %v747, 2
  %v749 = vadd.f32 %v747, %v748
  %v750 = vrot.slane %v749, 1
  %v751 = vadd.f32 %v749, %v750
  %v752 = vrcp.pop %v744
  %v753 = vmul.f32 %v735, %v752
  %v754 = vrcp.pop %v751
  %v755 = vmul.f32 %v737, %v754
  %757 = vset.pattern.permute.xlu0 0
  %758 = vperm.xlu0 %757, %v753
  %v759 = vpop.permute.xlu0 %758
  %762 = vset.pattern.permute.xlu0 0
  %763 = vperm.xlu0 %762, %v755
  %v764 = vpop.permute.xlu0 %763
  %v766 = vmul.f32 %v759, %v46
  %v767 = vmul.f32 %v764, %v47
  %v768 = vsel %vm88, %v766, 0.0
  %v769 = vrot.slane %v768, 4
  %v770 = vadd.f32 %v768, %v769
  %v771 = vrot.slane %v770, 2
  %v772 = vadd.f32 %v770, %v771
  %v773 = vrot.slane %v772, 1
  %v774 = vadd.f32 %v772, %v773
  %v775 = vsel %vm88, %v767, 0.0
  %v776 = vrot.slane %v775, 4
  %v777 = vadd.f32 %v775, %v776
  %v778 = vrot.slane %v777, 2
  %v779 = vadd.f32 %v777, %v778
  %v780 = vrot.slane %v779, 1
  %v781 = vadd.f32 %v779, %v780
  %v784 = vsel %vm276, %v781, %v774
  %785 = vrot.lane.b32.xlu0 %v784, 16
  %v786 = vpop.permute.xlu0 %785
  %788 = vrot.lane.b32.xlu0 %v400, 80
  %v789 = vpop.permute.xlu0 %788
  %v791 = vsel %vm284, %v596, %v786
  %v792 = vsel %vm286, %v791, %v789
  %v793 = vld [vmem:[%s8] sm:$0xff]
  %v794 = vld [vmem:[%s8 + $0x8] sm:$0xff]
  %v795 = vld [vmem:[%s8 + $0x10] sm:$0xff]
  %v796 = vld [vmem:[%s8 + $0x18] sm:$0xff]
  %v797 = vld [vmem:[%s8 + $0x20] sm:$0xff]
  %v798 = vld [vmem:[%s8 + $0x28] sm:$0xff]
  %v799 = vld [vmem:[%s8 + $0x30] sm:$0xff]
  %v800 = vld [vmem:[%s8 + $0x38] sm:$0xff]
  %v801 = vld [vmem:[%s8 + $0x40] sm:$0xff]
  %v802 = vld [vmem:[%s8 + $0x48] sm:$0xff]
  %v804 = vsel %vm298, %v792, 0
  %806 = vmatprep.subr.mxu0 0.0
  %807 = vmatpush1.msra.mxu0 %v793
  %808 = vmatprep.subr.mxu0 0.0
  %809 = vmatpush1.msra.mxu0 %v794
  %810 = vmatprep.subr.mxu0 0.0
  %811 = vmatpush1.msra.mxu0 %v795
  %812 = vmatprep.subr.mxu0 0.0
  %813 = vmatpush1.msra.mxu0 %v796
  %814 = vmatprep.subr.mxu0 0.0
  %815 = vmatpush1.msra.mxu0 %v797
  %816 = vmatprep.subr.mxu0 0.0
  %817 = vmatpush1.msra.mxu0 %v798
  %818 = vmatprep.subr.mxu0 0.0
  %819 = vmatpush1.msra.mxu0 %v799
  %820 = vmatprep.subr.mxu0 0.0
  %821 = vmatpush1.msra.mxu0 %v800
  %822 = vmatprep.subr.mxu0 0.0
  %823 = vmatpush1.msra.mxu0 %v801
  %824 = vmatprep.subr.mxu0 0.0
  %825 = vmatpush1.msra.mxu0 %v802
  %826 = vmatprep.subr.mxu0 0.0
  %827 = vmatpush1.msra.mxu0 0.0
  %828 = vmatprep.subr.mxu0 0.0
  %829 = vmatpush1.msra.mxu0 0.0
  %830 = vmatprep.subr.mxu0 0.0
  %831 = vmatpush1.msra.mxu0 0.0
  %832 = vmatprep.subr.mxu0 0.0
  %833 = vmatpush1.msra.mxu0 0.0
  %834 = vmatprep.subr.mxu0 0.0
  %835 = vmatpush1.msra.mxu0 0.0
  %836 = vmatprep.subr.mxu0 0.0
  %837 = vmatpush1.msra.mxu0 0.0
  %838 = vmatprep.subr.mxu0 0.0
  %839 = vmatpush1.msra.mxu0 0.0
  %840 = vmatprep.subr.mxu0 0.0
  %841 = vmatpush1.msra.mxu0 0.0
  %842 = vmatprep.subr.mxu0 0.0
  %843 = vmatpush1.msra.mxu0 0.0
  %844 = vmatprep.subr.mxu0 0.0
  %845 = vmatpush1.msra.mxu0 0.0
  %846 = vmatprep.subr.mxu0 0.0
  %847 = vmatpush1.msra.mxu0 0.0
  %848 = vmatprep.subr.mxu0 0.0
  %849 = vmatpush1.msra.mxu0 0.0
  %850 = vmatprep.subr.mxu0 0.0
  %851 = vmatpush1.msra.mxu0 0.0
  %852 = vmatprep.subr.mxu0 0.0
  %853 = vmatpush1.msra.mxu0 0.0
  %854 = vmatprep.subr.mxu0 0.0
  %855 = vmatpush1.msra.mxu0 0.0
  %856 = vmatprep.subr.mxu0 0.0
  %857 = vmatpush1.msra.mxu0 0.0
  %858 = vmatprep.subr.mxu0 0.0
  %859 = vmatpush1.msra.mxu0 0.0
  %860 = vmatprep.subr.mxu0 0.0
  %861 = vmatpush1.msra.mxu0 0.0
  %862 = vmatprep.subr.mxu0 0.0
  %863 = vmatpush1.msra.mxu0 0.0
  %864 = vmatprep.subr.mxu0 0.0
  %865 = vmatpush1.msra.mxu0 0.0
  %866 = vmatprep.subr.mxu0 0.0
  %867 = vmatpush1.msra.mxu0 0.0
  %868 = vmatprep.subr.mxu0 0.0
  %869 = vmatpush1.msra.mxu0 0.0
  %870 = vmatprep.mubr.f32.mxu0 0.0
  %871 = vmatmul.mubr.f32.gmra.mrb[0].mxu0 %v804
  %v872 = vpop.f32.mrb[0].mxu0
  %v873 = vadd.f32 %v70, %v872
  %v874 = vpop.f32.mrb[0].mxu0
  %875 = vdwg.mxu0
  %v876 = vtanh.pop %v873
  %v877 = vxor.u32 %v873, 2147483648
  %v878 = vmul.f32 %v877, 1.442695
  %v879 = vpow.pop %v878
  %v880 = vadd.f32 %v879, 1.0
  %v881 = vrcp.pop %v880
  %v882 = vmul.f32 1.0, %v881
  %v883 = vsel %vm84, %v876, %v882
  %v884 = vmul.f32 %v883, %v382
  %886 = vrot.lane.b32.xlu0 %v883, 64
  %v887 = vpop.permute.xlu0 %886
  %v889 = vmul.f32 %v883, %v887
  %891 = vrot.lane.b32.xlu0 %v889, 32
  %v892 = vpop.permute.xlu0 %891
  %v894 = vadd.f32 %v884, %v892
  %v895 = vtanh.pop %v894
  %897 = vrot.lane.b32.xlu0 %v895, 64
  %v898 = vpop.permute.xlu0 %897
  %v900 = vmul.f32 %v883, %v898
  %902 = vrot.lane.b32.xlu0 %v900, 32
  %v903 = vpop.permute.xlu0 %902
  %905 = vrot.lane.b32.xlu0 %v784, 32
  %v906 = vpop.permute.xlu0 %905
  %909 = vrot.lane.b32.xlu0 %v596, 64
  %v910 = vpop.permute.xlu0 %909
  %v912 = vsel %vm88, %v903, %v906
  %v913 = vsel %vm413, %v912, %v910
  %v914 = vld [vmem:[%s10] sm:$0xff]
  %v915 = vld [vmem:[%s10 + $0x8] sm:$0xff]
  %v916 = vld [vmem:[%s10 + $0x10] sm:$0xff]
  %v917 = vld [vmem:[%s10 + $0x18] sm:$0xff]
  %v918 = vld [vmem:[%s10 + $0x20] sm:$0xff]
  %v919 = vld [vmem:[%s10 + $0x28] sm:$0xff]
  %v920 = vld [vmem:[%s10 + $0x30] sm:$0xff]
  %v921 = vld [vmem:[%s10 + $0x38] sm:$0xff]
  %v922 = vld [vmem:[%s10 + $0x40] sm:$0xff]
  %v923 = vld [vmem:[%s10 + $0x48] sm:$0xff]
  %v925 = vsel %vm298, %v913, 0
  %927 = vmatprep.subr.mxu0 0.0
  %928 = vmatpush1.msra.mxu0 %v914
  %929 = vmatprep.subr.mxu0 0.0
  %930 = vmatpush1.msra.mxu0 %v915
  %931 = vmatprep.subr.mxu0 0.0
  %932 = vmatpush1.msra.mxu0 %v916
  %933 = vmatprep.subr.mxu0 0.0
  %934 = vmatpush1.msra.mxu0 %v917
  %935 = vmatprep.subr.mxu0 0.0
  %936 = vmatpush1.msra.mxu0 %v918
  %937 = vmatprep.subr.mxu0 0.0
  %938 = vmatpush1.msra.mxu0 %v919
  %939 = vmatprep.subr.mxu0 0.0
  %940 = vmatpush1.msra.mxu0 %v920
  %941 = vmatprep.subr.mxu0 0.0
  %942 = vmatpush1.msra.mxu0 %v921
  %943 = vmatprep.subr.mxu0 0.0
  %944 = vmatpush1.msra.mxu0 %v922
  %945 = vmatprep.subr.mxu0 0.0
  %946 = vmatpush1.msra.mxu0 %v923
  %947 = vmatprep.subr.mxu0 0.0
  %948 = vmatpush1.msra.mxu0 0.0
  %949 = vmatprep.subr.mxu0 0.0
  %950 = vmatpush1.msra.mxu0 0.0
  %951 = vmatprep.subr.mxu0 0.0
  %952 = vmatpush1.msra.mxu0 0.0
  %953 = vmatprep.subr.mxu0 0.0
  %954 = vmatpush1.msra.mxu0 0.0
  %955 = vmatprep.subr.mxu0 0.0
  %956 = vmatpush1.msra.mxu0 0.0
  %957 = vmatprep.subr.mxu0 0.0
  %958 = vmatpush1.msra.mxu0 0.0
  %959 = vmatprep.subr.mxu0 0.0
  %960 = vmatpush1.msra.mxu0 0.0
  %961 = vmatprep.subr.mxu0 0.0
  %962 = vmatpush1.msra.mxu0 0.0
  %963 = vmatprep.subr.mxu0 0.0
  %964 = vmatpush1.msra.mxu0 0.0
  %965 = vmatprep.subr.mxu0 0.0
  %966 = vmatpush1.msra.mxu0 0.0
  %967 = vmatprep.subr.mxu0 0.0
  %968 = vmatpush1.msra.mxu0 0.0
  %969 = vmatprep.subr.mxu0 0.0
  %970 = vmatpush1.msra.mxu0 0.0
  %971 = vmatprep.subr.mxu0 0.0
  %972 = vmatpush1.msra.mxu0 0.0
  %973 = vmatprep.subr.mxu0 0.0
  %974 = vmatpush1.msra.mxu0 0.0
  %975 = vmatprep.subr.mxu0 0.0
  %976 = vmatpush1.msra.mxu0 0.0
  %977 = vmatprep.subr.mxu0 0.0
  %978 = vmatpush1.msra.mxu0 0.0
  %979 = vmatprep.subr.mxu0 0.0
  %980 = vmatpush1.msra.mxu0 0.0
  %981 = vmatprep.subr.mxu0 0.0
  %982 = vmatpush1.msra.mxu0 0.0
  %983 = vmatprep.subr.mxu0 0.0
  %984 = vmatpush1.msra.mxu0 0.0
  %985 = vmatprep.subr.mxu0 0.0
  %986 = vmatpush1.msra.mxu0 0.0
  %987 = vmatprep.subr.mxu0 0.0
  %988 = vmatpush1.msra.mxu0 0.0
  %989 = vmatprep.subr.mxu0 0.0
  %990 = vmatpush1.msra.mxu0 0.0
  %991 = vmatprep.mubr.f32.mxu0 0.0
  %992 = vmatmul.mubr.f32.gmra.mrb[0].mxu0 %v925
  %v993 = vpop.f32.mrb[0].mxu0
  %v994 = vadd.f32 %v77, %v993
  %v995 = vpop.f32.mrb[0].mxu0
  %996 = vdwg.mxu0
  %s997 = scalar_lea.vmem %s13, 2
  %998 = vst [vmem:[%s997] sm:$0x3] %v994
  %s999 = scalar_lea.vmem %s14, 16
  %1000 = vst.msk [vmem:[%s999] sm:$0xff] %vm209, %v753
  %1001 = vst.msk [vmem:[%s999 + $0x8] sm:$0xff] %vm209, %v755
  %v1002 = vsel %vm501, %v994, -inf
  %1003 = vmax.xlane.f32.xlu0 %v1002
  %v1004 = vpop.xlane.xlu0 %1003
  %vm1005 = vcmp.eq.f32.partialorder %v994, %v1004
  %v1006 = vsel %vm1005, %v85, 128.0
  %v1007 = vsel %vm501, %v1006, inf
  %1008 = vmin.xlane.f32.xlu0 %v1007
  %v1009 = vpop.xlane.xlu0 %1008
  %vm1010 = vcmp.eq.f32.partialorder %v85, %v1009
  %v1011 = vsel %vm1010, 1, 0
  %v1012 = vcvt.s32.f32 %v1011
  %v1013 = vld [vmem:[%s12] sm:$0xff]
  %v1014 = vld [vmem:[%s12 + $0x8] sm:$0xff]
  %v1015 = vld [vmem:[%s12 + $0x10] sm:$0xff]
  %v1016 = vld [vmem:[%s12 + $0x18] sm:$0xff]
  %v1017 = vld [vmem:[%s12 + $0x20] sm:$0xff]
  %v1018 = vld [vmem:[%s12 + $0x28] sm:$0xff]
  %v1019 = vld [vmem:[%s12 + $0x30] sm:$0xff]
  %v1020 = vld [vmem:[%s12 + $0x38] sm:$0xff]
  %v1021 = vld [vmem:[%s12 + $0x40] sm:$0xff]
  %v1022 = vld [vmem:[%s12 + $0x48] sm:$0xff]
  %v1023 = vld [vmem:[%s12 + $0x50] sm:$0xff]
  %v1024 = vld [vmem:[%s12 + $0x58] sm:$0xff]
  %v1025 = vld [vmem:[%s12 + $0x60] sm:$0xff]
  %v1026 = vld [vmem:[%s12 + $0x68] sm:$0xff]
  %v1027 = vld [vmem:[%s12 + $0x70] sm:$0xff]
  %v1028 = vld [vmem:[%s12 + $0x78] sm:$0xff]
  %1029 = vmatprep.subr.mxu0 0.0
  %1030 = vmatpush1.msra.mxu0 %v1013
  %1031 = vmatprep.subr.mxu0 0.0
  %1032 = vmatpush1.msra.mxu0 %v1014
  %1033 = vmatprep.subr.mxu0 0.0
  %1034 = vmatpush1.msra.mxu0 %v1015
  %1035 = vmatprep.subr.mxu0 0.0
  %1036 = vmatpush1.msra.mxu0 %v1016
  %1037 = vmatprep.subr.mxu0 0.0
  %1038 = vmatpush1.msra.mxu0 %v1017
  %1039 = vmatprep.subr.mxu0 0.0
  %1040 = vmatpush1.msra.mxu0 %v1018
  %1041 = vmatprep.subr.mxu0 0.0
  %1042 = vmatpush1.msra.mxu0 %v1019
  %1043 = vmatprep.subr.mxu0 0.0
  %1044 = vmatpush1.msra.mxu0 %v1020
  %1045 = vmatprep.subr.mxu0 0.0
  %1046 = vmatpush1.msra.mxu0 %v1021
  %1047 = vmatprep.subr.mxu0 0.0
  %1048 = vmatpush1.msra.mxu0 %v1022
  %1049 = vmatprep.subr.mxu0 0.0
  %1050 = vmatpush1.msra.mxu0 %v1023
  %1051 = vmatprep.subr.mxu0 0.0
  %1052 = vmatpush1.msra.mxu0 %v1024
  %1053 = vmatprep.subr.mxu0 0.0
  %1054 = vmatpush1.msra.mxu0 %v1025
  %1055 = vmatprep.subr.mxu0 0.0
  %1056 = vmatpush1.msra.mxu0 %v1026
  %1057 = vmatprep.subr.mxu0 0.0
  %1058 = vmatpush1.msra.mxu0 %v1027
  %1059 = vmatprep.subr.mxu0 0.0
  %1060 = vmatpush1.msra.mxu0 %v1028
  %1061 = vmatprep.subr.mxu0 0.0
  %1062 = vmatpush1.msra.mxu0 0.0
  %1063 = vmatprep.subr.mxu0 0.0
  %1064 = vmatpush1.msra.mxu0 0.0
  %1065 = vmatprep.subr.mxu0 0.0
  %1066 = vmatpush1.msra.mxu0 0.0
  %1067 = vmatprep.subr.mxu0 0.0
  %1068 = vmatpush1.msra.mxu0 0.0
  %1069 = vmatprep.subr.mxu0 0.0
  %1070 = vmatpush1.msra.mxu0 0.0
  %1071 = vmatprep.subr.mxu0 0.0
  %1072 = vmatpush1.msra.mxu0 0.0
  %1073 = vmatprep.subr.mxu0 0.0
  %1074 = vmatpush1.msra.mxu0 0.0
  %1075 = vmatprep.subr.mxu0 0.0
  %1076 = vmatpush1.msra.mxu0 0.0
  %1077 = vmatprep.subr.mxu0 0.0
  %1078 = vmatpush1.msra.mxu0 0.0
  %1079 = vmatprep.subr.mxu0 0.0
  %1080 = vmatpush1.msra.mxu0 0.0
  %1081 = vmatprep.subr.mxu0 0.0
  %1082 = vmatpush1.msra.mxu0 0.0
  %1083 = vmatprep.subr.mxu0 0.0
  %1084 = vmatpush1.msra.mxu0 0.0
  %1085 = vmatprep.subr.mxu0 0.0
  %1086 = vmatpush1.msra.mxu0 0.0
  %1087 = vmatprep.subr.mxu0 0.0
  %1088 = vmatpush1.msra.mxu0 0.0
  %1089 = vmatprep.subr.mxu0 0.0
  %1090 = vmatpush1.msra.mxu0 0.0
  %1091 = vmatprep.subr.mxu0 0.0
  %1092 = vmatpush1.msra.mxu0 0.0
  %1093 = vmatprep.mubr.f32.mxu0 0.0
  %1094 = vmatmul.mubr.f32.gmra.mrb[0].mxu0 %v1012
  %v1095 = vpop.f32.mrb[0].mxu0
  %v1096 = vadd.f32 0.0, %v1095
  %v1097 = vpop.f32.mrb[0].mxu0
  %1098 = vdwg.mxu0
  %v1099 = vsel %vm88, %v903, 0
  %1101 = vmatprep.subr.mxu0 0.0
  %1102 = vmatpush1.msra.mxu0 %v54
  %1103 = vmatprep.subr.mxu0 0.0
  %1104 = vmatpush1.msra.mxu0 %v55
  %1105 = vmatprep.subr.mxu0 0.0
  %1106 = vmatpush1.msra.mxu0 %v56
  %1107 = vmatprep.subr.mxu0 0.0
  %1108 = vmatpush1.msra.mxu0 %v57
  %1109 = vmatprep.subr.mxu0 0.0
  %1110 = vmatpush1.msra.mxu0 0.0
  %1111 = vmatprep.subr.mxu0 0.0
  %1112 = vmatpush1.msra.mxu0 0.0
  %1113 = vmatprep.subr.mxu0 0.0
  %1114 = vmatpush1.msra.mxu0 0.0
  %1115 = vmatprep.subr.mxu0 0.0
  %1116 = vmatpush1.msra.mxu0 0.0
  %1117 = vmatprep.subr.mxu0 0.0
  %1118 = vmatpush1.msra.mxu0 0.0
  %1119 = vmatprep.subr.mxu0 0.0
  %1120 = vmatpush1.msra.mxu0 0.0
  %1121 = vmatprep.subr.mxu0 0.0
  %1122 = vmatpush1.msra.mxu0 0.0
  %1123 = vmatprep.subr.mxu0 0.0
  %1124 = vmatpush1.msra.mxu0 0.0
  %1125 = vmatprep.subr.mxu0 0.0
  %1126 = vmatpush1.msra.mxu0 0.0
  %1127 = vmatprep.subr.mxu0 0.0
  %1128 = vmatpush1.msra.mxu0 0.0
  %1129 = vmatprep.subr.mxu0 0.0
  %1130 = vmatpush1.msra.mxu0 0.0
  %1131 = vmatprep.subr.mxu0 0.0
  %1132 = vmatpush1.msra.mxu0 0.0
  %1133 = vmatprep.subr.mxu0 0.0
  %1134 = vmatpush1.msra.mxu0 0.0
  %1135 = vmatprep.subr.mxu0 0.0
  %1136 = vmatpush1.msra.mxu0 0.0
  %1137 = vmatprep.subr.mxu0 0.0
  %1138 = vmatpush1.msra.mxu0 0.0
  %1139 = vmatprep.subr.mxu0 0.0
  %1140 = vmatpush1.msra.mxu0 0.0
  %1141 = vmatprep.subr.mxu0 0.0
  %1142 = vmatpush1.msra.mxu0 0.0
  %1143 = vmatprep.subr.mxu0 0.0
  %1144 = vmatpush1.msra.mxu0 0.0
  %1145 = vmatprep.subr.mxu0 0.0
  %1146 = vmatpush1.msra.mxu0 0.0
  %1147 = vmatprep.subr.mxu0 0.0
  %1148 = vmatpush1.msra.mxu0 0.0
  %1149 = vmatprep.subr.mxu0 0.0
  %1150 = vmatpush1.msra.mxu0 0.0
  %1151 = vmatprep.subr.mxu0 0.0
  %1152 = vmatpush1.msra.mxu0 0.0
  %1153 = vmatprep.subr.mxu0 0.0
  %1154 = vmatpush1.msra.mxu0 0.0
  %1155 = vmatprep.subr.mxu0 0.0
  %1156 = vmatpush1.msra.mxu0 0.0
  %1157 = vmatprep.subr.mxu0 0.0
  %1158 = vmatpush1.msra.mxu0 0.0
  %1159 = vmatprep.subr.mxu0 0.0
  %1160 = vmatpush1.msra.mxu0 0.0
  %1161 = vmatprep.subr.mxu0 0.0
  %1162 = vmatpush1.msra.mxu0 0.0
  %1163 = vmatprep.subr.mxu0 0.0
  %1164 = vmatpush1.msra.mxu0 0.0
  %1165 = vmatprep.mubr.f32.mxu0 0.0
  %1166 = vmatmul.mubr.f32.gmra.mrb[0].mxu0 %v1099
  %v1167 = vpop.f32.mrb[0].mxu0
  %v1168 = vadd.f32 0.0, %v1167
  %v1169 = vpop.f32.mrb[0].mxu0
  %1170 = vdwg.mxu0
  %v1173 = vunpack.c.l.s4 1966171168
  %v1174 = vunpack.c.0.s8 %v1173
  %v1175 = vlaneseq
  %v1176 = vshrl.u32 %v1175, 7
  %v1177 = vsub.s32 %v1174, %v1176
  %v1178 = vrot.slane %v1168, %v1177
  %v1179 = vcombine.high %v1178, %v1178
  %v1181 = vunpack.c.l.s4 1966171168
  %v1182 = vunpack.c.0.s8 %v1181
  %v1183 = vlaneseq
  %v1184 = vshrl.u32 %v1183, 7
  %v1185 = vsub.s32 %v1182, %v1184
  %v1186 = vrot.slane %v1178, %v1185
  %v1188 = vunpack.c.l.s4 1966171168
  %v1189 = vunpack.c.0.s8 %v1188
  %v1190 = vlaneseq
  %v1191 = vshrl.u32 %v1190, 7
  %v1192 = vsub.s32 %v1189, %v1191
  %v1193 = vrot.slane %v1179, %v1192
  %v1194 = vlaneseq
  %v1195 = vshrl.u32 %v1194, 7
  %v1196 = vsub.s32 0, %v1195
  %v1197 = vrot.slane %v1186, %v1196
  %v1198 = vlaneseq
  %v1199 = vshrl.u32 %v1198, 7
  %v1200 = vsub.s32 0, %v1199
  %v1201 = vrot.slane %v1193, %v1200
  %v1204 = vadd.f32 %v1197, %v48
  %v1205 = vadd.f32 %v1201, %v49
  %v1206 = vtanh.pop %v1204
  %v1207 = vtanh.pop %v1205
  %v1208 = vmul.f32 %v63, %v1206
  %v1209 = vmul.f32 %v63, %v1207
  %v1210 = vsel %vm88, %v1208, 0.0
  %1211 = vadd.xlane.f32.xlu0 %v1210
  %v1212 = vpop.xlane.xlu0 %1211
  %v1213 = vsel %vm88, %v1209, 0.0
  %1214 = vadd.xlane.f32.xlu0 %v1213
  %v1215 = vpop.xlane.xlu0 %1214
  %v1216 = vsel %vm52, %v1212, -1e+10
  %v1217 = vsel %vm53, %v1215, -1e+10
  %v1218 = vsel %vm209, %v1216, -inf
  %v1219 = vrot.slane %v1218, 4
  %v1220 = vmax.f32 %v1218, %v1219
  %v1221 = vrot.slane %v1220, 2
  %v1222 = vmax.f32 %v1220, %v1221
  %v1223 = vrot.slane %v1222, 1
  %v1224 = vmax.f32 %v1222, %v1223
  %v1225 = vsel %vm209, %v1217, -inf
  %v1226 = vrot.slane %v1225, 4
  %v1227 = vmax.f32 %v1225, %v1226
  %v1228 = vrot.slane %v1227, 2
  %v1229 = vmax.f32 %v1227, %v1228
  %v1230 = vrot.slane %v1229, 1
  %v1231 = vmax.f32 %v1229, %v1230
  %v1232 = vsub.f32 %v1216, %v1224
  %v1233 = vsub.f32 %v1217, %v1231
  %v1234 = vmul.f32 %v1232, 1.442695
  %v1235 = vpow.pop %v1234
  %v1236 = vmul.f32 %v1233, 1.442695
  %v1237 = vpow.pop %v1236
  %v1238 = vsel %vm209, %v1235, 0.0
  %v1239 = vrot.slane %v1238, 4
  %v1240 = vadd.f32 %v1238, %v1239
  %v1241 = vrot.slane %v1240, 2
  %v1242 = vadd.f32 %v1240, %v1241
  %v1243 = vrot.slane %v1242, 1
  %v1244 = vadd.f32 %v1242, %v1243
  %v1245 = vsel %vm209, %v1237, 0.0
  %v1246 = vrot.slane %v1245, 4
  %v1247 = vadd.f32 %v1245, %v1246
  %v1248 = vrot.slane %v1247, 2
  %v1249 = vadd.f32 %v1247, %v1248
  %v1250 = vrot.slane %v1249, 1
  %v1251 = vadd.f32 %v1249, %v1250
  %v1252 = vrcp.pop %v1244
  %v1253 = vmul.f32 %v1235, %v1252
  %v1254 = vrcp.pop %v1251
  %v1255 = vmul.f32 %v1237, %v1254
  %1257 = vset.pattern.permute.xlu0 0
  %1258 = vperm.xlu0 %1257, %v1253
  %v1259 = vpop.permute.xlu0 %1258
  %1262 = vset.pattern.permute.xlu0 0
  %1263 = vperm.xlu0 %1262, %v1255
  %v1264 = vpop.permute.xlu0 %1263
  %v1266 = vmul.f32 %v1259, %v46
  %v1267 = vmul.f32 %v1264, %v47
  %v1268 = vsel %vm88, %v1266, 0.0
  %v1269 = vrot.slane %v1268, 4
  %v1270 = vadd.f32 %v1268, %v1269
  %v1271 = vrot.slane %v1270, 2
  %v1272 = vadd.f32 %v1270, %v1271
  %v1273 = vrot.slane %v1272, 1
  %v1274 = vadd.f32 %v1272, %v1273
  %v1275 = vsel %vm88, %v1267, 0.0
  %v1276 = vrot.slane %v1275, 4
  %v1277 = vadd.f32 %v1275, %v1276
  %v1278 = vrot.slane %v1277, 2
  %v1279 = vadd.f32 %v1277, %v1278
  %v1280 = vrot.slane %v1279, 1
  %v1281 = vadd.f32 %v1279, %v1280
  %v1284 = vsel %vm276, %v1281, %v1274
  %1285 = vrot.lane.b32.xlu0 %v1284, 16
  %v1286 = vpop.permute.xlu0 %1285
  %1288 = vrot.lane.b32.xlu0 %v900, 80
  %v1289 = vpop.permute.xlu0 %1288
  %v1291 = vsel %vm284, %v1096, %v1286
  %v1292 = vsel %vm286, %v1291, %v1289
  %v1293 = vld [vmem:[%s8] sm:$0xff]
  %v1294 = vld [vmem:[%s8 + $0x8] sm:$0xff]
  %v1295 = vld [vmem:[%s8 + $0x10] sm:$0xff]
  %v1296 = vld [vmem:[%s8 + $0x18] sm:$0xff]
  %v1297 = vld [vmem:[%s8 + $0x20] sm:$0xff]
  %v1298 = vld [vmem:[%s8 + $0x28] sm:$0xff]
  %v1299 = vld [vmem:[%s8 + $0x30] sm:$0xff]
  %v1300 = vld [vmem:[%s8 + $0x38] sm:$0xff]
  %v1301 = vld [vmem:[%s8 + $0x40] sm:$0xff]
  %v1302 = vld [vmem:[%s8 + $0x48] sm:$0xff]
  %v1304 = vsel %vm298, %v1292, 0
  %1306 = vmatprep.subr.mxu0 0.0
  %1307 = vmatpush1.msra.mxu0 %v1293
  %1308 = vmatprep.subr.mxu0 0.0
  %1309 = vmatpush1.msra.mxu0 %v1294
  %1310 = vmatprep.subr.mxu0 0.0
  %1311 = vmatpush1.msra.mxu0 %v1295
  %1312 = vmatprep.subr.mxu0 0.0
  %1313 = vmatpush1.msra.mxu0 %v1296
  %1314 = vmatprep.subr.mxu0 0.0
  %1315 = vmatpush1.msra.mxu0 %v1297
  %1316 = vmatprep.subr.mxu0 0.0
  %1317 = vmatpush1.msra.mxu0 %v1298
  %1318 = vmatprep.subr.mxu0 0.0
  %1319 = vmatpush1.msra.mxu0 %v1299
  %1320 = vmatprep.subr.mxu0 0.0
  %1321 = vmatpush1.msra.mxu0 %v1300
  %1322 = vmatprep.subr.mxu0 0.0
  %1323 = vmatpush1.msra.mxu0 %v1301
  %1324 = vmatprep.subr.mxu0 0.0
  %1325 = vmatpush1.msra.mxu0 %v1302
  %1326 = vmatprep.subr.mxu0 0.0
  %1327 = vmatpush1.msra.mxu0 0.0
  %1328 = vmatprep.subr.mxu0 0.0
  %1329 = vmatpush1.msra.mxu0 0.0
  %1330 = vmatprep.subr.mxu0 0.0
  %1331 = vmatpush1.msra.mxu0 0.0
  %1332 = vmatprep.subr.mxu0 0.0
  %1333 = vmatpush1.msra.mxu0 0.0
  %1334 = vmatprep.subr.mxu0 0.0
  %1335 = vmatpush1.msra.mxu0 0.0
  %1336 = vmatprep.subr.mxu0 0.0
  %1337 = vmatpush1.msra.mxu0 0.0
  %1338 = vmatprep.subr.mxu0 0.0
  %1339 = vmatpush1.msra.mxu0 0.0
  %1340 = vmatprep.subr.mxu0 0.0
  %1341 = vmatpush1.msra.mxu0 0.0
  %1342 = vmatprep.subr.mxu0 0.0
  %1343 = vmatpush1.msra.mxu0 0.0
  %1344 = vmatprep.subr.mxu0 0.0
  %1345 = vmatpush1.msra.mxu0 0.0
  %1346 = vmatprep.subr.mxu0 0.0
  %1347 = vmatpush1.msra.mxu0 0.0
  %1348 = vmatprep.subr.mxu0 0.0
  %1349 = vmatpush1.msra.mxu0 0.0
  %1350 = vmatprep.subr.mxu0 0.0
  %1351 = vmatpush1.msra.mxu0 0.0
  %1352 = vmatprep.subr.mxu0 0.0
  %1353 = vmatpush1.msra.mxu0 0.0
  %1354 = vmatprep.subr.mxu0 0.0
  %1355 = vmatpush1.msra.mxu0 0.0
  %1356 = vmatprep.subr.mxu0 0.0
  %1357 = vmatpush1.msra.mxu0 0.0
  %1358 = vmatprep.subr.mxu0 0.0
  %1359 = vmatpush1.msra.mxu0 0.0
  %1360 = vmatprep.subr.mxu0 0.0
  %1361 = vmatpush1.msra.mxu0 0.0
  %1362 = vmatprep.subr.mxu0 0.0
  %1363 = vmatpush1.msra.mxu0 0.0
  %1364 = vmatprep.subr.mxu0 0.0
  %1365 = vmatpush1.msra.mxu0 0.0
  %1366 = vmatprep.subr.mxu0 0.0
  %1367 = vmatpush1.msra.mxu0 0.0
  %1368 = vmatprep.subr.mxu0 0.0
  %1369 = vmatpush1.msra.mxu0 0.0
  %1370 = vmatprep.mubr.f32.mxu0 0.0
  %1371 = vmatmul.mubr.f32.gmra.mrb[0].mxu0 %v1304
  %v1372 = vpop.f32.mrb[0].mxu0
  %v1373 = vadd.f32 %v70, %v1372
  %v1374 = vpop.f32.mrb[0].mxu0
  %1375 = vdwg.mxu0
  %v1376 = vtanh.pop %v1373
  %v1377 = vxor.u32 %v1373, 2147483648
  %v1378 = vmul.f32 %v1377, 1.442695
  %v1379 = vpow.pop %v1378
  %v1380 = vadd.f32 %v1379, 1.0
  %v1381 = vrcp.pop %v1380
  %v1382 = vmul.f32 1.0, %v1381
  %v1383 = vsel %vm84, %v1376, %v1382
  %v1384 = vmul.f32 %v1383, %v382
  %1386 = vrot.lane.b32.xlu0 %v1383, 64
  %v1387 = vpop.permute.xlu0 %1386
  %v1389 = vmul.f32 %v1383, %v1387
  %1391 = vrot.lane.b32.xlu0 %v1389, 32
  %v1392 = vpop.permute.xlu0 %1391
  %v1394 = vadd.f32 %v1384, %v1392
  %v1395 = vtanh.pop %v1394
  %1397 = vrot.lane.b32.xlu0 %v1395, 64
  %v1398 = vpop.permute.xlu0 %1397
  %v1400 = vmul.f32 %v1383, %v1398
  %1402 = vrot.lane.b32.xlu0 %v1400, 32
  %v1403 = vpop.permute.xlu0 %1402
  %1405 = vrot.lane.b32.xlu0 %v1284, 32
  %v1406 = vpop.permute.xlu0 %1405
  %1409 = vrot.lane.b32.xlu0 %v1096, 64
  %v1410 = vpop.permute.xlu0 %1409
  %v1412 = vsel %vm88, %v1403, %v1406
  %v1413 = vsel %vm413, %v1412, %v1410
  %v1414 = vld [vmem:[%s10] sm:$0xff]
  %v1415 = vld [vmem:[%s10 + $0x8] sm:$0xff]
  %v1416 = vld [vmem:[%s10 + $0x10] sm:$0xff]
  %v1417 = vld [vmem:[%s10 + $0x18] sm:$0xff]
  %v1418 = vld [vmem:[%s10 + $0x20] sm:$0xff]
  %v1419 = vld [vmem:[%s10 + $0x28] sm:$0xff]
  %v1420 = vld [vmem:[%s10 + $0x30] sm:$0xff]
  %v1421 = vld [vmem:[%s10 + $0x38] sm:$0xff]
  %v1422 = vld [vmem:[%s10 + $0x40] sm:$0xff]
  %v1423 = vld [vmem:[%s10 + $0x48] sm:$0xff]
  %v1425 = vsel %vm298, %v1413, 0
  %1427 = vmatprep.subr.mxu0 0.0
  %1428 = vmatpush1.msra.mxu0 %v1414
  %1429 = vmatprep.subr.mxu0 0.0
  %1430 = vmatpush1.msra.mxu0 %v1415
  %1431 = vmatprep.subr.mxu0 0.0
  %1432 = vmatpush1.msra.mxu0 %v1416
  %1433 = vmatprep.subr.mxu0 0.0
  %1434 = vmatpush1.msra.mxu0 %v1417
  %1435 = vmatprep.subr.mxu0 0.0
  %1436 = vmatpush1.msra.mxu0 %v1418
  %1437 = vmatprep.subr.mxu0 0.0
  %1438 = vmatpush1.msra.mxu0 %v1419
  %1439 = vmatprep.subr.mxu0 0.0
  %1440 = vmatpush1.msra.mxu0 %v1420
  %1441 = vmatprep.subr.mxu0 0.0
  %1442 = vmatpush1.msra.mxu0 %v1421
  %1443 = vmatprep.subr.mxu0 0.0
  %1444 = vmatpush1.msra.mxu0 %v1422
  %1445 = vmatprep.subr.mxu0 0.0
  %1446 = vmatpush1.msra.mxu0 %v1423
  %1447 = vmatprep.subr.mxu0 0.0
  %1448 = vmatpush1.msra.mxu0 0.0
  %1449 = vmatprep.subr.mxu0 0.0
  %1450 = vmatpush1.msra.mxu0 0.0
  %1451 = vmatprep.subr.mxu0 0.0
  %1452 = vmatpush1.msra.mxu0 0.0
  %1453 = vmatprep.subr.mxu0 0.0
  %1454 = vmatpush1.msra.mxu0 0.0
  %1455 = vmatprep.subr.mxu0 0.0
  %1456 = vmatpush1.msra.mxu0 0.0
  %1457 = vmatprep.subr.mxu0 0.0
  %1458 = vmatpush1.msra.mxu0 0.0
  %1459 = vmatprep.subr.mxu0 0.0
  %1460 = vmatpush1.msra.mxu0 0.0
  %1461 = vmatprep.subr.mxu0 0.0
  %1462 = vmatpush1.msra.mxu0 0.0
  %1463 = vmatprep.subr.mxu0 0.0
  %1464 = vmatpush1.msra.mxu0 0.0
  %1465 = vmatprep.subr.mxu0 0.0
  %1466 = vmatpush1.msra.mxu0 0.0
  %1467 = vmatprep.subr.mxu0 0.0
  %1468 = vmatpush1.msra.mxu0 0.0
  %1469 = vmatprep.subr.mxu0 0.0
  %1470 = vmatpush1.msra.mxu0 0.0
  %1471 = vmatprep.subr.mxu0 0.0
  %1472 = vmatpush1.msra.mxu0 0.0
  %1473 = vmatprep.subr.mxu0 0.0
  %1474 = vmatpush1.msra.mxu0 0.0
  %1475 = vmatprep.subr.mxu0 0.0
  %1476 = vmatpush1.msra.mxu0 0.0
  %1477 = vmatprep.subr.mxu0 0.0
  %1478 = vmatpush1.msra.mxu0 0.0
  %1479 = vmatprep.subr.mxu0 0.0
  %1480 = vmatpush1.msra.mxu0 0.0
  %1481 = vmatprep.subr.mxu0 0.0
  %1482 = vmatpush1.msra.mxu0 0.0
  %1483 = vmatprep.subr.mxu0 0.0
  %1484 = vmatpush1.msra.mxu0 0.0
  %1485 = vmatprep.subr.mxu0 0.0
  %1486 = vmatpush1.msra.mxu0 0.0
  %1487 = vmatprep.subr.mxu0 0.0
  %1488 = vmatpush1.msra.mxu0 0.0
  %1489 = vmatprep.subr.mxu0 0.0
  %1490 = vmatpush1.msra.mxu0 0.0
  %1491 = vmatprep.mubr.f32.mxu0 0.0
  %1492 = vmatmul.mubr.f32.gmra.mrb[0].mxu0 %v1425
  %v1493 = vpop.f32.mrb[0].mxu0
  %v1494 = vadd.f32 %v77, %v1493
  %v1495 = vpop.f32.mrb[0].mxu0
  %1496 = vdwg.mxu0
  %s1497 = scalar_lea.vmem %s13, 4
  %1498 = vst [vmem:[%s1497] sm:$0x3] %v1494
  %s1499 = scalar_lea.vmem %s14, 32
  %1500 = vst.msk [vmem:[%s1499] sm:$0xff] %vm209, %v1253
  %1501 = vst.msk [vmem:[%s1499 + $0x8] sm:$0xff] %vm209, %v1255
  %v1502 = vsel %vm501, %v1494, -inf
  %1503 = vmax.xlane.f32.xlu0 %v1502
  %v1504 = vpop.xlane.xlu0 %1503
  %vm1505 = vcmp.eq.f32.partialorder %v1494, %v1504
  %v1506 = vsel %vm1505, %v85, 128.0
  %v1507 = vsel %vm501, %v1506, inf
  %1508 = vmin.xlane.f32.xlu0 %v1507
  %v1509 = vpop.xlane.xlu0 %1508
  %vm1510 = vcmp.eq.f32.partialorder %v85, %v1509
  %v1511 = vsel %vm1510, 1, 0
  %v1512 = vcvt.s32.f32 %v1511
  %v1513 = vld [vmem:[%s12] sm:$0xff]
  %v1514 = vld [vmem:[%s12 + $0x8] sm:$0xff]
  %v1515 = vld [vmem:[%s12 + $0x10] sm:$0xff]
  %v1516 = vld [vmem:[%s12 + $0x18] sm:$0xff]
  %v1517 = vld [vmem:[%s12 + $0x20] sm:$0xff]
  %v1518 = vld [vmem:[%s12 + $0x28] sm:$0xff]
  %v1519 = vld [vmem:[%s12 + $0x30] sm:$0xff]
  %v1520 = vld [vmem:[%s12 + $0x38] sm:$0xff]
  %v1521 = vld [vmem:[%s12 + $0x40] sm:$0xff]
  %v1522 = vld [vmem:[%s12 + $0x48] sm:$0xff]
  %v1523 = vld [vmem:[%s12 + $0x50] sm:$0xff]
  %v1524 = vld [vmem:[%s12 + $0x58] sm:$0xff]
  %v1525 = vld [vmem:[%s12 + $0x60] sm:$0xff]
  %v1526 = vld [vmem:[%s12 + $0x68] sm:$0xff]
  %v1527 = vld [vmem:[%s12 + $0x70] sm:$0xff]
  %v1528 = vld [vmem:[%s12 + $0x78] sm:$0xff]
  %1529 = vmatprep.subr.mxu0 0.0
  %1530 = vmatpush1.msra.mxu0 %v1513
  %1531 = vmatprep.subr.mxu0 0.0
  %1532 = vmatpush1.msra.mxu0 %v1514
  %1533 = vmatprep.subr.mxu0 0.0
  %1534 = vmatpush1.msra.mxu0 %v1515
  %1535 = vmatprep.subr.mxu0 0.0
  %1536 = vmatpush1.msra.mxu0 %v1516
  %1537 = vmatprep.subr.mxu0 0.0
  %1538 = vmatpush1.msra.mxu0 %v1517
  %1539 = vmatprep.subr.mxu0 0.0
  %1540 = vmatpush1.msra.mxu0 %v1518
  %1541 = vmatprep.subr.mxu0 0.0
  %1542 = vmatpush1.msra.mxu0 %v1519
  %1543 = vmatprep.subr.mxu0 0.0
  %1544 = vmatpush1.msra.mxu0 %v1520
  %1545 = vmatprep.subr.mxu0 0.0
  %1546 = vmatpush1.msra.mxu0 %v1521
  %1547 = vmatprep.subr.mxu0 0.0
  %1548 = vmatpush1.msra.mxu0 %v1522
  %1549 = vmatprep.subr.mxu0 0.0
  %1550 = vmatpush1.msra.mxu0 %v1523
  %1551 = vmatprep.subr.mxu0 0.0
  %1552 = vmatpush1.msra.mxu0 %v1524
  %1553 = vmatprep.subr.mxu0 0.0
  %1554 = vmatpush1.msra.mxu0 %v1525
  %1555 = vmatprep.subr.mxu0 0.0
  %1556 = vmatpush1.msra.mxu0 %v1526
  %1557 = vmatprep.subr.mxu0 0.0
  %1558 = vmatpush1.msra.mxu0 %v1527
  %1559 = vmatprep.subr.mxu0 0.0
  %1560 = vmatpush1.msra.mxu0 %v1528
  %1561 = vmatprep.subr.mxu0 0.0
  %1562 = vmatpush1.msra.mxu0 0.0
  %1563 = vmatprep.subr.mxu0 0.0
  %1564 = vmatpush1.msra.mxu0 0.0
  %1565 = vmatprep.subr.mxu0 0.0
  %1566 = vmatpush1.msra.mxu0 0.0
  %1567 = vmatprep.subr.mxu0 0.0
  %1568 = vmatpush1.msra.mxu0 0.0
  %1569 = vmatprep.subr.mxu0 0.0
  %1570 = vmatpush1.msra.mxu0 0.0
  %1571 = vmatprep.subr.mxu0 0.0
  %1572 = vmatpush1.msra.mxu0 0.0
  %1573 = vmatprep.subr.mxu0 0.0
  %1574 = vmatpush1.msra.mxu0 0.0
  %1575 = vmatprep.subr.mxu0 0.0
  %1576 = vmatpush1.msra.mxu0 0.0
  %1577 = vmatprep.subr.mxu0 0.0
  %1578 = vmatpush1.msra.mxu0 0.0
  %1579 = vmatprep.subr.mxu0 0.0
  %1580 = vmatpush1.msra.mxu0 0.0
  %1581 = vmatprep.subr.mxu0 0.0
  %1582 = vmatpush1.msra.mxu0 0.0
  %1583 = vmatprep.subr.mxu0 0.0
  %1584 = vmatpush1.msra.mxu0 0.0
  %1585 = vmatprep.subr.mxu0 0.0
  %1586 = vmatpush1.msra.mxu0 0.0
  %1587 = vmatprep.subr.mxu0 0.0
  %1588 = vmatpush1.msra.mxu0 0.0
  %1589 = vmatprep.subr.mxu0 0.0
  %1590 = vmatpush1.msra.mxu0 0.0
  %1591 = vmatprep.subr.mxu0 0.0
  %1592 = vmatpush1.msra.mxu0 0.0
  %1593 = vmatprep.mubr.f32.mxu0 0.0
  %1594 = vmatmul.mubr.f32.gmra.mrb[0].mxu0 %v1512
  %v1595 = vpop.f32.mrb[0].mxu0
  %v1596 = vadd.f32 0.0, %v1595
  %v1597 = vpop.f32.mrb[0].mxu0
  %1598 = vdwg.mxu0
  %v1599 = vsel %vm88, %v1403, 0
  %1601 = vmatprep.subr.mxu0 0.0
  %1602 = vmatpush1.msra.mxu0 %v54
  %1603 = vmatprep.subr.mxu0 0.0
  %1604 = vmatpush1.msra.mxu0 %v55
  %1605 = vmatprep.subr.mxu0 0.0
  %1606 = vmatpush1.msra.mxu0 %v56
  %1607 = vmatprep.subr.mxu0 0.0
  %1608 = vmatpush1.msra.mxu0 %v57
  %1609 = vmatprep.subr.mxu0 0.0
  %1610 = vmatpush1.msra.mxu0 0.0
  %1611 = vmatprep.subr.mxu0 0.0
  %1612 = vmatpush1.msra.mxu0 0.0
  %1613 = vmatprep.subr.mxu0 0.0
  %1614 = vmatpush1.msra.mxu0 0.0
  %1615 = vmatprep.subr.mxu0 0.0
  %1616 = vmatpush1.msra.mxu0 0.0
  %1617 = vmatprep.subr.mxu0 0.0
  %1618 = vmatpush1.msra.mxu0 0.0
  %1619 = vmatprep.subr.mxu0 0.0
  %1620 = vmatpush1.msra.mxu0 0.0
  %1621 = vmatprep.subr.mxu0 0.0
  %1622 = vmatpush1.msra.mxu0 0.0
  %1623 = vmatprep.subr.mxu0 0.0
  %1624 = vmatpush1.msra.mxu0 0.0
  %1625 = vmatprep.subr.mxu0 0.0
  %1626 = vmatpush1.msra.mxu0 0.0
  %1627 = vmatprep.subr.mxu0 0.0
  %1628 = vmatpush1.msra.mxu0 0.0
  %1629 = vmatprep.subr.mxu0 0.0
  %1630 = vmatpush1.msra.mxu0 0.0
  %1631 = vmatprep.subr.mxu0 0.0
  %1632 = vmatpush1.msra.mxu0 0.0
  %1633 = vmatprep.subr.mxu0 0.0
  %1634 = vmatpush1.msra.mxu0 0.0
  %1635 = vmatprep.subr.mxu0 0.0
  %1636 = vmatpush1.msra.mxu0 0.0
  %1637 = vmatprep.subr.mxu0 0.0
  %1638 = vmatpush1.msra.mxu0 0.0
  %1639 = vmatprep.subr.mxu0 0.0
  %1640 = vmatpush1.msra.mxu0 0.0
  %1641 = vmatprep.subr.mxu0 0.0
  %1642 = vmatpush1.msra.mxu0 0.0
  %1643 = vmatprep.subr.mxu0 0.0
  %1644 = vmatpush1.msra.mxu0 0.0
  %1645 = vmatprep.subr.mxu0 0.0
  %1646 = vmatpush1.msra.mxu0 0.0
  %1647 = vmatprep.subr.mxu0 0.0
  %1648 = vmatpush1.msra.mxu0 0.0
  %1649 = vmatprep.subr.mxu0 0.0
  %1650 = vmatpush1.msra.mxu0 0.0
  %1651 = vmatprep.subr.mxu0 0.0
  %1652 = vmatpush1.msra.mxu0 0.0
  %1653 = vmatprep.subr.mxu0 0.0
  %1654 = vmatpush1.msra.mxu0 0.0
  %1655 = vmatprep.subr.mxu0 0.0
  %1656 = vmatpush1.msra.mxu0 0.0
  %1657 = vmatprep.subr.mxu0 0.0
  %1658 = vmatpush1.msra.mxu0 0.0
  %1659 = vmatprep.subr.mxu0 0.0
  %1660 = vmatpush1.msra.mxu0 0.0
  %1661 = vmatprep.subr.mxu0 0.0
  %1662 = vmatpush1.msra.mxu0 0.0
  %1663 = vmatprep.subr.mxu0 0.0
  %1664 = vmatpush1.msra.mxu0 0.0
  %1665 = vmatprep.mubr.f32.mxu0 0.0
  %1666 = vmatmul.mubr.f32.gmra.mrb[0].mxu0 %v1599
  %v1667 = vpop.f32.mrb[0].mxu0
  %v1668 = vadd.f32 0.0, %v1667
  %v1669 = vpop.f32.mrb[0].mxu0
  %1670 = vdwg.mxu0
  %v1673 = vunpack.c.l.s4 1966171168
  %v1674 = vunpack.c.0.s8 %v1673
  %v1675 = vlaneseq
  %v1676 = vshrl.u32 %v1675, 7
  %v1677 = vsub.s32 %v1674, %v1676
  %v1678 = vrot.slane %v1668, %v1677
  %v1679 = vcombine.high %v1678, %v1678
  %v1681 = vunpack.c.l.s4 1966171168
  %v1682 = vunpack.c.0.s8 %v1681
  %v1683 = vlaneseq
  %v1684 = vshrl.u32 %v1683, 7
  %v1685 = vsub.s32 %v1682, %v1684
  %v1686 = vrot.slane %v1678, %v1685
  %v1688 = vunpack.c.l.s4 1966171168
  %v1689 = vunpack.c.0.s8 %v1688
  %v1690 = vlaneseq
  %v1691 = vshrl.u32 %v1690, 7
  %v1692 = vsub.s32 %v1689, %v1691
  %v1693 = vrot.slane %v1679, %v1692
  %v1694 = vlaneseq
  %v1695 = vshrl.u32 %v1694, 7
  %v1696 = vsub.s32 0, %v1695
  %v1697 = vrot.slane %v1686, %v1696
  %v1698 = vlaneseq
  %v1699 = vshrl.u32 %v1698, 7
  %v1700 = vsub.s32 0, %v1699
  %v1701 = vrot.slane %v1693, %v1700
  %v1704 = vadd.f32 %v1697, %v48
  %v1705 = vadd.f32 %v1701, %v49
  %v1706 = vtanh.pop %v1704
  %v1707 = vtanh.pop %v1705
  %v1708 = vmul.f32 %v63, %v1706
  %v1709 = vmul.f32 %v63, %v1707
  %v1710 = vsel %vm88, %v1708, 0.0
  %1711 = vadd.xlane.f32.xlu0 %v1710
  %v1712 = vpop.xlane.xlu0 %1711
  %v1713 = vsel %vm88, %v1709, 0.0
  %1714 = vadd.xlane.f32.xlu0 %v1713
  %v1715 = vpop.xlane.xlu0 %1714
  %v1716 = vsel %vm52, %v1712, -1e+10
  %v1717 = vsel %vm53, %v1715, -1e+10
  %v1718 = vsel %vm209, %v1716, -inf
  %v1719 = vrot.slane %v1718, 4
  %v1720 = vmax.f32 %v1718, %v1719
  %v1721 = vrot.slane %v1720, 2
  %v1722 = vmax.f32 %v1720, %v1721
  %v1723 = vrot.slane %v1722, 1
  %v1724 = vmax.f32 %v1722, %v1723
  %v1725 = vsel %vm209, %v1717, -inf
  %v1726 = vrot.slane %v1725, 4
  %v1727 = vmax.f32 %v1725, %v1726
  %v1728 = vrot.slane %v1727, 2
  %v1729 = vmax.f32 %v1727, %v1728
  %v1730 = vrot.slane %v1729, 1
  %v1731 = vmax.f32 %v1729, %v1730
  %v1732 = vsub.f32 %v1716, %v1724
  %v1733 = vsub.f32 %v1717, %v1731
  %v1734 = vmul.f32 %v1732, 1.442695
  %v1735 = vpow.pop %v1734
  %v1736 = vmul.f32 %v1733, 1.442695
  %v1737 = vpow.pop %v1736
  %v1738 = vsel %vm209, %v1735, 0.0
  %v1739 = vrot.slane %v1738, 4
  %v1740 = vadd.f32 %v1738, %v1739
  %v1741 = vrot.slane %v1740, 2
  %v1742 = vadd.f32 %v1740, %v1741
  %v1743 = vrot.slane %v1742, 1
  %v1744 = vadd.f32 %v1742, %v1743
  %v1745 = vsel %vm209, %v1737, 0.0
  %v1746 = vrot.slane %v1745, 4
  %v1747 = vadd.f32 %v1745, %v1746
  %v1748 = vrot.slane %v1747, 2
  %v1749 = vadd.f32 %v1747, %v1748
  %v1750 = vrot.slane %v1749, 1
  %v1751 = vadd.f32 %v1749, %v1750
  %v1752 = vrcp.pop %v1744
  %v1753 = vmul.f32 %v1735, %v1752
  %v1754 = vrcp.pop %v1751
  %v1755 = vmul.f32 %v1737, %v1754
  %1757 = vset.pattern.permute.xlu0 0
  %1758 = vperm.xlu0 %1757, %v1753
  %v1759 = vpop.permute.xlu0 %1758
  %1762 = vset.pattern.permute.xlu0 0
  %1763 = vperm.xlu0 %1762, %v1755
  %v1764 = vpop.permute.xlu0 %1763
  %v1766 = vmul.f32 %v1759, %v46
  %v1767 = vmul.f32 %v1764, %v47
  %v1768 = vsel %vm88, %v1766, 0.0
  %v1769 = vrot.slane %v1768, 4
  %v1770 = vadd.f32 %v1768, %v1769
  %v1771 = vrot.slane %v1770, 2
  %v1772 = vadd.f32 %v1770, %v1771
  %v1773 = vrot.slane %v1772, 1
  %v1774 = vadd.f32 %v1772, %v1773
  %v1775 = vsel %vm88, %v1767, 0.0
  %v1776 = vrot.slane %v1775, 4
  %v1777 = vadd.f32 %v1775, %v1776
  %v1778 = vrot.slane %v1777, 2
  %v1779 = vadd.f32 %v1777, %v1778
  %v1780 = vrot.slane %v1779, 1
  %v1781 = vadd.f32 %v1779, %v1780
  %v1784 = vsel %vm276, %v1781, %v1774
  %1785 = vrot.lane.b32.xlu0 %v1784, 16
  %v1786 = vpop.permute.xlu0 %1785
  %1788 = vrot.lane.b32.xlu0 %v1400, 80
  %v1789 = vpop.permute.xlu0 %1788
  %v1791 = vsel %vm284, %v1596, %v1786
  %v1792 = vsel %vm286, %v1791, %v1789
  %v1793 = vld [vmem:[%s8] sm:$0xff]
  %v1794 = vld [vmem:[%s8 + $0x8] sm:$0xff]
  %v1795 = vld [vmem:[%s8 + $0x10] sm:$0xff]
  %v1796 = vld [vmem:[%s8 + $0x18] sm:$0xff]
  %v1797 = vld [vmem:[%s8 + $0x20] sm:$0xff]
  %v1798 = vld [vmem:[%s8 + $0x28] sm:$0xff]
  %v1799 = vld [vmem:[%s8 + $0x30] sm:$0xff]
  %v1800 = vld [vmem:[%s8 + $0x38] sm:$0xff]
  %v1801 = vld [vmem:[%s8 + $0x40] sm:$0xff]
  %v1802 = vld [vmem:[%s8 + $0x48] sm:$0xff]
  %v1804 = vsel %vm298, %v1792, 0
  %1806 = vmatprep.subr.mxu0 0.0
  %1807 = vmatpush1.msra.mxu0 %v1793
  %1808 = vmatprep.subr.mxu0 0.0
  %1809 = vmatpush1.msra.mxu0 %v1794
  %1810 = vmatprep.subr.mxu0 0.0
  %1811 = vmatpush1.msra.mxu0 %v1795
  %1812 = vmatprep.subr.mxu0 0.0
  %1813 = vmatpush1.msra.mxu0 %v1796
  %1814 = vmatprep.subr.mxu0 0.0
  %1815 = vmatpush1.msra.mxu0 %v1797
  %1816 = vmatprep.subr.mxu0 0.0
  %1817 = vmatpush1.msra.mxu0 %v1798
  %1818 = vmatprep.subr.mxu0 0.0
  %1819 = vmatpush1.msra.mxu0 %v1799
  %1820 = vmatprep.subr.mxu0 0.0
  %1821 = vmatpush1.msra.mxu0 %v1800
  %1822 = vmatprep.subr.mxu0 0.0
  %1823 = vmatpush1.msra.mxu0 %v1801
  %1824 = vmatprep.subr.mxu0 0.0
  %1825 = vmatpush1.msra.mxu0 %v1802
  %1826 = vmatprep.subr.mxu0 0.0
  %1827 = vmatpush1.msra.mxu0 0.0
  %1828 = vmatprep.subr.mxu0 0.0
  %1829 = vmatpush1.msra.mxu0 0.0
  %1830 = vmatprep.subr.mxu0 0.0
  %1831 = vmatpush1.msra.mxu0 0.0
  %1832 = vmatprep.subr.mxu0 0.0
  %1833 = vmatpush1.msra.mxu0 0.0
  %1834 = vmatprep.subr.mxu0 0.0
  %1835 = vmatpush1.msra.mxu0 0.0
  %1836 = vmatprep.subr.mxu0 0.0
  %1837 = vmatpush1.msra.mxu0 0.0
  %1838 = vmatprep.subr.mxu0 0.0
  %1839 = vmatpush1.msra.mxu0 0.0
  %1840 = vmatprep.subr.mxu0 0.0
  %1841 = vmatpush1.msra.mxu0 0.0
  %1842 = vmatprep.subr.mxu0 0.0
  %1843 = vmatpush1.msra.mxu0 0.0
  %1844 = vmatprep.subr.mxu0 0.0
  %1845 = vmatpush1.msra.mxu0 0.0
  %1846 = vmatprep.subr.mxu0 0.0
  %1847 = vmatpush1.msra.mxu0 0.0
  %1848 = vmatprep.subr.mxu0 0.0
  %1849 = vmatpush1.msra.mxu0 0.0
  %1850 = vmatprep.subr.mxu0 0.0
  %1851 = vmatpush1.msra.mxu0 0.0
  %1852 = vmatprep.subr.mxu0 0.0
  %1853 = vmatpush1.msra.mxu0 0.0
  %1854 = vmatprep.subr.mxu0 0.0
  %1855 = vmatpush1.msra.mxu0 0.0
  %1856 = vmatprep.subr.mxu0 0.0
  %1857 = vmatpush1.msra.mxu0 0.0
  %1858 = vmatprep.subr.mxu0 0.0
  %1859 = vmatpush1.msra.mxu0 0.0
  %1860 = vmatprep.subr.mxu0 0.0
  %1861 = vmatpush1.msra.mxu0 0.0
  %1862 = vmatprep.subr.mxu0 0.0
  %1863 = vmatpush1.msra.mxu0 0.0
  %1864 = vmatprep.subr.mxu0 0.0
  %1865 = vmatpush1.msra.mxu0 0.0
  %1866 = vmatprep.subr.mxu0 0.0
  %1867 = vmatpush1.msra.mxu0 0.0
  %1868 = vmatprep.subr.mxu0 0.0
  %1869 = vmatpush1.msra.mxu0 0.0
  %1870 = vmatprep.mubr.f32.mxu0 0.0
  %1871 = vmatmul.mubr.f32.gmra.mrb[0].mxu0 %v1804
  %v1872 = vpop.f32.mrb[0].mxu0
  %v1873 = vadd.f32 %v70, %v1872
  %v1874 = vpop.f32.mrb[0].mxu0
  %1875 = vdwg.mxu0
  %v1876 = vtanh.pop %v1873
  %v1877 = vxor.u32 %v1873, 2147483648
  %v1878 = vmul.f32 %v1877, 1.442695
  %v1879 = vpow.pop %v1878
  %v1880 = vadd.f32 %v1879, 1.0
  %v1881 = vrcp.pop %v1880
  %v1882 = vmul.f32 1.0, %v1881
  %v1883 = vsel %vm84, %v1876, %v1882
  %v1884 = vmul.f32 %v1883, %v382
  %1886 = vrot.lane.b32.xlu0 %v1883, 64
  %v1887 = vpop.permute.xlu0 %1886
  %v1889 = vmul.f32 %v1883, %v1887
  %1891 = vrot.lane.b32.xlu0 %v1889, 32
  %v1892 = vpop.permute.xlu0 %1891
  %v1894 = vadd.f32 %v1884, %v1892
  %v1895 = vtanh.pop %v1894
  %1897 = vrot.lane.b32.xlu0 %v1895, 64
  %v1898 = vpop.permute.xlu0 %1897
  %v1900 = vmul.f32 %v1883, %v1898
  %1902 = vrot.lane.b32.xlu0 %v1900, 32
  %v1903 = vpop.permute.xlu0 %1902
  %1905 = vrot.lane.b32.xlu0 %v1784, 32
  %v1906 = vpop.permute.xlu0 %1905
  %1909 = vrot.lane.b32.xlu0 %v1596, 64
  %v1910 = vpop.permute.xlu0 %1909
  %v1912 = vsel %vm88, %v1903, %v1906
  %v1913 = vsel %vm413, %v1912, %v1910
  %v1914 = vld [vmem:[%s10] sm:$0xff]
  %v1915 = vld [vmem:[%s10 + $0x8] sm:$0xff]
  %v1916 = vld [vmem:[%s10 + $0x10] sm:$0xff]
  %v1917 = vld [vmem:[%s10 + $0x18] sm:$0xff]
  %v1918 = vld [vmem:[%s10 + $0x20] sm:$0xff]
  %v1919 = vld [vmem:[%s10 + $0x28] sm:$0xff]
  %v1920 = vld [vmem:[%s10 + $0x30] sm:$0xff]
  %v1921 = vld [vmem:[%s10 + $0x38] sm:$0xff]
  %v1922 = vld [vmem:[%s10 + $0x40] sm:$0xff]
  %v1923 = vld [vmem:[%s10 + $0x48] sm:$0xff]
  %v1925 = vsel %vm298, %v1913, 0
  %1927 = vmatprep.subr.mxu0 0.0
  %1928 = vmatpush1.msra.mxu0 %v1914
  %1929 = vmatprep.subr.mxu0 0.0
  %1930 = vmatpush1.msra.mxu0 %v1915
  %1931 = vmatprep.subr.mxu0 0.0
  %1932 = vmatpush1.msra.mxu0 %v1916
  %1933 = vmatprep.subr.mxu0 0.0
  %1934 = vmatpush1.msra.mxu0 %v1917
  %1935 = vmatprep.subr.mxu0 0.0
  %1936 = vmatpush1.msra.mxu0 %v1918
  %1937 = vmatprep.subr.mxu0 0.0
  %1938 = vmatpush1.msra.mxu0 %v1919
  %1939 = vmatprep.subr.mxu0 0.0
  %1940 = vmatpush1.msra.mxu0 %v1920
  %1941 = vmatprep.subr.mxu0 0.0
  %1942 = vmatpush1.msra.mxu0 %v1921
  %1943 = vmatprep.subr.mxu0 0.0
  %1944 = vmatpush1.msra.mxu0 %v1922
  %1945 = vmatprep.subr.mxu0 0.0
  %1946 = vmatpush1.msra.mxu0 %v1923
  %1947 = vmatprep.subr.mxu0 0.0
  %1948 = vmatpush1.msra.mxu0 0.0
  %1949 = vmatprep.subr.mxu0 0.0
  %1950 = vmatpush1.msra.mxu0 0.0
  %1951 = vmatprep.subr.mxu0 0.0
  %1952 = vmatpush1.msra.mxu0 0.0
  %1953 = vmatprep.subr.mxu0 0.0
  %1954 = vmatpush1.msra.mxu0 0.0
  %1955 = vmatprep.subr.mxu0 0.0
  %1956 = vmatpush1.msra.mxu0 0.0
  %1957 = vmatprep.subr.mxu0 0.0
  %1958 = vmatpush1.msra.mxu0 0.0
  %1959 = vmatprep.subr.mxu0 0.0
  %1960 = vmatpush1.msra.mxu0 0.0
  %1961 = vmatprep.subr.mxu0 0.0
  %1962 = vmatpush1.msra.mxu0 0.0
  %1963 = vmatprep.subr.mxu0 0.0
  %1964 = vmatpush1.msra.mxu0 0.0
  %1965 = vmatprep.subr.mxu0 0.0
  %1966 = vmatpush1.msra.mxu0 0.0
  %1967 = vmatprep.subr.mxu0 0.0
  %1968 = vmatpush1.msra.mxu0 0.0
  %1969 = vmatprep.subr.mxu0 0.0
  %1970 = vmatpush1.msra.mxu0 0.0
  %1971 = vmatprep.subr.mxu0 0.0
  %1972 = vmatpush1.msra.mxu0 0.0
  %1973 = vmatprep.subr.mxu0 0.0
  %1974 = vmatpush1.msra.mxu0 0.0
  %1975 = vmatprep.subr.mxu0 0.0
  %1976 = vmatpush1.msra.mxu0 0.0
  %1977 = vmatprep.subr.mxu0 0.0
  %1978 = vmatpush1.msra.mxu0 0.0
  %1979 = vmatprep.subr.mxu0 0.0
  %1980 = vmatpush1.msra.mxu0 0.0
  %1981 = vmatprep.subr.mxu0 0.0
  %1982 = vmatpush1.msra.mxu0 0.0
  %1983 = vmatprep.subr.mxu0 0.0
  %1984 = vmatpush1.msra.mxu0 0.0
  %1985 = vmatprep.subr.mxu0 0.0
  %1986 = vmatpush1.msra.mxu0 0.0
  %1987 = vmatprep.subr.mxu0 0.0
  %1988 = vmatpush1.msra.mxu0 0.0
  %1989 = vmatprep.subr.mxu0 0.0
  %1990 = vmatpush1.msra.mxu0 0.0
  %1991 = vmatprep.mubr.f32.mxu0 0.0
  %1992 = vmatmul.mubr.f32.gmra.mrb[0].mxu0 %v1925
  %v1993 = vpop.f32.mrb[0].mxu0
  %v1994 = vadd.f32 %v77, %v1993
  %v1995 = vpop.f32.mrb[0].mxu0
  %1996 = vdwg.mxu0
  %s1997 = scalar_lea.vmem %s13, 6
  %1998 = vst [vmem:[%s1997] sm:$0x3] %v1994
  %s1999 = scalar_lea.vmem %s14, 48
  %2000 = vst.msk [vmem:[%s1999] sm:$0xff] %vm209, %v1753
  %2001 = vst.msk [vmem:[%s1999 + $0x8] sm:$0xff] %vm209, %v1755
  %v2002 = vsel %vm501, %v1994, -inf
  %2003 = vmax.xlane.f32.xlu0 %v2002
  %v2004 = vpop.xlane.xlu0 %2003
  %vm2005 = vcmp.eq.f32.partialorder %v1994, %v2004
  %v2006 = vsel %vm2005, %v85, 128.0
  %v2007 = vsel %vm501, %v2006, inf
  %2008 = vmin.xlane.f32.xlu0 %v2007
  %v2009 = vpop.xlane.xlu0 %2008
  %vm2010 = vcmp.eq.f32.partialorder %v85, %v2009
  %v2011 = vsel %vm2010, 1, 0
  %v2012 = vcvt.s32.f32 %v2011
  %v2013 = vld [vmem:[%s12] sm:$0xff]
  %v2014 = vld [vmem:[%s12 + $0x8] sm:$0xff]
  %v2015 = vld [vmem:[%s12 + $0x10] sm:$0xff]
  %v2016 = vld [vmem:[%s12 + $0x18] sm:$0xff]
  %v2017 = vld [vmem:[%s12 + $0x20] sm:$0xff]
  %v2018 = vld [vmem:[%s12 + $0x28] sm:$0xff]
  %v2019 = vld [vmem:[%s12 + $0x30] sm:$0xff]
  %v2020 = vld [vmem:[%s12 + $0x38] sm:$0xff]
  %v2021 = vld [vmem:[%s12 + $0x40] sm:$0xff]
  %v2022 = vld [vmem:[%s12 + $0x48] sm:$0xff]
  %v2023 = vld [vmem:[%s12 + $0x50] sm:$0xff]
  %v2024 = vld [vmem:[%s12 + $0x58] sm:$0xff]
  %v2025 = vld [vmem:[%s12 + $0x60] sm:$0xff]
  %v2026 = vld [vmem:[%s12 + $0x68] sm:$0xff]
  %v2027 = vld [vmem:[%s12 + $0x70] sm:$0xff]
  %v2028 = vld [vmem:[%s12 + $0x78] sm:$0xff]
  %2029 = vmatprep.subr.mxu0 0.0
  %2030 = vmatpush1.msra.mxu0 %v2013
  %2031 = vmatprep.subr.mxu0 0.0
  %2032 = vmatpush1.msra.mxu0 %v2014
  %2033 = vmatprep.subr.mxu0 0.0
  %2034 = vmatpush1.msra.mxu0 %v2015
  %2035 = vmatprep.subr.mxu0 0.0
  %2036 = vmatpush1.msra.mxu0 %v2016
  %2037 = vmatprep.subr.mxu0 0.0
  %2038 = vmatpush1.msra.mxu0 %v2017
  %2039 = vmatprep.subr.mxu0 0.0
  %2040 = vmatpush1.msra.mxu0 %v2018
  %2041 = vmatprep.subr.mxu0 0.0
  %2042 = vmatpush1.msra.mxu0 %v2019
  %2043 = vmatprep.subr.mxu0 0.0
  %2044 = vmatpush1.msra.mxu0 %v2020
  %2045 = vmatprep.subr.mxu0 0.0
  %2046 = vmatpush1.msra.mxu0 %v2021
  %2047 = vmatprep.subr.mxu0 0.0
  %2048 = vmatpush1.msra.mxu0 %v2022
  %2049 = vmatprep.subr.mxu0 0.0
  %2050 = vmatpush1.msra.mxu0 %v2023
  %2051 = vmatprep.subr.mxu0 0.0
  %2052 = vmatpush1.msra.mxu0 %v2024
  %2053 = vmatprep.subr.mxu0 0.0
  %2054 = vmatpush1.msra.mxu0 %v2025
  %2055 = vmatprep.subr.mxu0 0.0
  %2056 = vmatpush1.msra.mxu0 %v2026
  %2057 = vmatprep.subr.mxu0 0.0
  %2058 = vmatpush1.msra.mxu0 %v2027
  %2059 = vmatprep.subr.mxu0 0.0
  %2060 = vmatpush1.msra.mxu0 %v2028
  %2061 = vmatprep.subr.mxu0 0.0
  %2062 = vmatpush1.msra.mxu0 0.0
  %2063 = vmatprep.subr.mxu0 0.0
  %2064 = vmatpush1.msra.mxu0 0.0
  %2065 = vmatprep.subr.mxu0 0.0
  %2066 = vmatpush1.msra.mxu0 0.0
  %2067 = vmatprep.subr.mxu0 0.0
  %2068 = vmatpush1.msra.mxu0 0.0
  %2069 = vmatprep.subr.mxu0 0.0
  %2070 = vmatpush1.msra.mxu0 0.0
  %2071 = vmatprep.subr.mxu0 0.0
  %2072 = vmatpush1.msra.mxu0 0.0
  %2073 = vmatprep.subr.mxu0 0.0
  %2074 = vmatpush1.msra.mxu0 0.0
  %2075 = vmatprep.subr.mxu0 0.0
  %2076 = vmatpush1.msra.mxu0 0.0
  %2077 = vmatprep.subr.mxu0 0.0
  %2078 = vmatpush1.msra.mxu0 0.0
  %2079 = vmatprep.subr.mxu0 0.0
  %2080 = vmatpush1.msra.mxu0 0.0
  %2081 = vmatprep.subr.mxu0 0.0
  %2082 = vmatpush1.msra.mxu0 0.0
  %2083 = vmatprep.subr.mxu0 0.0
  %2084 = vmatpush1.msra.mxu0 0.0
  %2085 = vmatprep.subr.mxu0 0.0
  %2086 = vmatpush1.msra.mxu0 0.0
  %2087 = vmatprep.subr.mxu0 0.0
  %2088 = vmatpush1.msra.mxu0 0.0
  %2089 = vmatprep.subr.mxu0 0.0
  %2090 = vmatpush1.msra.mxu0 0.0
  %2091 = vmatprep.subr.mxu0 0.0
  %2092 = vmatpush1.msra.mxu0 0.0
  %2093 = vmatprep.mubr.f32.mxu0 0.0
  %2094 = vmatmul.mubr.f32.gmra.mrb[0].mxu0 %v2012
  %v2095 = vpop.f32.mrb[0].mxu0
  %v2096 = vadd.f32 0.0, %v2095
  %v2097 = vpop.f32.mrb[0].mxu0
  %2098 = vdwg.mxu0
  %v2099 = vsel %vm88, %v1903, 0
  %2101 = vmatprep.subr.mxu0 0.0
  %2102 = vmatpush1.msra.mxu0 %v54
  %2103 = vmatprep.subr.mxu0 0.0
  %2104 = vmatpush1.msra.mxu0 %v55
  %2105 = vmatprep.subr.mxu0 0.0
  %2106 = vmatpush1.msra.mxu0 %v56
  %2107 = vmatprep.subr.mxu0 0.0
  %2108 = vmatpush1.msra.mxu0 %v57
  %2109 = vmatprep.subr.mxu0 0.0
  %2110 = vmatpush1.msra.mxu0 0.0
  %2111 = vmatprep.subr.mxu0 0.0
  %2112 = vmatpush1.msra.mxu0 0.0
  %2113 = vmatprep.subr.mxu0 0.0
  %2114 = vmatpush1.msra.mxu0 0.0
  %2115 = vmatprep.subr.mxu0 0.0
  %2116 = vmatpush1.msra.mxu0 0.0
  %2117 = vmatprep.subr.mxu0 0.0
  %2118 = vmatpush1.msra.mxu0 0.0
  %2119 = vmatprep.subr.mxu0 0.0
  %2120 = vmatpush1.msra.mxu0 0.0
  %2121 = vmatprep.subr.mxu0 0.0
  %2122 = vmatpush1.msra.mxu0 0.0
  %2123 = vmatprep.subr.mxu0 0.0
  %2124 = vmatpush1.msra.mxu0 0.0
  %2125 = vmatprep.subr.mxu0 0.0
  %2126 = vmatpush1.msra.mxu0 0.0
  %2127 = vmatprep.subr.mxu0 0.0
  %2128 = vmatpush1.msra.mxu0 0.0
  %2129 = vmatprep.subr.mxu0 0.0
  %2130 = vmatpush1.msra.mxu0 0.0
  %2131 = vmatprep.subr.mxu0 0.0
  %2132 = vmatpush1.msra.mxu0 0.0
  %2133 = vmatprep.subr.mxu0 0.0
  %2134 = vmatpush1.msra.mxu0 0.0
  %2135 = vmatprep.subr.mxu0 0.0
  %2136 = vmatpush1.msra.mxu0 0.0
  %2137 = vmatprep.subr.mxu0 0.0
  %2138 = vmatpush1.msra.mxu0 0.0
  %2139 = vmatprep.subr.mxu0 0.0
  %2140 = vmatpush1.msra.mxu0 0.0
  %2141 = vmatprep.subr.mxu0 0.0
  %2142 = vmatpush1.msra.mxu0 0.0
  %2143 = vmatprep.subr.mxu0 0.0
  %2144 = vmatpush1.msra.mxu0 0.0
  %2145 = vmatprep.subr.mxu0 0.0
  %2146 = vmatpush1.msra.mxu0 0.0
  %2147 = vmatprep.subr.mxu0 0.0
  %2148 = vmatpush1.msra.mxu0 0.0
  %2149 = vmatprep.subr.mxu0 0.0
  %2150 = vmatpush1.msra.mxu0 0.0
  %2151 = vmatprep.subr.mxu0 0.0
  %2152 = vmatpush1.msra.mxu0 0.0
  %2153 = vmatprep.subr.mxu0 0.0
  %2154 = vmatpush1.msra.mxu0 0.0
  %2155 = vmatprep.subr.mxu0 0.0
  %2156 = vmatpush1.msra.mxu0 0.0
  %2157 = vmatprep.subr.mxu0 0.0
  %2158 = vmatpush1.msra.mxu0 0.0
  %2159 = vmatprep.subr.mxu0 0.0
  %2160 = vmatpush1.msra.mxu0 0.0
  %2161 = vmatprep.subr.mxu0 0.0
  %2162 = vmatpush1.msra.mxu0 0.0
  %2163 = vmatprep.subr.mxu0 0.0
  %2164 = vmatpush1.msra.mxu0 0.0
  %2165 = vmatprep.mubr.f32.mxu0 0.0
  %2166 = vmatmul.mubr.f32.gmra.mrb[0].mxu0 %v2099
  %v2167 = vpop.f32.mrb[0].mxu0
  %v2168 = vadd.f32 0.0, %v2167
  %v2169 = vpop.f32.mrb[0].mxu0
  %2170 = vdwg.mxu0
  %v2173 = vunpack.c.l.s4 1966171168
  %v2174 = vunpack.c.0.s8 %v2173
  %v2175 = vlaneseq
  %v2176 = vshrl.u32 %v2175, 7
  %v2177 = vsub.s32 %v2174, %v2176
  %v2178 = vrot.slane %v2168, %v2177
  %v2179 = vcombine.high %v2178, %v2178
  %v2181 = vunpack.c.l.s4 1966171168
  %v2182 = vunpack.c.0.s8 %v2181
  %v2183 = vlaneseq
  %v2184 = vshrl.u32 %v2183, 7
  %v2185 = vsub.s32 %v2182, %v2184
  %v2186 = vrot.slane %v2178, %v2185
  %v2188 = vunpack.c.l.s4 1966171168
  %v2189 = vunpack.c.0.s8 %v2188
  %v2190 = vlaneseq
  %v2191 = vshrl.u32 %v2190, 7
  %v2192 = vsub.s32 %v2189, %v2191
  %v2193 = vrot.slane %v2179, %v2192
  %v2194 = vlaneseq
  %v2195 = vshrl.u32 %v2194, 7
  %v2196 = vsub.s32 0, %v2195
  %v2197 = vrot.slane %v2186, %v2196
  %v2198 = vlaneseq
  %v2199 = vshrl.u32 %v2198, 7
  %v2200 = vsub.s32 0, %v2199
  %v2201 = vrot.slane %v2193, %v2200
  %v2204 = vadd.f32 %v2197, %v48
  %v2205 = vadd.f32 %v2201, %v49
  %v2206 = vtanh.pop %v2204
  %v2207 = vtanh.pop %v2205
  %v2208 = vmul.f32 %v63, %v2206
  %v2209 = vmul.f32 %v63, %v2207
  %v2210 = vsel %vm88, %v2208, 0.0
  %2211 = vadd.xlane.f32.xlu0 %v2210
  %v2212 = vpop.xlane.xlu0 %2211
  %v2213 = vsel %vm88, %v2209, 0.0
  %2214 = vadd.xlane.f32.xlu0 %v2213
  %v2215 = vpop.xlane.xlu0 %2214
  %v2216 = vsel %vm52, %v2212, -1e+10
  %v2217 = vsel %vm53, %v2215, -1e+10
  %v2218 = vsel %vm209, %v2216, -inf
  %v2219 = vrot.slane %v2218, 4
  %v2220 = vmax.f32 %v2218, %v2219
  %v2221 = vrot.slane %v2220, 2
  %v2222 = vmax.f32 %v2220, %v2221
  %v2223 = vrot.slane %v2222, 1
  %v2224 = vmax.f32 %v2222, %v2223
  %v2225 = vsel %vm209, %v2217, -inf
  %v2226 = vrot.slane %v2225, 4
  %v2227 = vmax.f32 %v2225, %v2226
  %v2228 = vrot.slane %v2227, 2
  %v2229 = vmax.f32 %v2227, %v2228
  %v2230 = vrot.slane %v2229, 1
  %v2231 = vmax.f32 %v2229, %v2230
  %v2232 = vsub.f32 %v2216, %v2224
  %v2233 = vsub.f32 %v2217, %v2231
  %v2234 = vmul.f32 %v2232, 1.442695
  %v2235 = vpow.pop %v2234
  %v2236 = vmul.f32 %v2233, 1.442695
  %v2237 = vpow.pop %v2236
  %v2238 = vsel %vm209, %v2235, 0.0
  %v2239 = vrot.slane %v2238, 4
  %v2240 = vadd.f32 %v2238, %v2239
  %v2241 = vrot.slane %v2240, 2
  %v2242 = vadd.f32 %v2240, %v2241
  %v2243 = vrot.slane %v2242, 1
  %v2244 = vadd.f32 %v2242, %v2243
  %v2245 = vsel %vm209, %v2237, 0.0
  %v2246 = vrot.slane %v2245, 4
  %v2247 = vadd.f32 %v2245, %v2246
  %v2248 = vrot.slane %v2247, 2
  %v2249 = vadd.f32 %v2247, %v2248
  %v2250 = vrot.slane %v2249, 1
  %v2251 = vadd.f32 %v2249, %v2250
  %v2252 = vrcp.pop %v2244
  %v2253 = vmul.f32 %v2235, %v2252
  %v2254 = vrcp.pop %v2251
  %v2255 = vmul.f32 %v2237, %v2254
  %2257 = vset.pattern.permute.xlu0 0
  %2258 = vperm.xlu0 %2257, %v2253
  %v2259 = vpop.permute.xlu0 %2258
  %2262 = vset.pattern.permute.xlu0 0
  %2263 = vperm.xlu0 %2262, %v2255
  %v2264 = vpop.permute.xlu0 %2263
  %v2266 = vmul.f32 %v2259, %v46
  %v2267 = vmul.f32 %v2264, %v47
  %v2268 = vsel %vm88, %v2266, 0.0
  %v2269 = vrot.slane %v2268, 4
  %v2270 = vadd.f32 %v2268, %v2269
  %v2271 = vrot.slane %v2270, 2
  %v2272 = vadd.f32 %v2270, %v2271
  %v2273 = vrot.slane %v2272, 1
  %v2274 = vadd.f32 %v2272, %v2273
  %v2275 = vsel %vm88, %v2267, 0.0
  %v2276 = vrot.slane %v2275, 4
  %v2277 = vadd.f32 %v2275, %v2276
  %v2278 = vrot.slane %v2277, 2
  %v2279 = vadd.f32 %v2277, %v2278
  %v2280 = vrot.slane %v2279, 1
  %v2281 = vadd.f32 %v2279, %v2280
  %v2284 = vsel %vm276, %v2281, %v2274
  %2285 = vrot.lane.b32.xlu0 %v2284, 16
  %v2286 = vpop.permute.xlu0 %2285
  %2288 = vrot.lane.b32.xlu0 %v1900, 80
  %v2289 = vpop.permute.xlu0 %2288
  %v2291 = vsel %vm284, %v2096, %v2286
  %v2292 = vsel %vm286, %v2291, %v2289
  %v2293 = vld [vmem:[%s8] sm:$0xff]
  %v2294 = vld [vmem:[%s8 + $0x8] sm:$0xff]
  %v2295 = vld [vmem:[%s8 + $0x10] sm:$0xff]
  %v2296 = vld [vmem:[%s8 + $0x18] sm:$0xff]
  %v2297 = vld [vmem:[%s8 + $0x20] sm:$0xff]
  %v2298 = vld [vmem:[%s8 + $0x28] sm:$0xff]
  %v2299 = vld [vmem:[%s8 + $0x30] sm:$0xff]
  %v2300 = vld [vmem:[%s8 + $0x38] sm:$0xff]
  %v2301 = vld [vmem:[%s8 + $0x40] sm:$0xff]
  %v2302 = vld [vmem:[%s8 + $0x48] sm:$0xff]
  %v2304 = vsel %vm298, %v2292, 0
  %2306 = vmatprep.subr.mxu0 0.0
  %2307 = vmatpush1.msra.mxu0 %v2293
  %2308 = vmatprep.subr.mxu0 0.0
  %2309 = vmatpush1.msra.mxu0 %v2294
  %2310 = vmatprep.subr.mxu0 0.0
  %2311 = vmatpush1.msra.mxu0 %v2295
  %2312 = vmatprep.subr.mxu0 0.0
  %2313 = vmatpush1.msra.mxu0 %v2296
  %2314 = vmatprep.subr.mxu0 0.0
  %2315 = vmatpush1.msra.mxu0 %v2297
  %2316 = vmatprep.subr.mxu0 0.0
  %2317 = vmatpush1.msra.mxu0 %v2298
  %2318 = vmatprep.subr.mxu0 0.0
  %2319 = vmatpush1.msra.mxu0 %v2299
  %2320 = vmatprep.subr.mxu0 0.0
  %2321 = vmatpush1.msra.mxu0 %v2300
  %2322 = vmatprep.subr.mxu0 0.0
  %2323 = vmatpush1.msra.mxu0 %v2301
  %2324 = vmatprep.subr.mxu0 0.0
  %2325 = vmatpush1.msra.mxu0 %v2302
  %2326 = vmatprep.subr.mxu0 0.0
  %2327 = vmatpush1.msra.mxu0 0.0
  %2328 = vmatprep.subr.mxu0 0.0
  %2329 = vmatpush1.msra.mxu0 0.0
  %2330 = vmatprep.subr.mxu0 0.0
  %2331 = vmatpush1.msra.mxu0 0.0
  %2332 = vmatprep.subr.mxu0 0.0
  %2333 = vmatpush1.msra.mxu0 0.0
  %2334 = vmatprep.subr.mxu0 0.0
  %2335 = vmatpush1.msra.mxu0 0.0
  %2336 = vmatprep.subr.mxu0 0.0
  %2337 = vmatpush1.msra.mxu0 0.0
  %2338 = vmatprep.subr.mxu0 0.0
  %2339 = vmatpush1.msra.mxu0 0.0
  %2340 = vmatprep.subr.mxu0 0.0
  %2341 = vmatpush1.msra.mxu0 0.0
  %2342 = vmatprep.subr.mxu0 0.0
  %2343 = vmatpush1.msra.mxu0 0.0
  %2344 = vmatprep.subr.mxu0 0.0
  %2345 = vmatpush1.msra.mxu0 0.0
  %2346 = vmatprep.subr.mxu0 0.0
  %2347 = vmatpush1.msra.mxu0 0.0
  %2348 = vmatprep.subr.mxu0 0.0
  %2349 = vmatpush1.msra.mxu0 0.0
  %2350 = vmatprep.subr.mxu0 0.0
  %2351 = vmatpush1.msra.mxu0 0.0
  %2352 = vmatprep.subr.mxu0 0.0
  %2353 = vmatpush1.msra.mxu0 0.0
  %2354 = vmatprep.subr.mxu0 0.0
  %2355 = vmatpush1.msra.mxu0 0.0
  %2356 = vmatprep.subr.mxu0 0.0
  %2357 = vmatpush1.msra.mxu0 0.0
  %2358 = vmatprep.subr.mxu0 0.0
  %2359 = vmatpush1.msra.mxu0 0.0
  %2360 = vmatprep.subr.mxu0 0.0
  %2361 = vmatpush1.msra.mxu0 0.0
  %2362 = vmatprep.subr.mxu0 0.0
  %2363 = vmatpush1.msra.mxu0 0.0
  %2364 = vmatprep.subr.mxu0 0.0
  %2365 = vmatpush1.msra.mxu0 0.0
  %2366 = vmatprep.subr.mxu0 0.0
  %2367 = vmatpush1.msra.mxu0 0.0
  %2368 = vmatprep.subr.mxu0 0.0
  %2369 = vmatpush1.msra.mxu0 0.0
  %2370 = vmatprep.mubr.f32.mxu0 0.0
  %2371 = vmatmul.mubr.f32.gmra.mrb[0].mxu0 %v2304
  %v2372 = vpop.f32.mrb[0].mxu0
  %v2373 = vadd.f32 %v70, %v2372
  %v2374 = vpop.f32.mrb[0].mxu0
  %2375 = vdwg.mxu0
  %v2376 = vtanh.pop %v2373
  %v2377 = vxor.u32 %v2373, 2147483648
  %v2378 = vmul.f32 %v2377, 1.442695
  %v2379 = vpow.pop %v2378
  %v2380 = vadd.f32 %v2379, 1.0
  %v2381 = vrcp.pop %v2380
  %v2382 = vmul.f32 1.0, %v2381
  %v2383 = vsel %vm84, %v2376, %v2382
  %v2384 = vmul.f32 %v2383, %v382
  %2386 = vrot.lane.b32.xlu0 %v2383, 64
  %v2387 = vpop.permute.xlu0 %2386
  %v2389 = vmul.f32 %v2383, %v2387
  %2391 = vrot.lane.b32.xlu0 %v2389, 32
  %v2392 = vpop.permute.xlu0 %2391
  %v2394 = vadd.f32 %v2384, %v2392
  %v2395 = vtanh.pop %v2394
  %2397 = vrot.lane.b32.xlu0 %v2395, 64
  %v2398 = vpop.permute.xlu0 %2397
  %v2400 = vmul.f32 %v2383, %v2398
  %2402 = vrot.lane.b32.xlu0 %v2400, 32
  %v2403 = vpop.permute.xlu0 %2402
  %2405 = vrot.lane.b32.xlu0 %v2284, 32
  %v2406 = vpop.permute.xlu0 %2405
  %2409 = vrot.lane.b32.xlu0 %v2096, 64
  %v2410 = vpop.permute.xlu0 %2409
  %v2412 = vsel %vm88, %v2403, %v2406
  %v2413 = vsel %vm413, %v2412, %v2410
  %v2414 = vld [vmem:[%s10] sm:$0xff]
  %v2415 = vld [vmem:[%s10 + $0x8] sm:$0xff]
  %v2416 = vld [vmem:[%s10 + $0x10] sm:$0xff]
  %v2417 = vld [vmem:[%s10 + $0x18] sm:$0xff]
  %v2418 = vld [vmem:[%s10 + $0x20] sm:$0xff]
  %v2419 = vld [vmem:[%s10 + $0x28] sm:$0xff]
  %v2420 = vld [vmem:[%s10 + $0x30] sm:$0xff]
  %v2421 = vld [vmem:[%s10 + $0x38] sm:$0xff]
  %v2422 = vld [vmem:[%s10 + $0x40] sm:$0xff]
  %v2423 = vld [vmem:[%s10 + $0x48] sm:$0xff]
  %v2425 = vsel %vm298, %v2413, 0
  %2427 = vmatprep.subr.mxu0 0.0
  %2428 = vmatpush1.msra.mxu0 %v2414
  %2429 = vmatprep.subr.mxu0 0.0
  %2430 = vmatpush1.msra.mxu0 %v2415
  %2431 = vmatprep.subr.mxu0 0.0
  %2432 = vmatpush1.msra.mxu0 %v2416
  %2433 = vmatprep.subr.mxu0 0.0
  %2434 = vmatpush1.msra.mxu0 %v2417
  %2435 = vmatprep.subr.mxu0 0.0
  %2436 = vmatpush1.msra.mxu0 %v2418
  %2437 = vmatprep.subr.mxu0 0.0
  %2438 = vmatpush1.msra.mxu0 %v2419
  %2439 = vmatprep.subr.mxu0 0.0
  %2440 = vmatpush1.msra.mxu0 %v2420
  %2441 = vmatprep.subr.mxu0 0.0
  %2442 = vmatpush1.msra.mxu0 %v2421
  %2443 = vmatprep.subr.mxu0 0.0
  %2444 = vmatpush1.msra.mxu0 %v2422
  %2445 = vmatprep.subr.mxu0 0.0
  %2446 = vmatpush1.msra.mxu0 %v2423
  %2447 = vmatprep.subr.mxu0 0.0
  %2448 = vmatpush1.msra.mxu0 0.0
  %2449 = vmatprep.subr.mxu0 0.0
  %2450 = vmatpush1.msra.mxu0 0.0
  %2451 = vmatprep.subr.mxu0 0.0
  %2452 = vmatpush1.msra.mxu0 0.0
  %2453 = vmatprep.subr.mxu0 0.0
  %2454 = vmatpush1.msra.mxu0 0.0
  %2455 = vmatprep.subr.mxu0 0.0
  %2456 = vmatpush1.msra.mxu0 0.0
  %2457 = vmatprep.subr.mxu0 0.0
  %2458 = vmatpush1.msra.mxu0 0.0
  %2459 = vmatprep.subr.mxu0 0.0
  %2460 = vmatpush1.msra.mxu0 0.0
  %2461 = vmatprep.subr.mxu0 0.0
  %2462 = vmatpush1.msra.mxu0 0.0
  %2463 = vmatprep.subr.mxu0 0.0
  %2464 = vmatpush1.msra.mxu0 0.0
  %2465 = vmatprep.subr.mxu0 0.0
  %2466 = vmatpush1.msra.mxu0 0.0
  %2467 = vmatprep.subr.mxu0 0.0
  %2468 = vmatpush1.msra.mxu0 0.0
  %2469 = vmatprep.subr.mxu0 0.0
  %2470 = vmatpush1.msra.mxu0 0.0
  %2471 = vmatprep.subr.mxu0 0.0
  %2472 = vmatpush1.msra.mxu0 0.0
  %2473 = vmatprep.subr.mxu0 0.0
  %2474 = vmatpush1.msra.mxu0 0.0
  %2475 = vmatprep.subr.mxu0 0.0
  %2476 = vmatpush1.msra.mxu0 0.0
  %2477 = vmatprep.subr.mxu0 0.0
  %2478 = vmatpush1.msra.mxu0 0.0
  %2479 = vmatprep.subr.mxu0 0.0
  %2480 = vmatpush1.msra.mxu0 0.0
  %2481 = vmatprep.subr.mxu0 0.0
  %2482 = vmatpush1.msra.mxu0 0.0
  %2483 = vmatprep.subr.mxu0 0.0
  %2484 = vmatpush1.msra.mxu0 0.0
  %2485 = vmatprep.subr.mxu0 0.0
  %2486 = vmatpush1.msra.mxu0 0.0
  %2487 = vmatprep.subr.mxu0 0.0
  %2488 = vmatpush1.msra.mxu0 0.0
  %2489 = vmatprep.subr.mxu0 0.0
  %2490 = vmatpush1.msra.mxu0 0.0
  %2491 = vmatprep.mubr.f32.mxu0 0.0
  %2492 = vmatmul.mubr.f32.gmra.mrb[0].mxu0 %v2425
  %v2493 = vpop.f32.mrb[0].mxu0
  %v2494 = vadd.f32 %v77, %v2493
  %v2495 = vpop.f32.mrb[0].mxu0
  %2496 = vdwg.mxu0
  %s2497 = scalar_lea.vmem %s13, 8
  %2498 = vst [vmem:[%s2497] sm:$0x3] %v2494
  %s2499 = scalar_lea.vmem %s14, 64
  %2500 = vst.msk [vmem:[%s2499] sm:$0xff] %vm209, %v2253
  %2501 = vst.msk [vmem:[%s2499 + $0x8] sm:$0xff] %vm209, %v2255
  // Predicated region
  $region54: #{seq2seq_forward.3} parent=0 // pred_check
    _
  $region55: #{seq2seq_forward.3} parent=0 // pred_check_branch
    %2503 = sbr.rel (0) target = $region57
  $region56: #{seq2seq_forward.3} parent=0 // pred_region
    _
  $region57: #{seq2seq_forward.3} parent=0 // pred_fallthru
    _
  // Predicated region
  $region58: #{seq2seq_forward.3} parent=0 // pred_check
    _
  $region59: #{seq2seq_forward.3} parent=0 // pred_check_branch
    %2505 = sbr.rel (0) target = $region61
  $region60: #{seq2seq_forward.3} parent=0 // pred_region
    _
  $region61: #{seq2seq_forward.3} parent=0 // pred_fallthru
    _
  // Predicated region
  $region62: #{seq2seq_forward.3} parent=0 // pred_check
    _
  $region63: #{seq2seq_forward.3} parent=0 // pred_check_branch
    %2507 = sbr.rel (0) target = $region65
  $region64: #{seq2seq_forward.3} parent=0 // pred_region
    _
  $region65: #{seq2seq_forward.3} parent=0 // pred_fallthru
    _
  // Predicated region
  $region66: #{seq2seq_forward.3} parent=0 // pred_check
    _
  $region67: #{seq2seq_forward.3} parent=0 // pred_check_branch
    %2509 = sbr.rel (0) target = $region69
  $region68: #{seq2seq_forward.3} parent=0 // pred_region
    _
  $region69: #{seq2seq_forward.3} parent=0 // pred_fallthru
    _

</llo_original>
